<compile_context>
chip_gen: v6e
topology: v6e:2x2x1
jax: 0.10.0
libtpu: 0.0.40
codegen_flags: <defaults>
</compile_context>

<pallas_src>
import jax
import jax.numpy as jnp
from jax.experimental import pallas as pl
from jax.experimental.pallas import tpu as pltpu

H = 128           # LSTM hidden size
IN = 256          # LSTM input size
T = 6             # sequence length (expand(-1, 6, 256))
NCLS = 36         # characters per position
OUT = T * NCLS    # 216
OUT_PAD = 256     # lane-dense padded output width


def _sigmoid(x):
    # Exactly sigmoid(x) = 0.5 * (tanh(x / 2) + 1): a single EUP tanh instead of
    # exp + reciprocal.
    return 0.5 * (jnp.tanh(0.5 * x) + 1.0)


def _lstm_gates(gates, c):
    """Apply PyTorch-ordered (i, f, g, o) LSTM gates. All math in f32."""
    i = _sigmoid(gates[:, 0 * H:1 * H])
    f = _sigmoid(gates[:, 1 * H:2 * H])
    g = jnp.tanh(gates[:, 2 * H:3 * H])
    o = _sigmoid(gates[:, 3 * H:4 * H])
    c_new = f * c + i * g
    h_new = o * jnp.tanh(c_new)
    return h_new, c_new


def decoder_kernel(x_ref,
                   wih0_ref, b0_ref, whh0_ref,
                   wl1_ref, b1_ref,
                   wout_ref, bout_ref,
                   out_ref):
    # x tile: (tB, 256) f32 -> bf16 for the MXU
    x = x_ref[...].astype(jnp.bfloat16)
    tB = x.shape[0]

    # Layer-0 input projection is identical at every timestep: hoist it.
    pre0 = jnp.dot(x, wih0_ref[...],
                   preferred_element_type=jnp.float32) + b0_ref[...]   # (tB, 512) f32

    whh0 = whh0_ref[...]            # (128, 512) bf16
    wl1 = wl1_ref[...]              # (256, 512) bf16: vstack([wih1, whh1])
    b1 = b1_ref[...]                # (1, 512)   f32

    # Zero initial state (LSTM called with hx=None).
    c0 = jnp.zeros((tB, H), jnp.float32)
    c1 = jnp.zeros((tB, H), jnp.float32)
    h0b = None                      # h0_{t-1} in bf16
    h1b = None                      # h1_{t-1} in bf16

    h1_slabs = []                   # per-step h1_t (bf16) for the deferred head

    # T=6 is tiny: unroll at trace time.
    for t in range(T):
        # ---- layer 0 cell ----
        if t == 0:
            gates0 = pre0                                   # h0_{-1} == 0: skip whh0 matmul
        else:
            gates0 = pre0 + jnp.dot(h0b, whh0,
                                    preferred_element_type=jnp.float32)
        h0, c0 = _lstm_gates(gates0, c0)
        h0b = h0.astype(jnp.bfloat16)

        # ---- layer 1 cell (K=256 fused [wih1; whh1] matmul) ----
        if t == 0:
            # h1_{-1} == 0: only the wih1 half contributes (K=128).
            gates1 = jnp.dot(h0b, wl1[:H, :],
                             preferred_element_type=jnp.float32) + b1
        else:
            lhs = jnp.concatenate([h0b, h1b], axis=-1)      # (tB, 256) bf16
            gates1 = jnp.dot(lhs, wl1,
                             preferred_element_type=jnp.float32) + b1
        h1, c1 = _lstm_gates(gates1, c1)
        h1b = h1.astype(jnp.bfloat16)
        h1_slabs.append(h1b)

    # ---- deferred output head: one (tB, 768) @ (768, 256) matmul ----
    slab = jnp.concatenate(h1_slabs, axis=-1)               # (tB, 768) bf16, lane concat
    out_ref[...] = jnp.dot(slab, wout_ref[...],
                           preferred_element_type=jnp.float32) + bout_ref[...]


def _choose_tile(B):
    """Pick a sublane-aligned batch tile: small batches stay small; moderate
    batches get >= 2 grid steps (v7x has 2 TensorCores); large batches tile at 256."""
    B8 = ((B + 7) // 8) * 8
    if B8 < 16:
        return B8
    if B8 >= 512:
        return 256
    return ((pl.cdiv(B8, 2) + 7) // 8) * 8


def decoder_forward(x, params, tB=None):
    """x: any array whose elements flatten to (B, 256).
    Returns (B, 6, 36), matching the PyTorch Decoder.forward."""
    x2d = x.reshape(-1, IN).astype(jnp.float32)
    B = x2d.shape[0]

    if tB is None:
        tB = _choose_tile(B)

    # Pad the batch to a multiple of the tile size (zero rows flow through and
    # are sliced off; wasted-work is at most tB-1 <= 255 rows).
    Bp = pl.cdiv(B, tB) * tB
    if Bp != B:
        x2d = jnp.pad(x2d, ((0, Bp - B), (0, 0)))

    # Resident weights: bf16 matmul operands, prepacked [wih1; whh1] (K=256 path),
    # lane-padded output head. Biases stay f32.
    wih0 = params["wih0"].astype(jnp.bfloat16)                              # (256, 512)
    whh0 = params["whh0"].astype(jnp.bfloat16)                              # (128, 512)
    wl1 = jnp.concatenate([params["wih1"], params["whh1"]],
                          axis=0).astype(jnp.bfloat16)                      # (256, 512)
    wout_pad = jnp.zeros((T * H, OUT_PAD), jnp.float32
                         ).at[:, :OUT].set(params["wout"]).astype(jnp.bfloat16)
    bout_pad = jnp.zeros((1, OUT_PAD), jnp.float32).at[:, :OUT].set(params["bout"])

    out = pl.pallas_call(
        decoder_kernel,
        out_shape=jax.ShapeDtypeStruct((Bp, OUT_PAD), jnp.float32),
        grid=(Bp // tB,),
        in_specs=[
            pl.BlockSpec((tB, IN), lambda i: (i, 0)),          # x tile
            pl.BlockSpec((IN, 4 * H), lambda i: (0, 0)),       # wih0 (resident)
            pl.BlockSpec((1, 4 * H), lambda i: (0, 0)),        # b0
            pl.BlockSpec((H, 4 * H), lambda i: (0, 0)),        # whh0
            pl.BlockSpec((2 * H, 4 * H), lambda i: (0, 0)),    # [wih1; whh1]
            pl.BlockSpec((1, 4 * H), lambda i: (0, 0)),        # b1
            pl.BlockSpec((T * H, OUT_PAD), lambda i: (0, 0)),  # wout (lane-padded)
            pl.BlockSpec((1, OUT_PAD), lambda i: (0, 0)),      # bout (lane-padded)
        ],
        out_specs=pl.BlockSpec((tB, OUT_PAD), lambda i: (i, 0)),
        compiler_params=pltpu.CompilerParams(
            dimension_semantics=("parallel",),
        ),
    )(x2d, wih0, params["b0"], whh0, wl1, params["b1"], wout_pad, bout_pad)

    return out[:B, :OUT].reshape(-1, T, NCLS)


def init_params(key):
    """Deterministic synthetic parameters with the same shapes as the
    PyTorch module (weights stored transposed: (in, out))."""
    ks = jax.random.split(key, 10)
    s = 1.0 / jnp.sqrt(H)

    def u(k, shape):
        return jax.random.uniform(k, shape, jnp.float32, -s, s)

    return {
        # layer 0: W_ih (256 -> 4*128), W_hh (128 -> 4*128), combined bias
        "wih0": u(ks[0], (IN, 4 * H)),
        "whh0": u(ks[1], (H, 4 * H)),
        "b0":   u(ks[2], (1, 4 * H)) + u(ks[3], (1, 4 * H)),   # b_ih + b_hh
        # layer 1: W_ih (128 -> 4*128), W_hh (128 -> 4*128), combined bias
        "wih1": u(ks[4], (H, 4 * H)),
        "whh1": u(ks[5], (H, 4 * H)),
        "b1":   u(ks[6], (1, 4 * H)) + u(ks[7], (1, 4 * H)),
        # output Linear(768 -> 216)
        "wout": u(ks[8], (T * H, OUT)),
        "bout": u(ks[9], (1, OUT)),
    }


def decoder_reference(x, params):
    """Pure-JAX f32 reference of the same forward (for correctness check)."""
    x2d = x.reshape(-1, IN).astype(jnp.float32)
    B = x2d.shape[0]
    h0 = c0 = h1 = c1 = jnp.zeros((B, H), jnp.float32)
    pre0 = x2d @ params["wih0"] + params["b0"]

    def cell(pre, h, c, whh):
        g = pre + h @ whh
        i = jax.nn.sigmoid(g[:, :H])
        f = jax.nn.sigmoid(g[:, H:2 * H])
        gg = jnp.tanh(g[:, 2 * H:3 * H])
        o = jax.nn.sigmoid(g[:, 3 * H:])
        c_new = f * c + i * gg
        return o * jnp.tanh(c_new), c_new

    hs = []
    for _ in range(T):
        h0, c0 = cell(pre0, h0, c0, params["whh0"])
        pre1 = h0 @ params["wih1"] + params["b1"]
        h1, c1 = cell(pre1, h1, c1, params["whh1"])
        hs.append(h1)
    y1 = jnp.concatenate(hs, axis=-1)
    return (y1 @ params["wout"] + params["bout"]).reshape(-1, T, NCLS)


if __name__ == "__main__":
    key = jax.random.PRNGKey(0)
    k_x, k_p = jax.random.split(key)

    # small example input: batch=2 feature vectors of size 256
    x = jax.random.normal(k_x, (2, IN), jnp.float32)
    params = init_params(k_p)

    out = decoder_forward(x, params)
    out = jax.block_until_ready(out)

    ref = decoder_reference(x, params)
    assert out.shape == (2, T, NCLS), out.shape
    # bf16 MXU operands (f32 accumulation) -> slightly looser tolerance.
    assert jnp.allclose(out, ref, atol=5e-2, rtol=5e-2), "mismatch vs reference"

    print("KERNEL_OK")
</pallas_src>

<mosaic_0001>
module attributes {stable_mosaic.version = 11 : i64} {
  func.func @decoder_kernel(%arg0: i32, %arg1: memref<8x256xf32, #tpu.memory_space<vmem>>, %arg2: memref<256x512xbf16, #tpu.memory_space<vmem>>, %arg3: memref<1x512xf32, #tpu.memory_space<vmem>>, %arg4: memref<128x512xbf16, #tpu.memory_space<vmem>>, %arg5: memref<256x512xbf16, #tpu.memory_space<vmem>>, %arg6: memref<1x512xf32, #tpu.memory_space<vmem>>, %arg7: memref<768x256xbf16, #tpu.memory_space<vmem>>, %arg8: memref<1x256xf32, #tpu.memory_space<vmem>>, %arg9: memref<8x256xf32, #tpu.memory_space<vmem>>) attributes {dimension_semantics = [#tpu.dimension_semantics<parallel>], iteration_bounds = array<i64: 1>, scalar_prefetch = 0 : i64, scratch_operands = 0 : i64, tpu.core_type = #tpu.core_type<tc>, window_params = [{transform_indices = @transform_0, window_bounds = array<i64: 8, 256>}, {pipeline_mode = #tpu.pipeline_mode<synchronous>, transform_indices = @transform_1, window_bounds = array<i64: 256, 512>}, {pipeline_mode = #tpu.pipeline_mode<synchronous>, transform_indices = @transform_2, window_bounds = array<i64: 1, 512>}, {pipeline_mode = #tpu.pipeline_mode<synchronous>, transform_indices = @transform_3, window_bounds = array<i64: 128, 512>}, {pipeline_mode = #tpu.pipeline_mode<synchronous>, transform_indices = @transform_4, window_bounds = array<i64: 256, 512>}, {pipeline_mode = #tpu.pipeline_mode<synchronous>, transform_indices = @transform_5, window_bounds = array<i64: 1, 512>}, {pipeline_mode = #tpu.pipeline_mode<synchronous>, transform_indices = @transform_6, window_bounds = array<i64: 768, 256>}, {pipeline_mode = #tpu.pipeline_mode<synchronous>, transform_indices = @transform_7, window_bounds = array<i64: 1, 256>}, {transform_indices = @transform_8, window_bounds = array<i64: 8, 256>}]} {
    %c0 = arith.constant 0 : index
    %c0_0 = arith.constant 0 : index
    %0 = vector.load %arg1[%c0, %c0_0] : memref<8x256xf32, #tpu.memory_space<vmem>>, vector<8x256xf32>
    %1 = arith.truncf %0 : vector<8x256xf32> to vector<8x256xbf16>
    %c0_1 = arith.constant 0 : index
    %c0_2 = arith.constant 0 : index
    %2 = vector.load %arg2[%c0_1, %c0_2] : memref<256x512xbf16, #tpu.memory_space<vmem>>, vector<256x512xbf16>
    %cst = arith.constant dense<0.000000e+00> : vector<8x512xf32>
    %3 = tpu.matmul %1, %2, %cst {dimension_numbers = #tpu.dot_dimension_numbers<[1], [0], [0], [1], [0, 0, 1, 1], [], []>} : vector<8x256xbf16>, vector<256x512xbf16>, vector<8x512xf32> -> vector<8x512xf32>
    %c0_3 = arith.constant 0 : index
    %c0_4 = arith.constant 0 : index
    %4 = vector.load %arg3[%c0_3, %c0_4] : memref<1x512xf32, #tpu.memory_space<vmem>>, vector<1x512xf32>
    %5 = vector.broadcast %4 : vector<1x512xf32> to vector<8x512xf32>
    %6 = arith.addf %3, %5 : vector<8x512xf32>
    %c0_5 = arith.constant 0 : index
    %c0_6 = arith.constant 0 : index
    %7 = vector.load %arg4[%c0_5, %c0_6] : memref<128x512xbf16, #tpu.memory_space<vmem>>, vector<128x512xbf16>
    %c0_7 = arith.constant 0 : index
    %c0_8 = arith.constant 0 : index
    %8 = vector.load %arg5[%c0_7, %c0_8] : memref<256x512xbf16, #tpu.memory_space<vmem>>, vector<256x512xbf16>
    %c0_9 = arith.constant 0 : index
    %c0_10 = arith.constant 0 : index
    %9 = vector.load %arg6[%c0_9, %c0_10] : memref<1x512xf32, #tpu.memory_space<vmem>>, vector<1x512xf32>
    %cst_11 = arith.constant 0.000000e+00 : f32
    %10 = vector.broadcast %cst_11 : f32 to vector<8x128xf32>
    %cst_12 = arith.constant 0.000000e+00 : f32
    %11 = vector.broadcast %cst_12 : f32 to vector<8x128xf32>
    %12 = vector.extract_strided_slice %6 {offsets = [0, 0], sizes = [8, 128], strides = [1, 1]} : vector<8x512xf32> to vector<8x128xf32>
    %cst_13 = arith.constant 5.000000e-01 : f32
    %13 = vector.broadcast %cst_13 : f32 to vector<8x128xf32>
    %14 = arith.mulf %13, %12 : vector<8x128xf32>
    %15 = math.tanh %14 : vector<8x128xf32>
    %cst_14 = arith.constant 1.000000e+00 : f32
    %16 = vector.broadcast %cst_14 : f32 to vector<8x128xf32>
    %17 = arith.addf %15, %16 : vector<8x128xf32>
    %cst_15 = arith.constant 5.000000e-01 : f32
    %18 = vector.broadcast %cst_15 : f32 to vector<8x128xf32>
    %19 = arith.mulf %18, %17 : vector<8x128xf32>
    %20 = vector.extract_strided_slice %6 {offsets = [0, 128], sizes = [8, 128], strides = [1, 1]} : vector<8x512xf32> to vector<8x128xf32>
    %cst_16 = arith.constant 5.000000e-01 : f32
    %21 = vector.broadcast %cst_16 : f32 to vector<8x128xf32>
    %22 = arith.mulf %21, %20 : vector<8x128xf32>
    %23 = math.tanh %22 : vector<8x128xf32>
    %cst_17 = arith.constant 1.000000e+00 : f32
    %24 = vector.broadcast %cst_17 : f32 to vector<8x128xf32>
    %25 = arith.addf %23, %24 : vector<8x128xf32>
    %cst_18 = arith.constant 5.000000e-01 : f32
    %26 = vector.broadcast %cst_18 : f32 to vector<8x128xf32>
    %27 = arith.mulf %26, %25 : vector<8x128xf32>
    %28 = vector.extract_strided_slice %6 {offsets = [0, 256], sizes = [8, 128], strides = [1, 1]} : vector<8x512xf32> to vector<8x128xf32>
    %29 = math.tanh %28 : vector<8x128xf32>
    %30 = vector.extract_strided_slice %6 {offsets = [0, 384], sizes = [8, 128], strides = [1, 1]} : vector<8x512xf32> to vector<8x128xf32>
    %cst_19 = arith.constant 5.000000e-01 : f32
    %31 = vector.broadcast %cst_19 : f32 to vector<8x128xf32>
    %32 = arith.mulf %31, %30 : vector<8x128xf32>
    %33 = math.tanh %32 : vector<8x128xf32>
    %cst_20 = arith.constant 1.000000e+00 : f32
    %34 = vector.broadcast %cst_20 : f32 to vector<8x128xf32>
    %35 = arith.addf %33, %34 : vector<8x128xf32>
    %cst_21 = arith.constant 5.000000e-01 : f32
    %36 = vector.broadcast %cst_21 : f32 to vector<8x128xf32>
    %37 = arith.mulf %36, %35 : vector<8x128xf32>
    %38 = arith.mulf %27, %10 : vector<8x128xf32>
    %39 = arith.mulf %19, %29 : vector<8x128xf32>
    %40 = arith.addf %38, %39 : vector<8x128xf32>
    %41 = math.tanh %40 : vector<8x128xf32>
    %42 = arith.mulf %37, %41 : vector<8x128xf32>
    %43 = arith.truncf %42 : vector<8x128xf32> to vector<8x128xbf16>
    %44 = vector.extract_strided_slice %8 {offsets = [0, 0], sizes = [128, 512], strides = [1, 1]} : vector<256x512xbf16> to vector<128x512xbf16>
    %cst_22 = arith.constant dense<0.000000e+00> : vector<8x512xf32>
    %45 = tpu.matmul %43, %44, %cst_22 {dimension_numbers = #tpu.dot_dimension_numbers<[1], [0], [0], [1], [0, 0, 1, 1], [], []>} : vector<8x128xbf16>, vector<128x512xbf16>, vector<8x512xf32> -> vector<8x512xf32>
    %46 = vector.broadcast %9 : vector<1x512xf32> to vector<8x512xf32>
    %47 = arith.addf %45, %46 : vector<8x512xf32>
    %48 = vector.extract_strided_slice %47 {offsets = [0, 0], sizes = [8, 128], strides = [1, 1]} : vector<8x512xf32> to vector<8x128xf32>
    %cst_23 = arith.constant 5.000000e-01 : f32
    %49 = vector.broadcast %cst_23 : f32 to vector<8x128xf32>
    %50 = arith.mulf %49, %48 : vector<8x128xf32>
    %51 = math.tanh %50 : vector<8x128xf32>
    %cst_24 = arith.constant 1.000000e+00 : f32
    %52 = vector.broadcast %cst_24 : f32 to vector<8x128xf32>
    %53 = arith.addf %51, %52 : vector<8x128xf32>
    %cst_25 = arith.constant 5.000000e-01 : f32
    %54 = vector.broadcast %cst_25 : f32 to vector<8x128xf32>
    %55 = arith.mulf %54, %53 : vector<8x128xf32>
    %56 = vector.extract_strided_slice %47 {offsets = [0, 128], sizes = [8, 128], strides = [1, 1]} : vector<8x512xf32> to vector<8x128xf32>
    %cst_26 = arith.constant 5.000000e-01 : f32
    %57 = vector.broadcast %cst_26 : f32 to vector<8x128xf32>
    %58 = arith.mulf %57, %56 : vector<8x128xf32>
    %59 = math.tanh %58 : vector<8x128xf32>
    %cst_27 = arith.constant 1.000000e+00 : f32
    %60 = vector.broadcast %cst_27 : f32 to vector<8x128xf32>
    %61 = arith.addf %59, %60 : vector<8x128xf32>
    %cst_28 = arith.constant 5.000000e-01 : f32
    %62 = vector.broadcast %cst_28 : f32 to vector<8x128xf32>
    %63 = arith.mulf %62, %61 : vector<8x128xf32>
    %64 = vector.extract_strided_slice %47 {offsets = [0, 256], sizes = [8, 128], strides = [1, 1]} : vector<8x512xf32> to vector<8x128xf32>
    %65 = math.tanh %64 : vector<8x128xf32>
    %66 = vector.extract_strided_slice %47 {offsets = [0, 384], sizes = [8, 128], strides = [1, 1]} : vector<8x512xf32> to vector<8x128xf32>
    %cst_29 = arith.constant 5.000000e-01 : f32
    %67 = vector.broadcast %cst_29 : f32 to vector<8x128xf32>
    %68 = arith.mulf %67, %66 : vector<8x128xf32>
    %69 = math.tanh %68 : vector<8x128xf32>
    %cst_30 = arith.constant 1.000000e+00 : f32
    %70 = vector.broadcast %cst_30 : f32 to vector<8x128xf32>
    %71 = arith.addf %69, %70 : vector<8x128xf32>
    %cst_31 = arith.constant 5.000000e-01 : f32
    %72 = vector.broadcast %cst_31 : f32 to vector<8x128xf32>
    %73 = arith.mulf %72, %71 : vector<8x128xf32>
    %74 = arith.mulf %63, %11 : vector<8x128xf32>
    %75 = arith.mulf %55, %65 : vector<8x128xf32>
    %76 = arith.addf %74, %75 : vector<8x128xf32>
    %77 = math.tanh %76 : vector<8x128xf32>
    %78 = arith.mulf %73, %77 : vector<8x128xf32>
    %79 = arith.truncf %78 : vector<8x128xf32> to vector<8x128xbf16>
    %cst_32 = arith.constant dense<0.000000e+00> : vector<8x512xf32>
    %80 = tpu.matmul %43, %7, %cst_32 {dimension_numbers = #tpu.dot_dimension_numbers<[1], [0], [0], [1], [0, 0, 1, 1], [], []>} : vector<8x128xbf16>, vector<128x512xbf16>, vector<8x512xf32> -> vector<8x512xf32>
    %81 = arith.addf %6, %80 : vector<8x512xf32>
    %82 = vector.extract_strided_slice %81 {offsets = [0, 0], sizes = [8, 128], strides = [1, 1]} : vector<8x512xf32> to vector<8x128xf32>
    %cst_33 = arith.constant 5.000000e-01 : f32
    %83 = vector.broadcast %cst_33 : f32 to vector<8x128xf32>
    %84 = arith.mulf %83, %82 : vector<8x128xf32>
    %85 = math.tanh %84 : vector<8x128xf32>
    %cst_34 = arith.constant 1.000000e+00 : f32
    %86 = vector.broadcast %cst_34 : f32 to vector<8x128xf32>
    %87 = arith.addf %85, %86 : vector<8x128xf32>
    %cst_35 = arith.constant 5.000000e-01 : f32
    %88 = vector.broadcast %cst_35 : f32 to vector<8x128xf32>
    %89 = arith.mulf %88, %87 : vector<8x128xf32>
    %90 = vector.extract_strided_slice %81 {offsets = [0, 128], sizes = [8, 128], strides = [1, 1]} : vector<8x512xf32> to vector<8x128xf32>
    %cst_36 = arith.constant 5.000000e-01 : f32
    %91 = vector.broadcast %cst_36 : f32 to vector<8x128xf32>
    %92 = arith.mulf %91, %90 : vector<8x128xf32>
    %93 = math.tanh %92 : vector<8x128xf32>
    %cst_37 = arith.constant 1.000000e+00 : f32
    %94 = vector.broadcast %cst_37 : f32 to vector<8x128xf32>
    %95 = arith.addf %93, %94 : vector<8x128xf32>
    %cst_38 = arith.constant 5.000000e-01 : f32
    %96 = vector.broadcast %cst_38 : f32 to vector<8x128xf32>
    %97 = arith.mulf %96, %95 : vector<8x128xf32>
    %98 = vector.extract_strided_slice %81 {offsets = [0, 256], sizes = [8, 128], strides = [1, 1]} : vector<8x512xf32> to vector<8x128xf32>
    %99 = math.tanh %98 : vector<8x128xf32>
    %100 = vector.extract_strided_slice %81 {offsets = [0, 384], sizes = [8, 128], strides = [1, 1]} : vector<8x512xf32> to vector<8x128xf32>
    %cst_39 = arith.constant 5.000000e-01 : f32
    %101 = vector.broadcast %cst_39 : f32 to vector<8x128xf32>
    %102 = arith.mulf %101, %100 : vector<8x128xf32>
    %103 = math.tanh %102 : vector<8x128xf32>
    %cst_40 = arith.constant 1.000000e+00 : f32
    %104 = vector.broadcast %cst_40 : f32 to vector<8x128xf32>
    %105 = arith.addf %103, %104 : vector<8x128xf32>
    %cst_41 = arith.constant 5.000000e-01 : f32
    %106 = vector.broadcast %cst_41 : f32 to vector<8x128xf32>
    %107 = arith.mulf %106, %105 : vector<8x128xf32>
    %108 = arith.mulf %97, %40 : vector<8x128xf32>
    %109 = arith.mulf %89, %99 : vector<8x128xf32>
    %110 = arith.addf %108, %109 : vector<8x128xf32>
    %111 = math.tanh %110 : vector<8x128xf32>
    %112 = arith.mulf %107, %111 : vector<8x128xf32>
    %113 = arith.truncf %112 : vector<8x128xf32> to vector<8x128xbf16>
    %114 = tpu.concatenate %113, %79 in 1 : vector<8x128xbf16>, vector<8x128xbf16> -> vector<8x256xbf16>
    %cst_42 = arith.constant dense<0.000000e+00> : vector<8x512xf32>
    %115 = tpu.matmul %114, %8, %cst_42 {dimension_numbers = #tpu.dot_dimension_numbers<[1], [0], [0], [1], [0, 0, 1, 1], [], []>} : vector<8x256xbf16>, vector<256x512xbf16>, vector<8x512xf32> -> vector<8x512xf32>
    %116 = vector.broadcast %9 : vector<1x512xf32> to vector<8x512xf32>
    %117 = arith.addf %115, %116 : vector<8x512xf32>
    %118 = vector.extract_strided_slice %117 {offsets = [0, 0], sizes = [8, 128], strides = [1, 1]} : vector<8x512xf32> to vector<8x128xf32>
    %cst_43 = arith.constant 5.000000e-01 : f32
    %119 = vector.broadcast %cst_43 : f32 to vector<8x128xf32>
    %120 = arith.mulf %119, %118 : vector<8x128xf32>
    %121 = math.tanh %120 : vector<8x128xf32>
    %cst_44 = arith.constant 1.000000e+00 : f32
    %122 = vector.broadcast %cst_44 : f32 to vector<8x128xf32>
    %123 = arith.addf %121, %122 : vector<8x128xf32>
    %cst_45 = arith.constant 5.000000e-01 : f32
    %124 = vector.broadcast %cst_45 : f32 to vector<8x128xf32>
    %125 = arith.mulf %124, %123 : vector<8x128xf32>
    %126 = vector.extract_strided_slice %117 {offsets = [0, 128], sizes = [8, 128], strides = [1, 1]} : vector<8x512xf32> to vector<8x128xf32>
    %cst_46 = arith.constant 5.000000e-01 : f32
    %127 = vector.broadcast %cst_46 : f32 to vector<8x128xf32>
    %128 = arith.mulf %127, %126 : vector<8x128xf32>
    %129 = math.tanh %128 : vector<8x128xf32>
    %cst_47 = arith.constant 1.000000e+00 : f32
    %130 = vector.broadcast %cst_47 : f32 to vector<8x128xf32>
    %131 = arith.addf %129, %130 : vector<8x128xf32>
    %cst_48 = arith.constant 5.000000e-01 : f32
    %132 = vector.broadcast %cst_48 : f32 to vector<8x128xf32>
    %133 = arith.mulf %132, %131 : vector<8x128xf32>
    %134 = vector.extract_strided_slice %117 {offsets = [0, 256], sizes = [8, 128], strides = [1, 1]} : vector<8x512xf32> to vector<8x128xf32>
    %135 = math.tanh %134 : vector<8x128xf32>
    %136 = vector.extract_strided_slice %117 {offsets = [0, 384], sizes = [8, 128], strides = [1, 1]} : vector<8x512xf32> to vector<8x128xf32>
    %cst_49 = arith.constant 5.000000e-01 : f32
    %137 = vector.broadcast %cst_49 : f32 to vector<8x128xf32>
    %138 = arith.mulf %137, %136 : vector<8x128xf32>
    %139 = math.tanh %138 : vector<8x128xf32>
    %cst_50 = arith.constant 1.000000e+00 : f32
    %140 = vector.broadcast %cst_50 : f32 to vector<8x128xf32>
    %141 = arith.addf %139, %140 : vector<8x128xf32>
    %cst_51 = arith.constant 5.000000e-01 : f32
    %142 = vector.broadcast %cst_51 : f32 to vector<8x128xf32>
    %143 = arith.mulf %142, %141 : vector<8x128xf32>
    %144 = arith.mulf %133, %76 : vector<8x128xf32>
    %145 = arith.mulf %125, %135 : vector<8x128xf32>
    %146 = arith.addf %144, %145 : vector<8x128xf32>
    %147 = math.tanh %146 : vector<8x128xf32>
    %148 = arith.mulf %143, %147 : vector<8x128xf32>
    %149 = arith.truncf %148 : vector<8x128xf32> to vector<8x128xbf16>
    %cst_52 = arith.constant dense<0.000000e+00> : vector<8x512xf32>
    %150 = tpu.matmul %113, %7, %cst_52 {dimension_numbers = #tpu.dot_dimension_numbers<[1], [0], [0], [1], [0, 0, 1, 1], [], []>} : vector<8x128xbf16>, vector<128x512xbf16>, vector<8x512xf32> -> vector<8x512xf32>
    %151 = arith.addf %6, %150 : vector<8x512xf32>
    %152 = vector.extract_strided_slice %151 {offsets = [0, 0], sizes = [8, 128], strides = [1, 1]} : vector<8x512xf32> to vector<8x128xf32>
    %cst_53 = arith.constant 5.000000e-01 : f32
    %153 = vector.broadcast %cst_53 : f32 to vector<8x128xf32>
    %154 = arith.mulf %153, %152 : vector<8x128xf32>
    %155 = math.tanh %154 : vector<8x128xf32>
    %cst_54 = arith.constant 1.000000e+00 : f32
    %156 = vector.broadcast %cst_54 : f32 to vector<8x128xf32>
    %157 = arith.addf %155, %156 : vector<8x128xf32>
    %cst_55 = arith.constant 5.000000e-01 : f32
    %158 = vector.broadcast %cst_55 : f32 to vector<8x128xf32>
    %159 = arith.mulf %158, %157 : vector<8x128xf32>
    %160 = vector.extract_strided_slice %151 {offsets = [0, 128], sizes = [8, 128], strides = [1, 1]} : vector<8x512xf32> to vector<8x128xf32>
    %cst_56 = arith.constant 5.000000e-01 : f32
    %161 = vector.broadcast %cst_56 : f32 to vector<8x128xf32>
    %162 = arith.mulf %161, %160 : vector<8x128xf32>
    %163 = math.tanh %162 : vector<8x128xf32>
    %cst_57 = arith.constant 1.000000e+00 : f32
    %164 = vector.broadcast %cst_57 : f32 to vector<8x128xf32>
    %165 = arith.addf %163, %164 : vector<8x128xf32>
    %cst_58 = arith.constant 5.000000e-01 : f32
    %166 = vector.broadcast %cst_58 : f32 to vector<8x128xf32>
    %167 = arith.mulf %166, %165 : vector<8x128xf32>
    %168 = vector.extract_strided_slice %151 {offsets = [0, 256], sizes = [8, 128], strides = [1, 1]} : vector<8x512xf32> to vector<8x128xf32>
    %169 = math.tanh %168 : vector<8x128xf32>
    %170 = vector.extract_strided_slice %151 {offsets = [0, 384], sizes = [8, 128], strides = [1, 1]} : vector<8x512xf32> to vector<8x128xf32>
    %cst_59 = arith.constant 5.000000e-01 : f32
    %171 = vector.broadcast %cst_59 : f32 to vector<8x128xf32>
    %172 = arith.mulf %171, %170 : vector<8x128xf32>
    %173 = math.tanh %172 : vector<8x128xf32>
    %cst_60 = arith.constant 1.000000e+00 : f32
    %174 = vector.broadcast %cst_60 : f32 to vector<8x128xf32>
    %175 = arith.addf %173, %174 : vector<8x128xf32>
    %cst_61 = arith.constant 5.000000e-01 : f32
    %176 = vector.broadcast %cst_61 : f32 to vector<8x128xf32>
    %177 = arith.mulf %176, %175 : vector<8x128xf32>
    %178 = arith.mulf %167, %110 : vector<8x128xf32>
    %179 = arith.mulf %159, %169 : vector<8x128xf32>
    %180 = arith.addf %178, %179 : vector<8x128xf32>
    %181 = math.tanh %180 : vector<8x128xf32>
    %182 = arith.mulf %177, %181 : vector<8x128xf32>
    %183 = arith.truncf %182 : vector<8x128xf32> to vector<8x128xbf16>
    %184 = tpu.concatenate %183, %149 in 1 : vector<8x128xbf16>, vector<8x128xbf16> -> vector<8x256xbf16>
    %cst_62 = arith.constant dense<0.000000e+00> : vector<8x512xf32>
    %185 = tpu.matmul %184, %8, %cst_62 {dimension_numbers = #tpu.dot_dimension_numbers<[1], [0], [0], [1], [0, 0, 1, 1], [], []>} : vector<8x256xbf16>, vector<256x512xbf16>, vector<8x512xf32> -> vector<8x512xf32>
    %186 = vector.broadcast %9 : vector<1x512xf32> to vector<8x512xf32>
    %187 = arith.addf %185, %186 : vector<8x512xf32>
    %188 = vector.extract_strided_slice %187 {offsets = [0, 0], sizes = [8, 128], strides = [1, 1]} : vector<8x512xf32> to vector<8x128xf32>
    %cst_63 = arith.constant 5.000000e-01 : f32
    %189 = vector.broadcast %cst_63 : f32 to vector<8x128xf32>
    %190 = arith.mulf %189, %188 : vector<8x128xf32>
    %191 = math.tanh %190 : vector<8x128xf32>
    %cst_64 = arith.constant 1.000000e+00 : f32
    %192 = vector.broadcast %cst_64 : f32 to vector<8x128xf32>
    %193 = arith.addf %191, %192 : vector<8x128xf32>
    %cst_65 = arith.constant 5.000000e-01 : f32
    %194 = vector.broadcast %cst_65 : f32 to vector<8x128xf32>
    %195 = arith.mulf %194, %193 : vector<8x128xf32>
    %196 = vector.extract_strided_slice %187 {offsets = [0, 128], sizes = [8, 128], strides = [1, 1]} : vector<8x512xf32> to vector<8x128xf32>
    %cst_66 = arith.constant 5.000000e-01 : f32
    %197 = vector.broadcast %cst_66 : f32 to vector<8x128xf32>
    %198 = arith.mulf %197, %196 : vector<8x128xf32>
    %199 = math.tanh %198 : vector<8x128xf32>
    %cst_67 = arith.constant 1.000000e+00 : f32
    %200 = vector.broadcast %cst_67 : f32 to vector<8x128xf32>
    %201 = arith.addf %199, %200 : vector<8x128xf32>
    %cst_68 = arith.constant 5.000000e-01 : f32
    %202 = vector.broadcast %cst_68 : f32 to vector<8x128xf32>
    %203 = arith.mulf %202, %201 : vector<8x128xf32>
    %204 = vector.extract_strided_slice %187 {offsets = [0, 256], sizes = [8, 128], strides = [1, 1]} : vector<8x512xf32> to vector<8x128xf32>
    %205 = math.tanh %204 : vector<8x128xf32>
    %206 = vector.extract_strided_slice %187 {offsets = [0, 384], sizes = [8, 128], strides = [1, 1]} : vector<8x512xf32> to vector<8x128xf32>
    %cst_69 = arith.constant 5.000000e-01 : f32
    %207 = vector.broadcast %cst_69 : f32 to vector<8x128xf32>
    %208 = arith.mulf %207, %206 : vector<8x128xf32>
    %209 = math.tanh %208 : vector<8x128xf32>
    %cst_70 = arith.constant 1.000000e+00 : f32
    %210 = vector.broadcast %cst_70 : f32 to vector<8x128xf32>
    %211 = arith.addf %209, %210 : vector<8x128xf32>
    %cst_71 = arith.constant 5.000000e-01 : f32
    %212 = vector.broadcast %cst_71 : f32 to vector<8x128xf32>
    %213 = arith.mulf %212, %211 : vector<8x128xf32>
    %214 = arith.mulf %203, %146 : vector<8x128xf32>
    %215 = arith.mulf %195, %205 : vector<8x128xf32>
    %216 = arith.addf %214, %215 : vector<8x128xf32>
    %217 = math.tanh %216 : vector<8x128xf32>
    %218 = arith.mulf %213, %217 : vector<8x128xf32>
    %219 = arith.truncf %218 : vector<8x128xf32> to vector<8x128xbf16>
    %cst_72 = arith.constant dense<0.000000e+00> : vector<8x512xf32>
    %220 = tpu.matmul %183, %7, %cst_72 {dimension_numbers = #tpu.dot_dimension_numbers<[1], [0], [0], [1], [0, 0, 1, 1], [], []>} : vector<8x128xbf16>, vector<128x512xbf16>, vector<8x512xf32> -> vector<8x512xf32>
    %221 = arith.addf %6, %220 : vector<8x512xf32>
    %222 = vector.extract_strided_slice %221 {offsets = [0, 0], sizes = [8, 128], strides = [1, 1]} : vector<8x512xf32> to vector<8x128xf32>
    %cst_73 = arith.constant 5.000000e-01 : f32
    %223 = vector.broadcast %cst_73 : f32 to vector<8x128xf32>
    %224 = arith.mulf %223, %222 : vector<8x128xf32>
    %225 = math.tanh %224 : vector<8x128xf32>
    %cst_74 = arith.constant 1.000000e+00 : f32
    %226 = vector.broadcast %cst_74 : f32 to vector<8x128xf32>
    %227 = arith.addf %225, %226 : vector<8x128xf32>
    %cst_75 = arith.constant 5.000000e-01 : f32
    %228 = vector.broadcast %cst_75 : f32 to vector<8x128xf32>
    %229 = arith.mulf %228, %227 : vector<8x128xf32>
    %230 = vector.extract_strided_slice %221 {offsets = [0, 128], sizes = [8, 128], strides = [1, 1]} : vector<8x512xf32> to vector<8x128xf32>
    %cst_76 = arith.constant 5.000000e-01 : f32
    %231 = vector.broadcast %cst_76 : f32 to vector<8x128xf32>
    %232 = arith.mulf %231, %230 : vector<8x128xf32>
    %233 = math.tanh %232 : vector<8x128xf32>
    %cst_77 = arith.constant 1.000000e+00 : f32
    %234 = vector.broadcast %cst_77 : f32 to vector<8x128xf32>
    %235 = arith.addf %233, %234 : vector<8x128xf32>
    %cst_78 = arith.constant 5.000000e-01 : f32
    %236 = vector.broadcast %cst_78 : f32 to vector<8x128xf32>
    %237 = arith.mulf %236, %235 : vector<8x128xf32>
    %238 = vector.extract_strided_slice %221 {offsets = [0, 256], sizes = [8, 128], strides = [1, 1]} : vector<8x512xf32> to vector<8x128xf32>
    %239 = math.tanh %238 : vector<8x128xf32>
    %240 = vector.extract_strided_slice %221 {offsets = [0, 384], sizes = [8, 128], strides = [1, 1]} : vector<8x512xf32> to vector<8x128xf32>
    %cst_79 = arith.constant 5.000000e-01 : f32
    %241 = vector.broadcast %cst_79 : f32 to vector<8x128xf32>
    %242 = arith.mulf %241, %240 : vector<8x128xf32>
    %243 = math.tanh %242 : vector<8x128xf32>
    %cst_80 = arith.constant 1.000000e+00 : f32
    %244 = vector.broadcast %cst_80 : f32 to vector<8x128xf32>
    %245 = arith.addf %243, %244 : vector<8x128xf32>
    %cst_81 = arith.constant 5.000000e-01 : f32
    %246 = vector.broadcast %cst_81 : f32 to vector<8x128xf32>
    %247 = arith.mulf %246, %245 : vector<8x128xf32>
    %248 = arith.mulf %237, %180 : vector<8x128xf32>
    %249 = arith.mulf %229, %239 : vector<8x128xf32>
    %250 = arith.addf %248, %249 : vector<8x128xf32>
    %251 = math.tanh %250 : vector<8x128xf32>
    %252 = arith.mulf %247, %251 : vector<8x128xf32>
    %253 = arith.truncf %252 : vector<8x128xf32> to vector<8x128xbf16>
    %254 = tpu.concatenate %253, %219 in 1 : vector<8x128xbf16>, vector<8x128xbf16> -> vector<8x256xbf16>
    %cst_82 = arith.constant dense<0.000000e+00> : vector<8x512xf32>
    %255 = tpu.matmul %254, %8, %cst_82 {dimension_numbers = #tpu.dot_dimension_numbers<[1], [0], [0], [1], [0, 0, 1, 1], [], []>} : vector<8x256xbf16>, vector<256x512xbf16>, vector<8x512xf32> -> vector<8x512xf32>
    %256 = vector.broadcast %9 : vector<1x512xf32> to vector<8x512xf32>
    %257 = arith.addf %255, %256 : vector<8x512xf32>
    %258 = vector.extract_strided_slice %257 {offsets = [0, 0], sizes = [8, 128], strides = [1, 1]} : vector<8x512xf32> to vector<8x128xf32>
    %cst_83 = arith.constant 5.000000e-01 : f32
    %259 = vector.broadcast %cst_83 : f32 to vector<8x128xf32>
    %260 = arith.mulf %259, %258 : vector<8x128xf32>
    %261 = math.tanh %260 : vector<8x128xf32>
    %cst_84 = arith.constant 1.000000e+00 : f32
    %262 = vector.broadcast %cst_84 : f32 to vector<8x128xf32>
    %263 = arith.addf %261, %262 : vector<8x128xf32>
    %cst_85 = arith.constant 5.000000e-01 : f32
    %264 = vector.broadcast %cst_85 : f32 to vector<8x128xf32>
    %265 = arith.mulf %264, %263 : vector<8x128xf32>
    %266 = vector.extract_strided_slice %257 {offsets = [0, 128], sizes = [8, 128], strides = [1, 1]} : vector<8x512xf32> to vector<8x128xf32>
    %cst_86 = arith.constant 5.000000e-01 : f32
    %267 = vector.broadcast %cst_86 : f32 to vector<8x128xf32>
    %268 = arith.mulf %267, %266 : vector<8x128xf32>
    %269 = math.tanh %268 : vector<8x128xf32>
    %cst_87 = arith.constant 1.000000e+00 : f32
    %270 = vector.broadcast %cst_87 : f32 to vector<8x128xf32>
    %271 = arith.addf %269, %270 : vector<8x128xf32>
    %cst_88 = arith.constant 5.000000e-01 : f32
    %272 = vector.broadcast %cst_88 : f32 to vector<8x128xf32>
    %273 = arith.mulf %272, %271 : vector<8x128xf32>
    %274 = vector.extract_strided_slice %257 {offsets = [0, 256], sizes = [8, 128], strides = [1, 1]} : vector<8x512xf32> to vector<8x128xf32>
    %275 = math.tanh %274 : vector<8x128xf32>
    %276 = vector.extract_strided_slice %257 {offsets = [0, 384], sizes = [8, 128], strides = [1, 1]} : vector<8x512xf32> to vector<8x128xf32>
    %cst_89 = arith.constant 5.000000e-01 : f32
    %277 = vector.broadcast %cst_89 : f32 to vector<8x128xf32>
    %278 = arith.mulf %277, %276 : vector<8x128xf32>
    %279 = math.tanh %278 : vector<8x128xf32>
    %cst_90 = arith.constant 1.000000e+00 : f32
    %280 = vector.broadcast %cst_90 : f32 to vector<8x128xf32>
    %281 = arith.addf %279, %280 : vector<8x128xf32>
    %cst_91 = arith.constant 5.000000e-01 : f32
    %282 = vector.broadcast %cst_91 : f32 to vector<8x128xf32>
    %283 = arith.mulf %282, %281 : vector<8x128xf32>
    %284 = arith.mulf %273, %216 : vector<8x128xf32>
    %285 = arith.mulf %265, %275 : vector<8x128xf32>
    %286 = arith.addf %284, %285 : vector<8x128xf32>
    %287 = math.tanh %286 : vector<8x128xf32>
    %288 = arith.mulf %283, %287 : vector<8x128xf32>
    %289 = arith.truncf %288 : vector<8x128xf32> to vector<8x128xbf16>
    %cst_92 = arith.constant dense<0.000000e+00> : vector<8x512xf32>
    %290 = tpu.matmul %253, %7, %cst_92 {dimension_numbers = #tpu.dot_dimension_numbers<[1], [0], [0], [1], [0, 0, 1, 1], [], []>} : vector<8x128xbf16>, vector<128x512xbf16>, vector<8x512xf32> -> vector<8x512xf32>
    %291 = arith.addf %6, %290 : vector<8x512xf32>
    %292 = vector.extract_strided_slice %291 {offsets = [0, 0], sizes = [8, 128], strides = [1, 1]} : vector<8x512xf32> to vector<8x128xf32>
    %cst_93 = arith.constant 5.000000e-01 : f32
    %293 = vector.broadcast %cst_93 : f32 to vector<8x128xf32>
    %294 = arith.mulf %293, %292 : vector<8x128xf32>
    %295 = math.tanh %294 : vector<8x128xf32>
    %cst_94 = arith.constant 1.000000e+00 : f32
    %296 = vector.broadcast %cst_94 : f32 to vector<8x128xf32>
    %297 = arith.addf %295, %296 : vector<8x128xf32>
    %cst_95 = arith.constant 5.000000e-01 : f32
    %298 = vector.broadcast %cst_95 : f32 to vector<8x128xf32>
    %299 = arith.mulf %298, %297 : vector<8x128xf32>
    %300 = vector.extract_strided_slice %291 {offsets = [0, 128], sizes = [8, 128], strides = [1, 1]} : vector<8x512xf32> to vector<8x128xf32>
    %cst_96 = arith.constant 5.000000e-01 : f32
    %301 = vector.broadcast %cst_96 : f32 to vector<8x128xf32>
    %302 = arith.mulf %301, %300 : vector<8x128xf32>
    %303 = math.tanh %302 : vector<8x128xf32>
    %cst_97 = arith.constant 1.000000e+00 : f32
    %304 = vector.broadcast %cst_97 : f32 to vector<8x128xf32>
    %305 = arith.addf %303, %304 : vector<8x128xf32>
    %cst_98 = arith.constant 5.000000e-01 : f32
    %306 = vector.broadcast %cst_98 : f32 to vector<8x128xf32>
    %307 = arith.mulf %306, %305 : vector<8x128xf32>
    %308 = vector.extract_strided_slice %291 {offsets = [0, 256], sizes = [8, 128], strides = [1, 1]} : vector<8x512xf32> to vector<8x128xf32>
    %309 = math.tanh %308 : vector<8x128xf32>
    %310 = vector.extract_strided_slice %291 {offsets = [0, 384], sizes = [8, 128], strides = [1, 1]} : vector<8x512xf32> to vector<8x128xf32>
    %cst_99 = arith.constant 5.000000e-01 : f32
    %311 = vector.broadcast %cst_99 : f32 to vector<8x128xf32>
    %312 = arith.mulf %311, %310 : vector<8x128xf32>
    %313 = math.tanh %312 : vector<8x128xf32>
    %cst_100 = arith.constant 1.000000e+00 : f32
    %314 = vector.broadcast %cst_100 : f32 to vector<8x128xf32>
    %315 = arith.addf %313, %314 : vector<8x128xf32>
    %cst_101 = arith.constant 5.000000e-01 : f32
    %316 = vector.broadcast %cst_101 : f32 to vector<8x128xf32>
    %317 = arith.mulf %316, %315 : vector<8x128xf32>
    %318 = arith.mulf %307, %250 : vector<8x128xf32>
    %319 = arith.mulf %299, %309 : vector<8x128xf32>
    %320 = arith.addf %318, %319 : vector<8x128xf32>
    %321 = math.tanh %320 : vector<8x128xf32>
    %322 = arith.mulf %317, %321 : vector<8x128xf32>
    %323 = arith.truncf %322 : vector<8x128xf32> to vector<8x128xbf16>
    %324 = tpu.concatenate %323, %289 in 1 : vector<8x128xbf16>, vector<8x128xbf16> -> vector<8x256xbf16>
    %cst_102 = arith.constant dense<0.000000e+00> : vector<8x512xf32>
    %325 = tpu.matmul %324, %8, %cst_102 {dimension_numbers = #tpu.dot_dimension_numbers<[1], [0], [0], [1], [0, 0, 1, 1], [], []>} : vector<8x256xbf16>, vector<256x512xbf16>, vector<8x512xf32> -> vector<8x512xf32>
    %326 = vector.broadcast %9 : vector<1x512xf32> to vector<8x512xf32>
    %327 = arith.addf %325, %326 : vector<8x512xf32>
    %328 = vector.extract_strided_slice %327 {offsets = [0, 0], sizes = [8, 128], strides = [1, 1]} : vector<8x512xf32> to vector<8x128xf32>
    %cst_103 = arith.constant 5.000000e-01 : f32
    %329 = vector.broadcast %cst_103 : f32 to vector<8x128xf32>
    %330 = arith.mulf %329, %328 : vector<8x128xf32>
    %331 = math.tanh %330 : vector<8x128xf32>
    %cst_104 = arith.constant 1.000000e+00 : f32
    %332 = vector.broadcast %cst_104 : f32 to vector<8x128xf32>
    %333 = arith.addf %331, %332 : vector<8x128xf32>
    %cst_105 = arith.constant 5.000000e-01 : f32
    %334 = vector.broadcast %cst_105 : f32 to vector<8x128xf32>
    %335 = arith.mulf %334, %333 : vector<8x128xf32>
    %336 = vector.extract_strided_slice %327 {offsets = [0, 128], sizes = [8, 128], strides = [1, 1]} : vector<8x512xf32> to vector<8x128xf32>
    %cst_106 = arith.constant 5.000000e-01 : f32
    %337 = vector.broadcast %cst_106 : f32 to vector<8x128xf32>
    %338 = arith.mulf %337, %336 : vector<8x128xf32>
    %339 = math.tanh %338 : vector<8x128xf32>
    %cst_107 = arith.constant 1.000000e+00 : f32
    %340 = vector.broadcast %cst_107 : f32 to vector<8x128xf32>
    %341 = arith.addf %339, %340 : vector<8x128xf32>
    %cst_108 = arith.constant 5.000000e-01 : f32
    %342 = vector.broadcast %cst_108 : f32 to vector<8x128xf32>
    %343 = arith.mulf %342, %341 : vector<8x128xf32>
    %344 = vector.extract_strided_slice %327 {offsets = [0, 256], sizes = [8, 128], strides = [1, 1]} : vector<8x512xf32> to vector<8x128xf32>
    %345 = math.tanh %344 : vector<8x128xf32>
    %346 = vector.extract_strided_slice %327 {offsets = [0, 384], sizes = [8, 128], strides = [1, 1]} : vector<8x512xf32> to vector<8x128xf32>
    %cst_109 = arith.constant 5.000000e-01 : f32
    %347 = vector.broadcast %cst_109 : f32 to vector<8x128xf32>
    %348 = arith.mulf %347, %346 : vector<8x128xf32>
    %349 = math.tanh %348 : vector<8x128xf32>
    %cst_110 = arith.constant 1.000000e+00 : f32
    %350 = vector.broadcast %cst_110 : f32 to vector<8x128xf32>
    %351 = arith.addf %349, %350 : vector<8x128xf32>
    %cst_111 = arith.constant 5.000000e-01 : f32
    %352 = vector.broadcast %cst_111 : f32 to vector<8x128xf32>
    %353 = arith.mulf %352, %351 : vector<8x128xf32>
    %354 = arith.mulf %343, %286 : vector<8x128xf32>
    %355 = arith.mulf %335, %345 : vector<8x128xf32>
    %356 = arith.addf %354, %355 : vector<8x128xf32>
    %357 = math.tanh %356 : vector<8x128xf32>
    %358 = arith.mulf %353, %357 : vector<8x128xf32>
    %359 = arith.truncf %358 : vector<8x128xf32> to vector<8x128xbf16>
    %cst_112 = arith.constant dense<0.000000e+00> : vector<8x512xf32>
    %360 = tpu.matmul %323, %7, %cst_112 {dimension_numbers = #tpu.dot_dimension_numbers<[1], [0], [0], [1], [0, 0, 1, 1], [], []>} : vector<8x128xbf16>, vector<128x512xbf16>, vector<8x512xf32> -> vector<8x512xf32>
    %361 = arith.addf %6, %360 : vector<8x512xf32>
    %362 = vector.extract_strided_slice %361 {offsets = [0, 0], sizes = [8, 128], strides = [1, 1]} : vector<8x512xf32> to vector<8x128xf32>
    %cst_113 = arith.constant 5.000000e-01 : f32
    %363 = vector.broadcast %cst_113 : f32 to vector<8x128xf32>
    %364 = arith.mulf %363, %362 : vector<8x128xf32>
    %365 = math.tanh %364 : vector<8x128xf32>
    %cst_114 = arith.constant 1.000000e+00 : f32
    %366 = vector.broadcast %cst_114 : f32 to vector<8x128xf32>
    %367 = arith.addf %365, %366 : vector<8x128xf32>
    %cst_115 = arith.constant 5.000000e-01 : f32
    %368 = vector.broadcast %cst_115 : f32 to vector<8x128xf32>
    %369 = arith.mulf %368, %367 : vector<8x128xf32>
    %370 = vector.extract_strided_slice %361 {offsets = [0, 128], sizes = [8, 128], strides = [1, 1]} : vector<8x512xf32> to vector<8x128xf32>
    %cst_116 = arith.constant 5.000000e-01 : f32
    %371 = vector.broadcast %cst_116 : f32 to vector<8x128xf32>
    %372 = arith.mulf %371, %370 : vector<8x128xf32>
    %373 = math.tanh %372 : vector<8x128xf32>
    %cst_117 = arith.constant 1.000000e+00 : f32
    %374 = vector.broadcast %cst_117 : f32 to vector<8x128xf32>
    %375 = arith.addf %373, %374 : vector<8x128xf32>
    %cst_118 = arith.constant 5.000000e-01 : f32
    %376 = vector.broadcast %cst_118 : f32 to vector<8x128xf32>
    %377 = arith.mulf %376, %375 : vector<8x128xf32>
    %378 = vector.extract_strided_slice %361 {offsets = [0, 256], sizes = [8, 128], strides = [1, 1]} : vector<8x512xf32> to vector<8x128xf32>
    %379 = math.tanh %378 : vector<8x128xf32>
    %380 = vector.extract_strided_slice %361 {offsets = [0, 384], sizes = [8, 128], strides = [1, 1]} : vector<8x512xf32> to vector<8x128xf32>
    %cst_119 = arith.constant 5.000000e-01 : f32
    %381 = vector.broadcast %cst_119 : f32 to vector<8x128xf32>
    %382 = arith.mulf %381, %380 : vector<8x128xf32>
    %383 = math.tanh %382 : vector<8x128xf32>
    %cst_120 = arith.constant 1.000000e+00 : f32
    %384 = vector.broadcast %cst_120 : f32 to vector<8x128xf32>
    %385 = arith.addf %383, %384 : vector<8x128xf32>
    %cst_121 = arith.constant 5.000000e-01 : f32
    %386 = vector.broadcast %cst_121 : f32 to vector<8x128xf32>
    %387 = arith.mulf %386, %385 : vector<8x128xf32>
    %388 = arith.mulf %377, %320 : vector<8x128xf32>
    %389 = arith.mulf %369, %379 : vector<8x128xf32>
    %390 = arith.addf %388, %389 : vector<8x128xf32>
    %391 = math.tanh %390 : vector<8x128xf32>
    %392 = arith.mulf %387, %391 : vector<8x128xf32>
    %393 = arith.truncf %392 : vector<8x128xf32> to vector<8x128xbf16>
    %394 = tpu.concatenate %393, %359 in 1 : vector<8x128xbf16>, vector<8x128xbf16> -> vector<8x256xbf16>
    %cst_122 = arith.constant dense<0.000000e+00> : vector<8x512xf32>
    %395 = tpu.matmul %394, %8, %cst_122 {dimension_numbers = #tpu.dot_dimension_numbers<[1], [0], [0], [1], [0, 0, 1, 1], [], []>} : vector<8x256xbf16>, vector<256x512xbf16>, vector<8x512xf32> -> vector<8x512xf32>
    %396 = vector.broadcast %9 : vector<1x512xf32> to vector<8x512xf32>
    %397 = arith.addf %395, %396 : vector<8x512xf32>
    %398 = vector.extract_strided_slice %397 {offsets = [0, 0], sizes = [8, 128], strides = [1, 1]} : vector<8x512xf32> to vector<8x128xf32>
    %cst_123 = arith.constant 5.000000e-01 : f32
    %399 = vector.broadcast %cst_123 : f32 to vector<8x128xf32>
    %400 = arith.mulf %399, %398 : vector<8x128xf32>
    %401 = math.tanh %400 : vector<8x128xf32>
    %cst_124 = arith.constant 1.000000e+00 : f32
    %402 = vector.broadcast %cst_124 : f32 to vector<8x128xf32>
    %403 = arith.addf %401, %402 : vector<8x128xf32>
    %cst_125 = arith.constant 5.000000e-01 : f32
    %404 = vector.broadcast %cst_125 : f32 to vector<8x128xf32>
    %405 = arith.mulf %404, %403 : vector<8x128xf32>
    %406 = vector.extract_strided_slice %397 {offsets = [0, 128], sizes = [8, 128], strides = [1, 1]} : vector<8x512xf32> to vector<8x128xf32>
    %cst_126 = arith.constant 5.000000e-01 : f32
    %407 = vector.broadcast %cst_126 : f32 to vector<8x128xf32>
    %408 = arith.mulf %407, %406 : vector<8x128xf32>
    %409 = math.tanh %408 : vector<8x128xf32>
    %cst_127 = arith.constant 1.000000e+00 : f32
    %410 = vector.broadcast %cst_127 : f32 to vector<8x128xf32>
    %411 = arith.addf %409, %410 : vector<8x128xf32>
    %cst_128 = arith.constant 5.000000e-01 : f32
    %412 = vector.broadcast %cst_128 : f32 to vector<8x128xf32>
    %413 = arith.mulf %412, %411 : vector<8x128xf32>
    %414 = vector.extract_strided_slice %397 {offsets = [0, 256], sizes = [8, 128], strides = [1, 1]} : vector<8x512xf32> to vector<8x128xf32>
    %415 = math.tanh %414 : vector<8x128xf32>
    %416 = vector.extract_strided_slice %397 {offsets = [0, 384], sizes = [8, 128], strides = [1, 1]} : vector<8x512xf32> to vector<8x128xf32>
    %cst_129 = arith.constant 5.000000e-01 : f32
    %417 = vector.broadcast %cst_129 : f32 to vector<8x128xf32>
    %418 = arith.mulf %417, %416 : vector<8x128xf32>
    %419 = math.tanh %418 : vector<8x128xf32>
    %cst_130 = arith.constant 1.000000e+00 : f32
    %420 = vector.broadcast %cst_130 : f32 to vector<8x128xf32>
    %421 = arith.addf %419, %420 : vector<8x128xf32>
    %cst_131 = arith.constant 5.000000e-01 : f32
    %422 = vector.broadcast %cst_131 : f32 to vector<8x128xf32>
    %423 = arith.mulf %422, %421 : vector<8x128xf32>
    %424 = arith.mulf %413, %356 : vector<8x128xf32>
    %425 = arith.mulf %405, %415 : vector<8x128xf32>
    %426 = arith.addf %424, %425 : vector<8x128xf32>
    %427 = math.tanh %426 : vector<8x128xf32>
    %428 = arith.mulf %423, %427 : vector<8x128xf32>
    %429 = arith.truncf %428 : vector<8x128xf32> to vector<8x128xbf16>
    %430 = tpu.concatenate %79, %149, %219, %289, %359, %429 in 1 : vector<8x128xbf16>, vector<8x128xbf16>, vector<8x128xbf16>, vector<8x128xbf16>, vector<8x128xbf16>, vector<8x128xbf16> -> vector<8x768xbf16>
    %c0_132 = arith.constant 0 : index
    %c0_133 = arith.constant 0 : index
    %431 = vector.load %arg7[%c0_132, %c0_133] : memref<768x256xbf16, #tpu.memory_space<vmem>>, vector<768x256xbf16>
    %cst_134 = arith.constant dense<0.000000e+00> : vector<8x256xf32>
    %432 = tpu.matmul %430, %431, %cst_134 {dimension_numbers = #tpu.dot_dimension_numbers<[1], [0], [0], [1], [0, 0, 1, 1], [], []>} : vector<8x768xbf16>, vector<768x256xbf16>, vector<8x256xf32> -> vector<8x256xf32>
    %c0_135 = arith.constant 0 : index
    %c0_136 = arith.constant 0 : index
    %433 = vector.load %arg8[%c0_135, %c0_136] : memref<1x256xf32, #tpu.memory_space<vmem>>, vector<1x256xf32>
    %434 = vector.broadcast %433 : vector<1x256xf32> to vector<8x256xf32>
    %435 = arith.addf %432, %434 : vector<8x256xf32>
    %c0_137 = arith.constant 0 : index
    %c0_138 = arith.constant 0 : index
    %436 = vector.load %arg9[%c0_137, %c0_138] : memref<8x256xf32, #tpu.memory_space<vmem>>, vector<8x256xf32>
    tpu.vector_store %arg9[%c0_137, %c0_138], %435 {strides = array<i32>} : memref<8x256xf32, #tpu.memory_space<vmem>>, vector<8x256xf32>,
    return
  }
  func.func @transform_0(%arg0: i32) -> (i32, i32) {
    %c0_i32 = arith.constant 0 : i32
    %c0_i32_0 = arith.constant 0 : i32
    return %arg0, %c0_i32 : i32, i32
  }
  func.func @transform_1(%arg0: i32) -> (i32, i32) {
    %c0_i32 = arith.constant 0 : i32
    %c0_i32_0 = arith.constant 0 : i32
    %c0_i32_1 = arith.constant 0 : i32
    return %c0_i32, %c0_i32_0 : i32, i32
  }
  func.func @transform_2(%arg0: i32) -> (i32, i32) {
    %c0_i32 = arith.constant 0 : i32
    %c0_i32_0 = arith.constant 0 : i32
    %c0_i32_1 = arith.constant 0 : i32
    return %c0_i32, %c0_i32_0 : i32, i32
  }
  func.func @transform_3(%arg0: i32) -> (i32, i32) {
    %c0_i32 = arith.constant 0 : i32
    %c0_i32_0 = arith.constant 0 : i32
    %c0_i32_1 = arith.constant 0 : i32
    return %c0_i32, %c0_i32_0 : i32, i32
  }
  func.func @transform_4(%arg0: i32) -> (i32, i32) {
    %c0_i32 = arith.constant 0 : i32
    %c0_i32_0 = arith.constant 0 : i32
    %c0_i32_1 = arith.constant 0 : i32
    return %c0_i32, %c0_i32_0 : i32, i32
  }
  func.func @transform_5(%arg0: i32) -> (i32, i32) {
    %c0_i32 = arith.constant 0 : i32
    %c0_i32_0 = arith.constant 0 : i32
    %c0_i32_1 = arith.constant 0 : i32
    return %c0_i32, %c0_i32_0 : i32, i32
  }
  func.func @transform_6(%arg0: i32) -> (i32, i32) {
    %c0_i32 = arith.constant 0 : i32
    %c0_i32_0 = arith.constant 0 : i32
    %c0_i32_1 = arith.constant 0 : i32
    return %c0_i32, %c0_i32_0 : i32, i32
  }
  func.func @transform_7(%arg0: i32) -> (i32, i32) {
    %c0_i32 = arith.constant 0 : i32
    %c0_i32_0 = arith.constant 0 : i32
    %c0_i32_1 = arith.constant 0 : i32
    return %c0_i32, %c0_i32_0 : i32, i32
  }
  func.func @transform_8(%arg0: i32) -> (i32, i32) {
    %c0_i32 = arith.constant 0 : i32
    %c0_i32_0 = arith.constant 0 : i32
    return %arg0, %c0_i32 : i32, i32
  }
}

</mosaic_0001>

<llo_original>
// kernel: tpu_custom_call.1
$region0: #{tpu_custom_call.1}
  #allocation0 [shape = 'u32[]', space=smem, size = 0x4, offset = 0x4, fixed_abs, tag = 'smem constant byte address 0x4 - core index']
  #allocation1 [shape = 'u32[144,128]{1,0:T(1,128)}', space=vmem, size = 0x12000, scoped, tag = 'internal scratch']
  %s0 = inlined_call_operand.hbm [shape: f32[8,256], index: 0, kind: input, shape index: {}]
  %s1 = inlined_call_operand.hbm [shape: bf16[256,512], index: 1, kind: input, shape index: {}]
  %s2 = inlined_call_operand.hbm [shape: f32[1,512], index: 2, kind: input, shape index: {}]
  %s3 = inlined_call_operand.hbm [shape: bf16[128,512], index: 3, kind: input, shape index: {}]
  %s4 = inlined_call_operand.hbm [shape: bf16[256,512], index: 4, kind: input, shape index: {}]
  %s5 = inlined_call_operand.vmem [shape: f32[1,512], index: 5, kind: input, shape index: {}]
  %s6 = inlined_call_operand.hbm [shape: bf16[768,256], index: 6, kind: input, shape index: {}]
  %s7 = inlined_call_operand.vmem [shape: f32[1,256], index: 7, kind: input, shape index: {}]
  %s8 = inlined_call_operand.hbm [shape: f32[8,256], index: 8, kind: output, shape index: {}]
  %s9 = sld [smem:[#allocation0]]
  $region66: #{tpu_custom_call.1} parent=0
    _
  %s11 = ssub.s32 1, %s9
  %s12 = scalar_select 0, %s11, %s9
  $region1: #{tpu_custom_call.1} parent=0
    #allocation2 [shape = 'u8[8192]{0}', space=vmem, size = 0x2000, scoped, tag = 'input window, operand 0, single buffered']
    #allocation3 [shape = 's32[1]{0}', space=sflag, size = 0x4, scoped, tag = 'scoped memory for tpu_custom_call.1']
    #allocation4 [shape = 's32[1]{0}', space=sflag, size = 0x4, scoped, tag = 'scoped memory for tpu_custom_call.1']
    #allocation5 [shape = 'u8[262144]{0}', space=vmem, size = 0x40000, scoped, tag = 'input window, operand 1, single buffered']
    #allocation6 [shape = 's32[1]{0}', space=sflag, size = 0x4, scoped, tag = 'scoped memory for tpu_custom_call.1']
    #allocation7 [shape = 'u8[2048]{0}', space=vmem, size = 0x800, scoped, tag = 'input window, operand 2, single buffered']
    #allocation8 [shape = 'u8[131072]{0}', space=vmem, size = 0x20000, scoped, tag = 'input window, operand 3, single buffered']
    #allocation9 [shape = 's32[1]{0}', space=sflag, size = 0x4, scoped, tag = 'scoped memory for tpu_custom_call.1']
    #allocation10 [shape = 'u8[262144]{0}', space=vmem, size = 0x40000, scoped, tag = 'input window, operand 4, single buffered']
    #allocation11 [shape = 'u8[393216]{0}', space=vmem, size = 0x60000, scoped, tag = 'input window, operand 6, single buffered']
    #allocation12 [shape = 's32[1]{0}', space=sflag, size = 0x4, scoped, tag = 'scoped memory for tpu_custom_call.1']
    #allocation13 [shape = 'u8[8192]{0}', space=vmem, size = 0x2000, scoped, tag = 'output window, operand 0, single buffered']
    %13 = vsyncpa [#allocation3], 0
    %14 = vsyncpa [#allocation6], 0
    %15 = vsyncpa [#allocation9], 0
    %16 = vsyncpa [#allocation12], 0
    %17 = vsyncpa [#allocation4], 0
    // Predicated region
    $region2: #{tpu_custom_call.1} parent=1 // pred_check
      _
    $region3: #{tpu_custom_call.1} parent=1 // pred_check_branch
      %19 = sbr.rel (0) target = $region5
    $region4: #{tpu_custom_call.1} parent=1 // pred_region
      %s21 = ssub.s32 256, 256
      %22 = vsyncadd [#allocation3], %s21
      %s24 = sshll.u32 [#allocation2], 4
      %s25 = int_to_ptr.vmem [resolvable:$true] %s24
      %27 = dma.hbm_to_vmem [thread:$0]  %s0, 256, %s25, [#allocation3]
    $region5: #{tpu_custom_call.1} parent=1 // pred_fallthru
      _
    // Predicated region
    $region6: #{tpu_custom_call.1} parent=1 // pred_check
      _
    $region7: #{tpu_custom_call.1} parent=1 // pred_check_branch
      %29 = sbr.rel (0) target = $region9
    $region8: #{tpu_custom_call.1} parent=1 // pred_region
      %s31 = ssub.s32 8192, 8192
      %32 = vsyncadd [#allocation6], %s31
      %s33 = sshll.u32 [#allocation5], 4
      %s34 = int_to_ptr.vmem [resolvable:$true] %s33
      %39 = dma.hbm_to_vmem [thread:$0]  %s1, 8192, %s34, [#allocation6], 256, 256, 16
    $region9: #{tpu_custom_call.1} parent=1 // pred_fallthru
      _
    // Predicated region
    $region10: #{tpu_custom_call.1} parent=1 // pred_check
      _
    $region11: #{tpu_custom_call.1} parent=1 // pred_check_branch
      %41 = sbr.rel (0) target = $region13
    $region12: #{tpu_custom_call.1} parent=1 // pred_region
      %s43 = ssub.s32 64, 64
      %44 = vsyncadd [#allocation6], %s43
      %s46 = sshll.u32 [#allocation7], 4
      %s47 = int_to_ptr.vmem [resolvable:$true] %s46
      %49 = dma.hbm_to_vmem [thread:$0]  %s2, 64, %s47, [#allocation6]
    $region13: #{tpu_custom_call.1} parent=1 // pred_fallthru
      _
    // Predicated region
    $region14: #{tpu_custom_call.1} parent=1 // pred_check
      _
    $region15: #{tpu_custom_call.1} parent=1 // pred_check_branch
      %51 = sbr.rel (0) target = $region17
    $region16: #{tpu_custom_call.1} parent=1 // pred_region
      %s53 = ssub.s32 4096, 4096
      %54 = vsyncadd [#allocation9], %s53
      %s55 = sshll.u32 [#allocation8], 4
      %s56 = int_to_ptr.vmem [resolvable:$true] %s55
      %61 = dma.hbm_to_vmem [thread:$0]  %s3, 4096, %s56, [#allocation9], 256, 256, 16
    $region17: #{tpu_custom_call.1} parent=1 // pred_fallthru
      _
    // Predicated region
    $region18: #{tpu_custom_call.1} parent=1 // pred_check
      _
    $region19: #{tpu_custom_call.1} parent=1 // pred_check_branch
      %63 = sbr.rel (0) target = $region21
    $region20: #{tpu_custom_call.1} parent=1 // pred_region
      %s65 = ssub.s32 8192, 8192
      %66 = vsyncadd [#allocation9], %s65
      %s67 = sshll.u32 [#allocation10], 4
      %s68 = int_to_ptr.vmem [resolvable:$true] %s67
      %73 = dma.hbm_to_vmem [thread:$0]  %s4, 8192, %s68, [#allocation9], 256, 256, 16
    $region21: #{tpu_custom_call.1} parent=1 // pred_fallthru
      _
    // Predicated region
    $region22: #{tpu_custom_call.1} parent=1 // pred_check
      _
    $region23: #{tpu_custom_call.1} parent=1 // pred_check_branch
      %75 = sbr.rel (0) target = $region25
    $region24: #{tpu_custom_call.1} parent=1 // pred_region
      _
    $region25: #{tpu_custom_call.1} parent=1 // pred_fallthru
      _
    // Predicated region
    $region26: #{tpu_custom_call.1} parent=1 // pred_check
      _
    $region27: #{tpu_custom_call.1} parent=1 // pred_check_branch
      %77 = sbr.rel (0) target = $region29
    $region28: #{tpu_custom_call.1} parent=1 // pred_region
      %s79 = ssub.s32 12288, 12288
      %80 = vsyncadd [#allocation12], %s79
      %s81 = sshll.u32 [#allocation11], 4
      %s82 = int_to_ptr.vmem [resolvable:$true] %s81
      %87 = dma.hbm_to_vmem [thread:$0]  %s6, 12288, %s82, [#allocation12], 128, 128, 8
    $region29: #{tpu_custom_call.1} parent=1 // pred_fallthru
      _
    // Predicated region
    $region30: #{tpu_custom_call.1} parent=1 // pred_check
      _
    $region31: #{tpu_custom_call.1} parent=1 // pred_check_branch
      %89 = sbr.rel (0) target = $region33
    $region32: #{tpu_custom_call.1} parent=1 // pred_region
      _
    $region33: #{tpu_custom_call.1} parent=1 // pred_fallthru
      _
    // Predicated region
    $region34: #{tpu_custom_call.1} parent=1 // pred_check
      _
    $region35: #{tpu_custom_call.1} parent=1 // pred_check_branch
      %91 = sbr.rel (0) target = $region37
    $region36: #{tpu_custom_call.1} parent=1 // pred_region
      %92 = dma.done [#allocation3], 256
    $region37: #{tpu_custom_call.1} parent=1 // pred_fallthru
      _
    // Predicated region
    $region38: #{tpu_custom_call.1} parent=1 // pred_check
      _
    $region39: #{tpu_custom_call.1} parent=1 // pred_check_branch
      %94 = sbr.rel (0) target = $region41
    $region40: #{tpu_custom_call.1} parent=1 // pred_region
      %95 = dma.done [#allocation6], 8192
    $region41: #{tpu_custom_call.1} parent=1 // pred_fallthru
      _
    // Predicated region
    $region42: #{tpu_custom_call.1} parent=1 // pred_check
      _
    $region43: #{tpu_custom_call.1} parent=1 // pred_check_branch
      %97 = sbr.rel (0) target = $region45
    $region44: #{tpu_custom_call.1} parent=1 // pred_region
      %98 = dma.done [#allocation6], 64
    $region45: #{tpu_custom_call.1} parent=1 // pred_fallthru
      _
    // Predicated region
    $region46: #{tpu_custom_call.1} parent=1 // pred_check
      _
    $region47: #{tpu_custom_call.1} parent=1 // pred_check_branch
      %100 = sbr.rel (0) target = $region49
    $region48: #{tpu_custom_call.1} parent=1 // pred_region
      %101 = dma.done [#allocation9], 4096
    $region49: #{tpu_custom_call.1} parent=1 // pred_fallthru
      _
    // Predicated region
    $region50: #{tpu_custom_call.1} parent=1 // pred_check
      _
    $region51: #{tpu_custom_call.1} parent=1 // pred_check_branch
      %103 = sbr.rel (0) target = $region53
    $region52: #{tpu_custom_call.1} parent=1 // pred_region
      %104 = dma.done [#allocation9], 8192
    $region53: #{tpu_custom_call.1} parent=1 // pred_fallthru
      _
    // Predicated region
    $region54: #{tpu_custom_call.1} parent=1 // pred_check
      _
    $region55: #{tpu_custom_call.1} parent=1 // pred_check_branch
      %106 = sbr.rel (0) target = $region57
    $region56: #{tpu_custom_call.1} parent=1 // pred_region
      %107 = dma.done [#allocation12], 12288
    $region57: #{tpu_custom_call.1} parent=1 // pred_fallthru
      _
    %v109 = vld [vmem:[#allocation2] sm:$0xff]
    %v110 = vld [vmem:[#allocation2 + $0x8] sm:$0xff]
    %v111 = vpack.c.bf16 %v109, %v109
    %v112 = vpack.c.bf16 %v110, %v110
    %v113 = vld [vmem:[#allocation5] sm:$0xff]
    %v114 = vld [vmem:[#allocation5 + $0x8] sm:$0xff]
    %v115 = vld [vmem:[#allocation5 + $0x10] sm:$0xff]
    %v116 = vld [vmem:[#allocation5 + $0x18] sm:$0xff]
    %v117 = vld [vmem:[#allocation5 + $0x20] sm:$0xff]
    %v118 = vld [vmem:[#allocation5 + $0x28] sm:$0xff]
    %v119 = vld [vmem:[#allocation5 + $0x30] sm:$0xff]
    %v120 = vld [vmem:[#allocation5 + $0x38] sm:$0xff]
    %v121 = vld [vmem:[#allocation5 + $0x40] sm:$0xff]
    %v122 = vld [vmem:[#allocation5 + $0x48] sm:$0xff]
    %v123 = vld [vmem:[#allocation5 + $0x50] sm:$0xff]
    %v124 = vld [vmem:[#allocation5 + $0x58] sm:$0xff]
    %v125 = vld [vmem:[#allocation5 + $0x60] sm:$0xff]
    %v126 = vld [vmem:[#allocation5 + $0x68] sm:$0xff]
    %v127 = vld [vmem:[#allocation5 + $0x70] sm:$0xff]
    %v128 = vld [vmem:[#allocation5 + $0x78] sm:$0xff]
    %v129 = vld [vmem:[#allocation5 + $0x80] sm:$0xff]
    %v130 = vld [vmem:[#allocation5 + $0x88] sm:$0xff]
    %v131 = vld [vmem:[#allocation5 + $0x90] sm:$0xff]
    %v132 = vld [vmem:[#allocation5 + $0x98] sm:$0xff]
    %v133 = vld [vmem:[#allocation5 + $0xa0] sm:$0xff]
    %v134 = vld [vmem:[#allocation5 + $0xa8] sm:$0xff]
    %v135 = vld [vmem:[#allocation5 + $0xb0] sm:$0xff]
    %v136 = vld [vmem:[#allocation5 + $0xb8] sm:$0xff]
    %v137 = vld [vmem:[#allocation5 + $0xc0] sm:$0xff]
    %v138 = vld [vmem:[#allocation5 + $0xc8] sm:$0xff]
    %v139 = vld [vmem:[#allocation5 + $0xd0] sm:$0xff]
    %v140 = vld [vmem:[#allocation5 + $0xd8] sm:$0xff]
    %v141 = vld [vmem:[#allocation5 + $0xe0] sm:$0xff]
    %v142 = vld [vmem:[#allocation5 + $0xe8] sm:$0xff]
    %v143 = vld [vmem:[#allocation5 + $0xf0] sm:$0xff]
    %v144 = vld [vmem:[#allocation5 + $0xf8] sm:$0xff]
    %v145 = vld [vmem:[#allocation5 + $0x100] sm:$0xff]
    %v146 = vld [vmem:[#allocation5 + $0x108] sm:$0xff]
    %v147 = vld [vmem:[#allocation5 + $0x110] sm:$0xff]
    %v148 = vld [vmem:[#allocation5 + $0x118] sm:$0xff]
    %v149 = vld [vmem:[#allocation5 + $0x120] sm:$0xff]
    %v150 = vld [vmem:[#allocation5 + $0x128] sm:$0xff]
    %v151 = vld [vmem:[#allocation5 + $0x130] sm:$0xff]
    %v152 = vld [vmem:[#allocation5 + $0x138] sm:$0xff]
    %v153 = vld [vmem:[#allocation5 + $0x140] sm:$0xff]
    %v154 = vld [vmem:[#allocation5 + $0x148] sm:$0xff]
    %v155 = vld [vmem:[#allocation5 + $0x150] sm:$0xff]
    %v156 = vld [vmem:[#allocation5 + $0x158] sm:$0xff]
    %v157 = vld [vmem:[#allocation5 + $0x160] sm:$0xff]
    %v158 = vld [vmem:[#allocation5 + $0x168] sm:$0xff]
    %v159 = vld [vmem:[#allocation5 + $0x170] sm:$0xff]
    %v160 = vld [vmem:[#allocation5 + $0x178] sm:$0xff]
    %v161 = vld [vmem:[#allocation5 + $0x180] sm:$0xff]
    %v162 = vld [vmem:[#allocation5 + $0x188] sm:$0xff]
    %v163 = vld [vmem:[#allocation5 + $0x190] sm:$0xff]
    %v164 = vld [vmem:[#allocation5 + $0x198] sm:$0xff]
    %v165 = vld [vmem:[#allocation5 + $0x1a0] sm:$0xff]
    %v166 = vld [vmem:[#allocation5 + $0x1a8] sm:$0xff]
    %v167 = vld [vmem:[#allocation5 + $0x1b0] sm:$0xff]
    %v168 = vld [vmem:[#allocation5 + $0x1b8] sm:$0xff]
    %v169 = vld [vmem:[#allocation5 + $0x1c0] sm:$0xff]
    %v170 = vld [vmem:[#allocation5 + $0x1c8] sm:$0xff]
    %v171 = vld [vmem:[#allocation5 + $0x1d0] sm:$0xff]
    %v172 = vld [vmem:[#allocation5 + $0x1d8] sm:$0xff]
    %v173 = vld [vmem:[#allocation5 + $0x1e0] sm:$0xff]
    %v174 = vld [vmem:[#allocation5 + $0x1e8] sm:$0xff]
    %v175 = vld [vmem:[#allocation5 + $0x1f0] sm:$0xff]
    %v176 = vld [vmem:[#allocation5 + $0x1f8] sm:$0xff]
    %v177 = vld [vmem:[#allocation7] sm:$0xf]
    %v179 = vlaneseq
    %v180 = vshrl.u32 %v179, 7
    %v181 = vsub.s32 0, %v180
    %v182 = vrot.slane %v177, %v181
    %v183 = vlaneseq
    %v184 = vshrl.u32 %v183, 7
    %v185 = vsub.s32 1, %v184
    %v186 = vrot.slane %v177, %v185
    %v187 = vlaneseq
    %v188 = vshrl.u32 %v187, 7
    %v189 = vsub.s32 2, %v188
    %v190 = vrot.slane %v177, %v189
    %v191 = vlaneseq
    %v192 = vshrl.u32 %v191, 7
    %v193 = vsub.s32 3, %v192
    %v194 = vrot.slane %v177, %v193
    %v263 = vunpack.c.l.b16 %v113
    %v264 = vunpack.c.h.b16 %v113
    %v265 = vunpack.c.l.b16 %v114
    %v266 = vunpack.c.h.b16 %v114
    %v267 = vunpack.c.l.b16 %v115
    %v268 = vunpack.c.h.b16 %v115
    %v269 = vunpack.c.l.b16 %v116
    %v270 = vunpack.c.h.b16 %v116
    %v271 = vunpack.c.l.b16 %v117
    %v272 = vunpack.c.h.b16 %v117
    %v273 = vunpack.c.l.b16 %v118
    %v274 = vunpack.c.h.b16 %v118
    %v275 = vunpack.c.l.b16 %v119
    %v276 = vunpack.c.h.b16 %v119
    %v277 = vunpack.c.l.b16 %v120
    %v278 = vunpack.c.h.b16 %v120
    %v279 = vunpack.c.l.b16 %v121
    %v280 = vunpack.c.h.b16 %v121
    %v281 = vunpack.c.l.b16 %v122
    %v282 = vunpack.c.h.b16 %v122
    %v283 = vunpack.c.l.b16 %v123
    %v284 = vunpack.c.h.b16 %v123
    %v285 = vunpack.c.l.b16 %v124
    %v286 = vunpack.c.h.b16 %v124
    %v287 = vunpack.c.l.b16 %v125
    %v288 = vunpack.c.h.b16 %v125
    %v289 = vunpack.c.l.b16 %v126
    %v290 = vunpack.c.h.b16 %v126
    %v291 = vunpack.c.l.b16 %v127
    %v292 = vunpack.c.h.b16 %v127
    %v293 = vunpack.c.l.b16 %v128
    %v294 = vunpack.c.h.b16 %v128
    %v295 = vunpack.c.l.b16 %v129
    %v296 = vunpack.c.h.b16 %v129
    %v297 = vunpack.c.l.b16 %v130
    %v298 = vunpack.c.h.b16 %v130
    %v299 = vunpack.c.l.b16 %v131
    %v300 = vunpack.c.h.b16 %v131
    %v301 = vunpack.c.l.b16 %v132
    %v302 = vunpack.c.h.b16 %v132
    %v303 = vunpack.c.l.b16 %v133
    %v304 = vunpack.c.h.b16 %v133
    %v305 = vunpack.c.l.b16 %v134
    %v306 = vunpack.c.h.b16 %v134
    %v307 = vunpack.c.l.b16 %v135
    %v308 = vunpack.c.h.b16 %v135
    %v309 = vunpack.c.l.b16 %v136
    %v310 = vunpack.c.h.b16 %v136
    %v311 = vunpack.c.l.b16 %v137
    %v312 = vunpack.c.h.b16 %v137
    %v313 = vunpack.c.l.b16 %v138
    %v314 = vunpack.c.h.b16 %v138
    %v315 = vunpack.c.l.b16 %v139
    %v316 = vunpack.c.h.b16 %v139
    %v317 = vunpack.c.l.b16 %v140
    %v318 = vunpack.c.h.b16 %v140
    %v319 = vunpack.c.l.b16 %v141
    %v320 = vunpack.c.h.b16 %v141
    %v321 = vunpack.c.l.b16 %v142
    %v322 = vunpack.c.h.b16 %v142
    %v323 = vunpack.c.l.b16 %v143
    %v324 = vunpack.c.h.b16 %v143
    %v325 = vunpack.c.l.b16 %v144
    %v326 = vunpack.c.h.b16 %v144
    %v327 = vunpack.c.l.b16 %v145
    %v328 = vunpack.c.h.b16 %v145
    %v329 = vunpack.c.l.b16 %v146
    %v330 = vunpack.c.h.b16 %v146
    %v331 = vunpack.c.l.b16 %v147
    %v332 = vunpack.c.h.b16 %v147
    %v333 = vunpack.c.l.b16 %v148
    %v334 = vunpack.c.h.b16 %v148
    %v335 = vunpack.c.l.b16 %v149
    %v336 = vunpack.c.h.b16 %v149
    %v337 = vunpack.c.l.b16 %v150
    %v338 = vunpack.c.h.b16 %v150
    %v339 = vunpack.c.l.b16 %v151
    %v340 = vunpack.c.h.b16 %v151
    %v341 = vunpack.c.l.b16 %v152
    %v342 = vunpack.c.h.b16 %v152
    %v343 = vunpack.c.l.b16 %v153
    %v344 = vunpack.c.h.b16 %v153
    %v345 = vunpack.c.l.b16 %v154
    %v346 = vunpack.c.h.b16 %v154
    %v347 = vunpack.c.l.b16 %v155
    %v348 = vunpack.c.h.b16 %v155
    %v349 = vunpack.c.l.b16 %v156
    %v350 = vunpack.c.h.b16 %v156
    %v351 = vunpack.c.l.b16 %v157
    %v352 = vunpack.c.h.b16 %v157
    %v353 = vunpack.c.l.b16 %v158
    %v354 = vunpack.c.h.b16 %v158
    %v355 = vunpack.c.l.b16 %v159
    %v356 = vunpack.c.h.b16 %v159
    %v357 = vunpack.c.l.b16 %v160
    %v358 = vunpack.c.h.b16 %v160
    %v359 = vunpack.c.l.b16 %v161
    %v360 = vunpack.c.h.b16 %v161
    %v361 = vunpack.c.l.b16 %v162
    %v362 = vunpack.c.h.b16 %v162
    %v363 = vunpack.c.l.b16 %v163
    %v364 = vunpack.c.h.b16 %v163
    %v365 = vunpack.c.l.b16 %v164
    %v366 = vunpack.c.h.b16 %v164
    %v367 = vunpack.c.l.b16 %v165
    %v368 = vunpack.c.h.b16 %v165
    %v369 = vunpack.c.l.b16 %v166
    %v370 = vunpack.c.h.b16 %v166
    %v371 = vunpack.c.l.b16 %v167
    %v372 = vunpack.c.h.b16 %v167
    %v373 = vunpack.c.l.b16 %v168
    %v374 = vunpack.c.h.b16 %v168
    %v375 = vunpack.c.l.b16 %v169
    %v376 = vunpack.c.h.b16 %v169
    %v377 = vunpack.c.l.b16 %v170
    %v378 = vunpack.c.h.b16 %v170
    %v379 = vunpack.c.l.b16 %v171
    %v380 = vunpack.c.h.b16 %v171
    %v381 = vunpack.c.l.b16 %v172
    %v382 = vunpack.c.h.b16 %v172
    %v383 = vunpack.c.l.b16 %v173
    %v384 = vunpack.c.h.b16 %v173
    %v385 = vunpack.c.l.b16 %v174
    %v386 = vunpack.c.h.b16 %v174
    %v387 = vunpack.c.l.b16 %v175
    %v388 = vunpack.c.h.b16 %v175
    %v389 = vunpack.c.l.b16 %v176
    %v390 = vunpack.c.h.b16 %v176
    %v391 = vpack.c.b16 %v267, %v263
    %v392 = vpack.c.b16 %v268, %v264
    %v393 = vpack.c.b16 %v269, %v265
    %v394 = vpack.c.b16 %v270, %v266
    %v395 = vpack.c.b16 %v275, %v271
    %v396 = vpack.c.b16 %v276, %v272
    %v397 = vpack.c.b16 %v277, %v273
    %v398 = vpack.c.b16 %v278, %v274
    %v399 = vpack.c.b16 %v283, %v279
    %v400 = vpack.c.b16 %v284, %v280
    %v401 = vpack.c.b16 %v285, %v281
    %v402 = vpack.c.b16 %v286, %v282
    %v403 = vpack.c.b16 %v291, %v287
    %v404 = vpack.c.b16 %v292, %v288
    %v405 = vpack.c.b16 %v293, %v289
    %v406 = vpack.c.b16 %v294, %v290
    %v407 = vpack.c.b16 %v299, %v295
    %v408 = vpack.c.b16 %v300, %v296
    %v409 = vpack.c.b16 %v301, %v297
    %v410 = vpack.c.b16 %v302, %v298
    %v411 = vpack.c.b16 %v307, %v303
    %v412 = vpack.c.b16 %v308, %v304
    %v413 = vpack.c.b16 %v309, %v305
    %v414 = vpack.c.b16 %v310, %v306
    %v415 = vpack.c.b16 %v315, %v311
    %v416 = vpack.c.b16 %v316, %v312
    %v417 = vpack.c.b16 %v317, %v313
    %v418 = vpack.c.b16 %v318, %v314
    %v419 = vpack.c.b16 %v323, %v319
    %v420 = vpack.c.b16 %v324, %v320
    %v421 = vpack.c.b16 %v325, %v321
    %v422 = vpack.c.b16 %v326, %v322
    %v423 = vpack.c.b16 %v331, %v327
    %v424 = vpack.c.b16 %v332, %v328
    %v425 = vpack.c.b16 %v333, %v329
    %v426 = vpack.c.b16 %v334, %v330
    %v427 = vpack.c.b16 %v339, %v335
    %v428 = vpack.c.b16 %v340, %v336
    %v429 = vpack.c.b16 %v341, %v337
    %v430 = vpack.c.b16 %v342, %v338
    %v431 = vpack.c.b16 %v347, %v343
    %v432 = vpack.c.b16 %v348, %v344
    %v433 = vpack.c.b16 %v349, %v345
    %v434 = vpack.c.b16 %v350, %v346
    %v435 = vpack.c.b16 %v355, %v351
    %v436 = vpack.c.b16 %v356, %v352
    %v437 = vpack.c.b16 %v357, %v353
    %v438 = vpack.c.b16 %v358, %v354
    %v439 = vpack.c.b16 %v363, %v359
    %v440 = vpack.c.b16 %v364, %v360
    %v441 = vpack.c.b16 %v365, %v361
    %v442 = vpack.c.b16 %v366, %v362
    %v443 = vpack.c.b16 %v371, %v367
    %v444 = vpack.c.b16 %v372, %v368
    %v445 = vpack.c.b16 %v373, %v369
    %v446 = vpack.c.b16 %v374, %v370
    %v447 = vpack.c.b16 %v379, %v375
    %v448 = vpack.c.b16 %v380, %v376
    %v449 = vpack.c.b16 %v381, %v377
    %v450 = vpack.c.b16 %v382, %v378
    %v451 = vpack.c.b16 %v387, %v383
    %v452 = vpack.c.b16 %v388, %v384
    %v453 = vpack.c.b16 %v389, %v385
    %v454 = vpack.c.b16 %v390, %v386
    %519 = vmatprep.subr.bf16.mxu0 %v420
    %520 = vmatpush1.bf16.msra.mxu0 %v419
    %521 = vmatprep.subr.bf16.mxu0 %v416
    %522 = vmatpush1.bf16.msra.mxu0 %v415
    %523 = vmatprep.subr.bf16.mxu0 %v412
    %524 = vmatpush1.bf16.msra.mxu0 %v411
    %525 = vmatprep.subr.bf16.mxu0 %v408
    %526 = vmatpush1.bf16.msra.mxu0 %v407
    %527 = vmatprep.subr.bf16.mxu0 %v404
    %528 = vmatpush1.bf16.msra.mxu0 %v403
    %529 = vmatprep.subr.bf16.mxu0 %v400
    %530 = vmatpush1.bf16.msra.mxu0 %v399
    %531 = vmatprep.subr.bf16.mxu0 %v396
    %532 = vmatpush1.bf16.msra.mxu0 %v395
    %533 = vmatprep.subr.bf16.mxu0 %v392
    %534 = vmatpush1.bf16.msra.mxu0 %v391
    %535 = vmatprep.subr.bf16.mxu0 %v452
    %536 = vmatpush2.bf16.msra.mxu0 %v451
    %537 = vmatprep.subr.bf16.mxu0 %v448
    %538 = vmatpush2.bf16.msra.mxu0 %v447
    %539 = vmatprep.subr.bf16.mxu0 %v444
    %540 = vmatpush2.bf16.msra.mxu0 %v443
    %541 = vmatprep.subr.bf16.mxu0 %v440
    %542 = vmatpush2.bf16.msra.mxu0 %v439
    %543 = vmatprep.subr.bf16.mxu0 %v436
    %544 = vmatpush2.bf16.msra.mxu0 %v435
    %545 = vmatprep.subr.bf16.mxu0 %v432
    %546 = vmatpush2.bf16.msra.mxu0 %v431
    %547 = vmatprep.subr.bf16.mxu0 %v428
    %548 = vmatpush2.bf16.msra.mxu0 %v427
    %549 = vmatprep.subr.bf16.mxu0 %v424
    %550 = vmatpush2.bf16.msra.mxu0 %v423
    %551 = vmatprep.mubr.bf16.mxu0 %v112
    %552 = vmatmul.mubr.bf16.gmra.mxu0 %v111
    %v553 = vpop.f32.mrf.mxu0
    %v554 = vadd.f32 %v182, %v553
    %v555 = vpop.f32.mrf.mxu0
    %v556 = vadd.f32 %v186, %v555
    %v557 = vpop.f32.mrf.mxu0
    %v558 = vpop.f32.mrf.mxu0
    %559 = vdwg.mxu0
    %560 = vmatprep.subr.bf16.mxu0 %v422
    %561 = vmatpush1.bf16.msra.mxu0 %v421
    %562 = vmatprep.subr.bf16.mxu0 %v418
    %563 = vmatpush1.bf16.msra.mxu0 %v417
    %564 = vmatprep.subr.bf16.mxu0 %v414
    %565 = vmatpush1.bf16.msra.mxu0 %v413
    %566 = vmatprep.subr.bf16.mxu0 %v410
    %567 = vmatpush1.bf16.msra.mxu0 %v409
    %568 = vmatprep.subr.bf16.mxu0 %v406
    %569 = vmatpush1.bf16.msra.mxu0 %v405
    %570 = vmatprep.subr.bf16.mxu0 %v402
    %571 = vmatpush1.bf16.msra.mxu0 %v401
    %572 = vmatprep.subr.bf16.mxu0 %v398
    %573 = vmatpush1.bf16.msra.mxu0 %v397
    %574 = vmatprep.subr.bf16.mxu0 %v394
    %575 = vmatpush1.bf16.msra.mxu0 %v393
    %576 = vmatprep.subr.bf16.mxu0 %v454
    %577 = vmatpush2.bf16.msra.mxu0 %v453
    %578 = vmatprep.subr.bf16.mxu0 %v450
    %579 = vmatpush2.bf16.msra.mxu0 %v449
    %580 = vmatprep.subr.bf16.mxu0 %v446
    %581 = vmatpush2.bf16.msra.mxu0 %v445
    %582 = vmatprep.subr.bf16.mxu0 %v442
    %583 = vmatpush2.bf16.msra.mxu0 %v441
    %584 = vmatprep.subr.bf16.mxu0 %v438
    %585 = vmatpush2.bf16.msra.mxu0 %v437
    %586 = vmatprep.subr.bf16.mxu0 %v434
    %587 = vmatpush2.bf16.msra.mxu0 %v433
    %588 = vmatprep.subr.bf16.mxu0 %v430
    %589 = vmatpush2.bf16.msra.mxu0 %v429
    %590 = vmatprep.subr.bf16.mxu0 %v426
    %591 = vmatpush2.bf16.msra.mxu0 %v425
    %592 = vmatprep.mubr.bf16.mxu0 %v112
    %593 = vmatmul.mubr.bf16.gmra.mxu0 %v111
    %v594 = vpop.f32.mrf.mxu0
    %v595 = vadd.f32 %v190, %v594
    %v596 = vpop.f32.mrf.mxu0
    %v597 = vadd.f32 %v194, %v596
    %v598 = vpop.f32.mrf.mxu0
    %v599 = vpop.f32.mrf.mxu0
    %600 = vdwg.mxu0
    %v601 = vld [vmem:[#allocation8] sm:$0xff]
    %v602 = vld [vmem:[#allocation8 + $0x8] sm:$0xff]
    %v603 = vld [vmem:[#allocation8 + $0x10] sm:$0xff]
    %v604 = vld [vmem:[#allocation8 + $0x18] sm:$0xff]
    %v605 = vld [vmem:[#allocation8 + $0x20] sm:$0xff]
    %v606 = vld [vmem:[#allocation8 + $0x28] sm:$0xff]
    %v607 = vld [vmem:[#allocation8 + $0x30] sm:$0xff]
    %v608 = vld [vmem:[#allocation8 + $0x38] sm:$0xff]
    %v609 = vld [vmem:[#allocation8 + $0x40] sm:$0xff]
    %v610 = vld [vmem:[#allocation8 + $0x48] sm:$0xff]
    %v611 = vld [vmem:[#allocation8 + $0x50] sm:$0xff]
    %v612 = vld [vmem:[#allocation8 + $0x58] sm:$0xff]
    %v613 = vld [vmem:[#allocation8 + $0x60] sm:$0xff]
    %v614 = vld [vmem:[#allocation8 + $0x68] sm:$0xff]
    %v615 = vld [vmem:[#allocation8 + $0x70] sm:$0xff]
    %v616 = vld [vmem:[#allocation8 + $0x78] sm:$0xff]
    %v617 = vld [vmem:[#allocation8 + $0x80] sm:$0xff]
    %v618 = vld [vmem:[#allocation8 + $0x88] sm:$0xff]
    %v619 = vld [vmem:[#allocation8 + $0x90] sm:$0xff]
    %v620 = vld [vmem:[#allocation8 + $0x98] sm:$0xff]
    %v621 = vld [vmem:[#allocation8 + $0xa0] sm:$0xff]
    %v622 = vld [vmem:[#allocation8 + $0xa8] sm:$0xff]
    %v623 = vld [vmem:[#allocation8 + $0xb0] sm:$0xff]
    %v624 = vld [vmem:[#allocation8 + $0xb8] sm:$0xff]
    %v625 = vld [vmem:[#allocation8 + $0xc0] sm:$0xff]
    %v626 = vld [vmem:[#allocation8 + $0xc8] sm:$0xff]
    %v627 = vld [vmem:[#allocation8 + $0xd0] sm:$0xff]
    %v628 = vld [vmem:[#allocation8 + $0xd8] sm:$0xff]
    %v629 = vld [vmem:[#allocation8 + $0xe0] sm:$0xff]
    %v630 = vld [vmem:[#allocation8 + $0xe8] sm:$0xff]
    %v631 = vld [vmem:[#allocation8 + $0xf0] sm:$0xff]
    %v632 = vld [vmem:[#allocation8 + $0xf8] sm:$0xff]
    %v633 = vld [vmem:[#allocation10] sm:$0xff]
    %v634 = vld [vmem:[#allocation10 + $0x8] sm:$0xff]
    %v635 = vld [vmem:[#allocation10 + $0x10] sm:$0xff]
    %v636 = vld [vmem:[#allocation10 + $0x18] sm:$0xff]
    %v637 = vld [vmem:[#allocation10 + $0x20] sm:$0xff]
    %v638 = vld [vmem:[#allocation10 + $0x28] sm:$0xff]
    %v639 = vld [vmem:[#allocation10 + $0x30] sm:$0xff]
    %v640 = vld [vmem:[#allocation10 + $0x38] sm:$0xff]
    %v641 = vld [vmem:[#allocation10 + $0x40] sm:$0xff]
    %v642 = vld [vmem:[#allocation10 + $0x48] sm:$0xff]
    %v643 = vld [vmem:[#allocation10 + $0x50] sm:$0xff]
    %v644 = vld [vmem:[#allocation10 + $0x58] sm:$0xff]
    %v645 = vld [vmem:[#allocation10 + $0x60] sm:$0xff]
    %v646 = vld [vmem:[#allocation10 + $0x68] sm:$0xff]
    %v647 = vld [vmem:[#allocation10 + $0x70] sm:$0xff]
    %v648 = vld [vmem:[#allocation10 + $0x78] sm:$0xff]
    %v649 = vld [vmem:[#allocation10 + $0x80] sm:$0xff]
    %v650 = vld [vmem:[#allocation10 + $0x88] sm:$0xff]
    %v651 = vld [vmem:[#allocation10 + $0x90] sm:$0xff]
    %v652 = vld [vmem:[#allocation10 + $0x98] sm:$0xff]
    %v653 = vld [vmem:[#allocation10 + $0xa0] sm:$0xff]
    %v654 = vld [vmem:[#allocation10 + $0xa8] sm:$0xff]
    %v655 = vld [vmem:[#allocation10 + $0xb0] sm:$0xff]
    %v656 = vld [vmem:[#allocation10 + $0xb8] sm:$0xff]
    %v657 = vld [vmem:[#allocation10 + $0xc0] sm:$0xff]
    %v658 = vld [vmem:[#allocation10 + $0xc8] sm:$0xff]
    %v659 = vld [vmem:[#allocation10 + $0xd0] sm:$0xff]
    %v660 = vld [vmem:[#allocation10 + $0xd8] sm:$0xff]
    %v661 = vld [vmem:[#allocation10 + $0xe0] sm:$0xff]
    %v662 = vld [vmem:[#allocation10 + $0xe8] sm:$0xff]
    %v663 = vld [vmem:[#allocation10 + $0xf0] sm:$0xff]
    %v664 = vld [vmem:[#allocation10 + $0xf8] sm:$0xff]
    %v665 = vld [vmem:[#allocation10 + $0x100] sm:$0xff]
    %v666 = vld [vmem:[#allocation10 + $0x108] sm:$0xff]
    %v667 = vld [vmem:[#allocation10 + $0x110] sm:$0xff]
    %v668 = vld [vmem:[#allocation10 + $0x118] sm:$0xff]
    %v669 = vld [vmem:[#allocation10 + $0x120] sm:$0xff]
    %v670 = vld [vmem:[#allocation10 + $0x128] sm:$0xff]
    %v671 = vld [vmem:[#allocation10 + $0x130] sm:$0xff]
    %v672 = vld [vmem:[#allocation10 + $0x138] sm:$0xff]
    %v673 = vld [vmem:[#allocation10 + $0x140] sm:$0xff]
    %v674 = vld [vmem:[#allocation10 + $0x148] sm:$0xff]
    %v675 = vld [vmem:[#allocation10 + $0x150] sm:$0xff]
    %v676 = vld [vmem:[#allocation10 + $0x158] sm:$0xff]
    %v677 = vld [vmem:[#allocation10 + $0x160] sm:$0xff]
    %v678 = vld [vmem:[#allocation10 + $0x168] sm:$0xff]
    %v679 = vld [vmem:[#allocation10 + $0x170] sm:$0xff]
    %v680 = vld [vmem:[#allocation10 + $0x178] sm:$0xff]
    %v681 = vld [vmem:[#allocation10 + $0x180] sm:$0xff]
    %v682 = vld [vmem:[#allocation10 + $0x188] sm:$0xff]
    %v683 = vld [vmem:[#allocation10 + $0x190] sm:$0xff]
    %v684 = vld [vmem:[#allocation10 + $0x198] sm:$0xff]
    %v685 = vld [vmem:[#allocation10 + $0x1a0] sm:$0xff]
    %v686 = vld [vmem:[#allocation10 + $0x1a8] sm:$0xff]
    %v687 = vld [vmem:[#allocation10 + $0x1b0] sm:$0xff]
    %v688 = vld [vmem:[#allocation10 + $0x1b8] sm:$0xff]
    %v689 = vld [vmem:[#allocation10 + $0x1c0] sm:$0xff]
    %v690 = vld [vmem:[#allocation10 + $0x1c8] sm:$0xff]
    %v691 = vld [vmem:[#allocation10 + $0x1d0] sm:$0xff]
    %v692 = vld [vmem:[#allocation10 + $0x1d8] sm:$0xff]
    %v693 = vld [vmem:[#allocation10 + $0x1e0] sm:$0xff]
    %v694 = vld [vmem:[#allocation10 + $0x1e8] sm:$0xff]
    %v695 = vld [vmem:[#allocation10 + $0x1f0] sm:$0xff]
    %v696 = vld [vmem:[#allocation10 + $0x1f8] sm:$0xff]
    %v697 = vld [vmem:[%s5] sm:$0xf]
    %v698 = vmul.f32 %v554, 0.5
    %v699 = vtanh.pop %v698
    %v700 = vadd.f32 %v699, 1.0
    %v701 = vmul.f32 %v700, 0.5
    %v702 = vmul.f32 %v556, 0.5
    %v703 = vtanh.pop %v702
    %v704 = vadd.f32 %v703, 1.0
    %v705 = vmul.f32 %v704, 0.5
    %v706 = vtanh.pop %v595
    %v707 = vmul.f32 %v597, 0.5
    %v708 = vtanh.pop %v707
    %v709 = vadd.f32 %v708, 1.0
    %v710 = vmul.f32 %v709, 0.5
    %v711 = vmul.f32 %v705, 0.0
    %v712 = vmul.f32 %v701, %v706
    %v713 = vadd.f32 %v711, %v712
    %v714 = vtanh.pop %v713
    %v715 = vmul.f32 %v710, %v714
    %v716 = vpack.c.bf16 %v715, %v715
    %v718 = vlaneseq
    %v719 = vshrl.u32 %v718, 7
    %v720 = vsub.s32 0, %v719
    %v721 = vrot.slane %v697, %v720
    %v722 = vlaneseq
    %v723 = vshrl.u32 %v722, 7
    %v724 = vsub.s32 1, %v723
    %v725 = vrot.slane %v697, %v724
    %v726 = vlaneseq
    %v727 = vshrl.u32 %v726, 7
    %v728 = vsub.s32 2, %v727
    %v729 = vrot.slane %v697, %v728
    %v730 = vlaneseq
    %v731 = vshrl.u32 %v730, 7
    %v732 = vsub.s32 3, %v731
    %v733 = vrot.slane %v697, %v732
    %v770 = vunpack.c.l.b16 %v633
    %v771 = vunpack.c.h.b16 %v633
    %v772 = vunpack.c.l.b16 %v634
    %v773 = vunpack.c.h.b16 %v634
    %v774 = vunpack.c.l.b16 %v635
    %v775 = vunpack.c.h.b16 %v635
    %v776 = vunpack.c.l.b16 %v636
    %v777 = vunpack.c.h.b16 %v636
    %v778 = vunpack.c.l.b16 %v637
    %v779 = vunpack.c.h.b16 %v637
    %v780 = vunpack.c.l.b16 %v638
    %v781 = vunpack.c.h.b16 %v638
    %v782 = vunpack.c.l.b16 %v639
    %v783 = vunpack.c.h.b16 %v639
    %v784 = vunpack.c.l.b16 %v640
    %v785 = vunpack.c.h.b16 %v640
    %v786 = vunpack.c.l.b16 %v641
    %v787 = vunpack.c.h.b16 %v641
    %v788 = vunpack.c.l.b16 %v642
    %v789 = vunpack.c.h.b16 %v642
    %v790 = vunpack.c.l.b16 %v643
    %v791 = vunpack.c.h.b16 %v643
    %v792 = vunpack.c.l.b16 %v644
    %v793 = vunpack.c.h.b16 %v644
    %v794 = vunpack.c.l.b16 %v645
    %v795 = vunpack.c.h.b16 %v645
    %v796 = vunpack.c.l.b16 %v646
    %v797 = vunpack.c.h.b16 %v646
    %v798 = vunpack.c.l.b16 %v647
    %v799 = vunpack.c.h.b16 %v647
    %v800 = vunpack.c.l.b16 %v648
    %v801 = vunpack.c.h.b16 %v648
    %v802 = vunpack.c.l.b16 %v649
    %v803 = vunpack.c.h.b16 %v649
    %v804 = vunpack.c.l.b16 %v650
    %v805 = vunpack.c.h.b16 %v650
    %v806 = vunpack.c.l.b16 %v651
    %v807 = vunpack.c.h.b16 %v651
    %v808 = vunpack.c.l.b16 %v652
    %v809 = vunpack.c.h.b16 %v652
    %v810 = vunpack.c.l.b16 %v653
    %v811 = vunpack.c.h.b16 %v653
    %v812 = vunpack.c.l.b16 %v654
    %v813 = vunpack.c.h.b16 %v654
    %v814 = vunpack.c.l.b16 %v655
    %v815 = vunpack.c.h.b16 %v655
    %v816 = vunpack.c.l.b16 %v656
    %v817 = vunpack.c.h.b16 %v656
    %v818 = vunpack.c.l.b16 %v657
    %v819 = vunpack.c.h.b16 %v657
    %v820 = vunpack.c.l.b16 %v658
    %v821 = vunpack.c.h.b16 %v658
    %v822 = vunpack.c.l.b16 %v659
    %v823 = vunpack.c.h.b16 %v659
    %v824 = vunpack.c.l.b16 %v660
    %v825 = vunpack.c.h.b16 %v660
    %v826 = vunpack.c.l.b16 %v661
    %v827 = vunpack.c.h.b16 %v661
    %v828 = vunpack.c.l.b16 %v662
    %v829 = vunpack.c.h.b16 %v662
    %v830 = vunpack.c.l.b16 %v663
    %v831 = vunpack.c.h.b16 %v663
    %v832 = vunpack.c.l.b16 %v664
    %v833 = vunpack.c.h.b16 %v664
    %v834 = vpack.c.b16 %v774, %v770
    %v835 = vpack.c.b16 %v775, %v771
    %v836 = vpack.c.b16 %v776, %v772
    %v837 = vpack.c.b16 %v777, %v773
    %v838 = vpack.c.b16 %v782, %v778
    %v839 = vpack.c.b16 %v783, %v779
    %v840 = vpack.c.b16 %v784, %v780
    %v841 = vpack.c.b16 %v785, %v781
    %v842 = vpack.c.b16 %v790, %v786
    %v843 = vpack.c.b16 %v791, %v787
    %v844 = vpack.c.b16 %v792, %v788
    %v845 = vpack.c.b16 %v793, %v789
    %v846 = vpack.c.b16 %v798, %v794
    %v847 = vpack.c.b16 %v799, %v795
    %v848 = vpack.c.b16 %v800, %v796
    %v849 = vpack.c.b16 %v801, %v797
    %v850 = vpack.c.b16 %v806, %v802
    %v851 = vpack.c.b16 %v807, %v803
    %v852 = vpack.c.b16 %v808, %v804
    %v853 = vpack.c.b16 %v809, %v805
    %v854 = vpack.c.b16 %v814, %v810
    %v855 = vpack.c.b16 %v815, %v811
    %v856 = vpack.c.b16 %v816, %v812
    %v857 = vpack.c.b16 %v817, %v813
    %v858 = vpack.c.b16 %v822, %v818
    %v859 = vpack.c.b16 %v823, %v819
    %v860 = vpack.c.b16 %v824, %v820
    %v861 = vpack.c.b16 %v825, %v821
    %v862 = vpack.c.b16 %v830, %v826
    %v863 = vpack.c.b16 %v831, %v827
    %v864 = vpack.c.b16 %v832, %v828
    %v865 = vpack.c.b16 %v833, %v829
    %898 = vmatprep.subr.bf16.mxu0 %v863
    %899 = vmatpush1.bf16.msra.mxu0 %v862
    %900 = vmatprep.subr.bf16.mxu0 %v859
    %901 = vmatpush1.bf16.msra.mxu0 %v858
    %902 = vmatprep.subr.bf16.mxu0 %v855
    %903 = vmatpush1.bf16.msra.mxu0 %v854
    %904 = vmatprep.subr.bf16.mxu0 %v851
    %905 = vmatpush1.bf16.msra.mxu0 %v850
    %906 = vmatprep.subr.bf16.mxu0 %v847
    %907 = vmatpush1.bf16.msra.mxu0 %v846
    %908 = vmatprep.subr.bf16.mxu0 %v843
    %909 = vmatpush1.bf16.msra.mxu0 %v842
    %910 = vmatprep.subr.bf16.mxu0 %v839
    %911 = vmatpush1.bf16.msra.mxu0 %v838
    %912 = vmatprep.subr.bf16.mxu0 %v835
    %913 = vmatpush1.bf16.msra.mxu0 %v834
    %914 = vmatprep.subr.bf16.mxu0 0
    %915 = vmatpush2.bf16.msra.mxu0 0
    %916 = vmatprep.subr.bf16.mxu0 0
    %917 = vmatpush2.bf16.msra.mxu0 0
    %918 = vmatprep.subr.bf16.mxu0 0
    %919 = vmatpush2.bf16.msra.mxu0 0
    %920 = vmatprep.subr.bf16.mxu0 0
    %921 = vmatpush2.bf16.msra.mxu0 0
    %922 = vmatprep.subr.bf16.mxu0 0
    %923 = vmatpush2.bf16.msra.mxu0 0
    %924 = vmatprep.subr.bf16.mxu0 0
    %925 = vmatpush2.bf16.msra.mxu0 0
    %926 = vmatprep.subr.bf16.mxu0 0
    %927 = vmatpush2.bf16.msra.mxu0 0
    %928 = vmatprep.subr.bf16.mxu0 0
    %929 = vmatpush2.bf16.msra.mxu0 0
    %930 = vmatprep.mubr.bf16.mxu0 0
    %931 = vmatmul.mubr.bf16.gmra.mxu0 %v716
    %v932 = vpop.f32.mrf.mxu0
    %v933 = vadd.f32 %v721, %v932
    %v934 = vpop.f32.mrf.mxu0
    %v935 = vadd.f32 %v725, %v934
    %v936 = vpop.f32.mrf.mxu0
    %v937 = vpop.f32.mrf.mxu0
    %938 = vdwg.mxu0
    %939 = vmatprep.subr.bf16.mxu0 %v865
    %940 = vmatpush1.bf16.msra.mxu0 %v864
    %941 = vmatprep.subr.bf16.mxu0 %v861
    %942 = vmatpush1.bf16.msra.mxu0 %v860
    %943 = vmatprep.subr.bf16.mxu0 %v857
    %944 = vmatpush1.bf16.msra.mxu0 %v856
    %945 = vmatprep.subr.bf16.mxu0 %v853
    %946 = vmatpush1.bf16.msra.mxu0 %v852
    %947 = vmatprep.subr.bf16.mxu0 %v849
    %948 = vmatpush1.bf16.msra.mxu0 %v848
    %949 = vmatprep.subr.bf16.mxu0 %v845
    %950 = vmatpush1.bf16.msra.mxu0 %v844
    %951 = vmatprep.subr.bf16.mxu0 %v841
    %952 = vmatpush1.bf16.msra.mxu0 %v840
    %953 = vmatprep.subr.bf16.mxu0 %v837
    %954 = vmatpush1.bf16.msra.mxu0 %v836
    %955 = vmatprep.subr.bf16.mxu0 0
    %956 = vmatpush2.bf16.msra.mxu0 0
    %957 = vmatprep.subr.bf16.mxu0 0
    %958 = vmatpush2.bf16.msra.mxu0 0
    %959 = vmatprep.subr.bf16.mxu0 0
    %960 = vmatpush2.bf16.msra.mxu0 0
    %961 = vmatprep.subr.bf16.mxu0 0
    %962 = vmatpush2.bf16.msra.mxu0 0
    %963 = vmatprep.subr.bf16.mxu0 0
    %964 = vmatpush2.bf16.msra.mxu0 0
    %965 = vmatprep.subr.bf16.mxu0 0
    %966 = vmatpush2.bf16.msra.mxu0 0
    %967 = vmatprep.subr.bf16.mxu0 0
    %968 = vmatpush2.bf16.msra.mxu0 0
    %969 = vmatprep.subr.bf16.mxu0 0
    %970 = vmatpush2.bf16.msra.mxu0 0
    %971 = vmatprep.mubr.bf16.mxu0 0
    %972 = vmatmul.mubr.bf16.gmra.mxu0 %v716
    %v973 = vpop.f32.mrf.mxu0
    %v974 = vadd.f32 %v729, %v973
    %v975 = vpop.f32.mrf.mxu0
    %v976 = vadd.f32 %v733, %v975
    %v977 = vpop.f32.mrf.mxu0
    %v978 = vpop.f32.mrf.mxu0
    %979 = vdwg.mxu0
    %v980 = vmul.f32 %v933, 0.5
    %v981 = vtanh.pop %v980
    %v982 = vadd.f32 %v981, 1.0
    %v983 = vmul.f32 %v982, 0.5
    %v984 = vmul.f32 %v935, 0.5
    %v985 = vtanh.pop %v984
    %v986 = vadd.f32 %v985, 1.0
    %v987 = vmul.f32 %v986, 0.5
    %v988 = vtanh.pop %v974
    %v989 = vmul.f32 %v976, 0.5
    %v990 = vtanh.pop %v989
    %v991 = vadd.f32 %v990, 1.0
    %v992 = vmul.f32 %v991, 0.5
    %v993 = vmul.f32 %v987, 0.0
    %v994 = vmul.f32 %v983, %v988
    %v995 = vadd.f32 %v993, %v994
    %v996 = vtanh.pop %v995
    %v997 = vmul.f32 %v992, %v996
    %v998 = vpack.c.bf16 %v997, %v997
    %v1031 = vunpack.c.l.b16 %v601
    %v1032 = vunpack.c.h.b16 %v601
    %v1033 = vunpack.c.l.b16 %v602
    %v1034 = vunpack.c.h.b16 %v602
    %v1035 = vunpack.c.l.b16 %v603
    %v1036 = vunpack.c.h.b16 %v603
    %v1037 = vunpack.c.l.b16 %v604
    %v1038 = vunpack.c.h.b16 %v604
    %v1039 = vunpack.c.l.b16 %v605
    %v1040 = vunpack.c.h.b16 %v605
    %v1041 = vunpack.c.l.b16 %v606
    %v1042 = vunpack.c.h.b16 %v606
    %v1043 = vunpack.c.l.b16 %v607
    %v1044 = vunpack.c.h.b16 %v607
    %v1045 = vunpack.c.l.b16 %v608
    %v1046 = vunpack.c.h.b16 %v608
    %v1047 = vunpack.c.l.b16 %v609
    %v1048 = vunpack.c.h.b16 %v609
    %v1049 = vunpack.c.l.b16 %v610
    %v1050 = vunpack.c.h.b16 %v610
    %v1051 = vunpack.c.l.b16 %v611
    %v1052 = vunpack.c.h.b16 %v611
    %v1053 = vunpack.c.l.b16 %v612
    %v1054 = vunpack.c.h.b16 %v612
    %v1055 = vunpack.c.l.b16 %v613
    %v1056 = vunpack.c.h.b16 %v613
    %v1057 = vunpack.c.l.b16 %v614
    %v1058 = vunpack.c.h.b16 %v614
    %v1059 = vunpack.c.l.b16 %v615
    %v1060 = vunpack.c.h.b16 %v615
    %v1061 = vunpack.c.l.b16 %v616
    %v1062 = vunpack.c.h.b16 %v616
    %v1063 = vunpack.c.l.b16 %v617
    %v1064 = vunpack.c.h.b16 %v617
    %v1065 = vunpack.c.l.b16 %v618
    %v1066 = vunpack.c.h.b16 %v618
    %v1067 = vunpack.c.l.b16 %v619
    %v1068 = vunpack.c.h.b16 %v619
    %v1069 = vunpack.c.l.b16 %v620
    %v1070 = vunpack.c.h.b16 %v620
    %v1071 = vunpack.c.l.b16 %v621
    %v1072 = vunpack.c.h.b16 %v621
    %v1073 = vunpack.c.l.b16 %v622
    %v1074 = vunpack.c.h.b16 %v622
    %v1075 = vunpack.c.l.b16 %v623
    %v1076 = vunpack.c.h.b16 %v623
    %v1077 = vunpack.c.l.b16 %v624
    %v1078 = vunpack.c.h.b16 %v624
    %v1079 = vunpack.c.l.b16 %v625
    %v1080 = vunpack.c.h.b16 %v625
    %v1081 = vunpack.c.l.b16 %v626
    %v1082 = vunpack.c.h.b16 %v626
    %v1083 = vunpack.c.l.b16 %v627
    %v1084 = vunpack.c.h.b16 %v627
    %v1085 = vunpack.c.l.b16 %v628
    %v1086 = vunpack.c.h.b16 %v628
    %v1087 = vunpack.c.l.b16 %v629
    %v1088 = vunpack.c.h.b16 %v629
    %v1089 = vunpack.c.l.b16 %v630
    %v1090 = vunpack.c.h.b16 %v630
    %v1091 = vunpack.c.l.b16 %v631
    %v1092 = vunpack.c.h.b16 %v631
    %v1093 = vunpack.c.l.b16 %v632
    %v1094 = vunpack.c.h.b16 %v632
    %v1095 = vpack.c.b16 %v1035, %v1031
    %v1096 = vpack.c.b16 %v1036, %v1032
    %v1097 = vpack.c.b16 %v1037, %v1033
    %v1098 = vpack.c.b16 %v1038, %v1034
    %v1099 = vpack.c.b16 %v1043, %v1039
    %v1100 = vpack.c.b16 %v1044, %v1040
    %v1101 = vpack.c.b16 %v1045, %v1041
    %v1102 = vpack.c.b16 %v1046, %v1042
    %v1103 = vpack.c.b16 %v1051, %v1047
    %v1104 = vpack.c.b16 %v1052, %v1048
    %v1105 = vpack.c.b16 %v1053, %v1049
    %v1106 = vpack.c.b16 %v1054, %v1050
    %v1107 = vpack.c.b16 %v1059, %v1055
    %v1108 = vpack.c.b16 %v1060, %v1056
    %v1109 = vpack.c.b16 %v1061, %v1057
    %v1110 = vpack.c.b16 %v1062, %v1058
    %v1111 = vpack.c.b16 %v1067, %v1063
    %v1112 = vpack.c.b16 %v1068, %v1064
    %v1113 = vpack.c.b16 %v1069, %v1065
    %v1114 = vpack.c.b16 %v1070, %v1066
    %v1115 = vpack.c.b16 %v1075, %v1071
    %v1116 = vpack.c.b16 %v1076, %v1072
    %v1117 = vpack.c.b16 %v1077, %v1073
    %v1118 = vpack.c.b16 %v1078, %v1074
    %v1119 = vpack.c.b16 %v1083, %v1079
    %v1120 = vpack.c.b16 %v1084, %v1080
    %v1121 = vpack.c.b16 %v1085, %v1081
    %v1122 = vpack.c.b16 %v1086, %v1082
    %v1123 = vpack.c.b16 %v1091, %v1087
    %v1124 = vpack.c.b16 %v1092, %v1088
    %v1125 = vpack.c.b16 %v1093, %v1089
    %v1126 = vpack.c.b16 %v1094, %v1090
    %1159 = vmatprep.subr.bf16.mxu0 %v1124
    %1160 = vmatpush1.bf16.msra.mxu0 %v1123
    %1161 = vmatprep.subr.bf16.mxu0 %v1120
    %1162 = vmatpush1.bf16.msra.mxu0 %v1119
    %1163 = vmatprep.subr.bf16.mxu0 %v1116
    %1164 = vmatpush1.bf16.msra.mxu0 %v1115
    %1165 = vmatprep.subr.bf16.mxu0 %v1112
    %1166 = vmatpush1.bf16.msra.mxu0 %v1111
    %1167 = vmatprep.subr.bf16.mxu0 %v1108
    %1168 = vmatpush1.bf16.msra.mxu0 %v1107
    %1169 = vmatprep.subr.bf16.mxu0 %v1104
    %1170 = vmatpush1.bf16.msra.mxu0 %v1103
    %1171 = vmatprep.subr.bf16.mxu0 %v1100
    %1172 = vmatpush1.bf16.msra.mxu0 %v1099
    %1173 = vmatprep.subr.bf16.mxu0 %v1096
    %1174 = vmatpush1.bf16.msra.mxu0 %v1095
    %1175 = vmatprep.subr.bf16.mxu0 0
    %1176 = vmatpush2.bf16.msra.mxu0 0
    %1177 = vmatprep.subr.bf16.mxu0 0
    %1178 = vmatpush2.bf16.msra.mxu0 0
    %1179 = vmatprep.subr.bf16.mxu0 0
    %1180 = vmatpush2.bf16.msra.mxu0 0
    %1181 = vmatprep.subr.bf16.mxu0 0
    %1182 = vmatpush2.bf16.msra.mxu0 0
    %1183 = vmatprep.subr.bf16.mxu0 0
    %1184 = vmatpush2.bf16.msra.mxu0 0
    %1185 = vmatprep.subr.bf16.mxu0 0
    %1186 = vmatpush2.bf16.msra.mxu0 0
    %1187 = vmatprep.subr.bf16.mxu0 0
    %1188 = vmatpush2.bf16.msra.mxu0 0
    %1189 = vmatprep.subr.bf16.mxu0 0
    %1190 = vmatpush2.bf16.msra.mxu0 0
    %1191 = vmatprep.mubr.bf16.mxu0 0
    %1192 = vmatmul.mubr.bf16.gmra.mxu0 %v716
    %v1193 = vpop.f32.mrf.mxu0
    %v1194 = vadd.f32 0.0, %v1193
    %v1195 = vpop.f32.mrf.mxu0
    %v1196 = vadd.f32 0.0, %v1195
    %v1197 = vpop.f32.mrf.mxu0
    %v1198 = vpop.f32.mrf.mxu0
    %1199 = vdwg.mxu0
    %1200 = vmatprep.subr.bf16.mxu0 %v1126
    %1201 = vmatpush1.bf16.msra.mxu0 %v1125
    %1202 = vmatprep.subr.bf16.mxu0 %v1122
    %1203 = vmatpush1.bf16.msra.mxu0 %v1121
    %1204 = vmatprep.subr.bf16.mxu0 %v1118
    %1205 = vmatpush1.bf16.msra.mxu0 %v1117
    %1206 = vmatprep.subr.bf16.mxu0 %v1114
    %1207 = vmatpush1.bf16.msra.mxu0 %v1113
    %1208 = vmatprep.subr.bf16.mxu0 %v1110
    %1209 = vmatpush1.bf16.msra.mxu0 %v1109
    %1210 = vmatprep.subr.bf16.mxu0 %v1106
    %1211 = vmatpush1.bf16.msra.mxu0 %v1105
    %1212 = vmatprep.subr.bf16.mxu0 %v1102
    %1213 = vmatpush1.bf16.msra.mxu0 %v1101
    %1214 = vmatprep.subr.bf16.mxu0 %v1098
    %1215 = vmatpush1.bf16.msra.mxu0 %v1097
    %1216 = vmatprep.subr.bf16.mxu0 0
    %1217 = vmatpush2.bf16.msra.mxu0 0
    %1218 = vmatprep.subr.bf16.mxu0 0
    %1219 = vmatpush2.bf16.msra.mxu0 0
    %1220 = vmatprep.subr.bf16.mxu0 0
    %1221 = vmatpush2.bf16.msra.mxu0 0
    %1222 = vmatprep.subr.bf16.mxu0 0
    %1223 = vmatpush2.bf16.msra.mxu0 0
    %1224 = vmatprep.subr.bf16.mxu0 0
    %1225 = vmatpush2.bf16.msra.mxu0 0
    %1226 = vmatprep.subr.bf16.mxu0 0
    %1227 = vmatpush2.bf16.msra.mxu0 0
    %1228 = vmatprep.subr.bf16.mxu0 0
    %1229 = vmatpush2.bf16.msra.mxu0 0
    %1230 = vmatprep.subr.bf16.mxu0 0
    %1231 = vmatpush2.bf16.msra.mxu0 0
    %1232 = vmatprep.mubr.bf16.mxu0 0
    %1233 = vmatmul.mubr.bf16.gmra.mxu0 %v716
    %v1234 = vpop.f32.mrf.mxu0
    %v1235 = vadd.f32 0.0, %v1234
    %v1236 = vpop.f32.mrf.mxu0
    %v1237 = vadd.f32 0.0, %v1236
    %v1238 = vpop.f32.mrf.mxu0
    %v1239 = vpop.f32.mrf.mxu0
    %1240 = vdwg.mxu0
    %v1241 = vadd.f32 %v554, %v1194
    %v1242 = vadd.f32 %v556, %v1196
    %v1243 = vadd.f32 %v595, %v1235
    %v1244 = vadd.f32 %v597, %v1237
    %v1245 = vmul.f32 %v1241, 0.5
    %v1246 = vtanh.pop %v1245
    %v1247 = vadd.f32 %v1246, 1.0
    %v1248 = vmul.f32 %v1247, 0.5
    %v1249 = vmul.f32 %v1242, 0.5
    %v1250 = vtanh.pop %v1249
    %v1251 = vadd.f32 %v1250, 1.0
    %v1252 = vmul.f32 %v1251, 0.5
    %v1253 = vtanh.pop %v1243
    %v1254 = vmul.f32 %v1244, 0.5
    %v1255 = vtanh.pop %v1254
    %v1256 = vadd.f32 %v1255, 1.0
    %v1257 = vmul.f32 %v1256, 0.5
    %v1258 = vmul.f32 %v1252, %v713
    %v1259 = vmul.f32 %v1248, %v1253
    %v1260 = vadd.f32 %v1258, %v1259
    %v1261 = vtanh.pop %v1260
    %v1262 = vmul.f32 %v1257, %v1261
    %v1263 = vpack.c.bf16 %v1262, %v1262
    %v1296 = vunpack.c.l.b16 %v665
    %v1297 = vunpack.c.h.b16 %v665
    %v1298 = vunpack.c.l.b16 %v666
    %v1299 = vunpack.c.h.b16 %v666
    %v1300 = vunpack.c.l.b16 %v667
    %v1301 = vunpack.c.h.b16 %v667
    %v1302 = vunpack.c.l.b16 %v668
    %v1303 = vunpack.c.h.b16 %v668
    %v1304 = vunpack.c.l.b16 %v669
    %v1305 = vunpack.c.h.b16 %v669
    %v1306 = vunpack.c.l.b16 %v670
    %v1307 = vunpack.c.h.b16 %v670
    %v1308 = vunpack.c.l.b16 %v671
    %v1309 = vunpack.c.h.b16 %v671
    %v1310 = vunpack.c.l.b16 %v672
    %v1311 = vunpack.c.h.b16 %v672
    %v1312 = vunpack.c.l.b16 %v673
    %v1313 = vunpack.c.h.b16 %v673
    %v1314 = vunpack.c.l.b16 %v674
    %v1315 = vunpack.c.h.b16 %v674
    %v1316 = vunpack.c.l.b16 %v675
    %v1317 = vunpack.c.h.b16 %v675
    %v1318 = vunpack.c.l.b16 %v676
    %v1319 = vunpack.c.h.b16 %v676
    %v1320 = vunpack.c.l.b16 %v677
    %v1321 = vunpack.c.h.b16 %v677
    %v1322 = vunpack.c.l.b16 %v678
    %v1323 = vunpack.c.h.b16 %v678
    %v1324 = vunpack.c.l.b16 %v679
    %v1325 = vunpack.c.h.b16 %v679
    %v1326 = vunpack.c.l.b16 %v680
    %v1327 = vunpack.c.h.b16 %v680
    %v1328 = vunpack.c.l.b16 %v681
    %v1329 = vunpack.c.h.b16 %v681
    %v1330 = vunpack.c.l.b16 %v682
    %v1331 = vunpack.c.h.b16 %v682
    %v1332 = vunpack.c.l.b16 %v683
    %v1333 = vunpack.c.h.b16 %v683
    %v1334 = vunpack.c.l.b16 %v684
    %v1335 = vunpack.c.h.b16 %v684
    %v1336 = vunpack.c.l.b16 %v685
    %v1337 = vunpack.c.h.b16 %v685
    %v1338 = vunpack.c.l.b16 %v686
    %v1339 = vunpack.c.h.b16 %v686
    %v1340 = vunpack.c.l.b16 %v687
    %v1341 = vunpack.c.h.b16 %v687
    %v1342 = vunpack.c.l.b16 %v688
    %v1343 = vunpack.c.h.b16 %v688
    %v1344 = vunpack.c.l.b16 %v689
    %v1345 = vunpack.c.h.b16 %v689
    %v1346 = vunpack.c.l.b16 %v690
    %v1347 = vunpack.c.h.b16 %v690
    %v1348 = vunpack.c.l.b16 %v691
    %v1349 = vunpack.c.h.b16 %v691
    %v1350 = vunpack.c.l.b16 %v692
    %v1351 = vunpack.c.h.b16 %v692
    %v1352 = vunpack.c.l.b16 %v693
    %v1353 = vunpack.c.h.b16 %v693
    %v1354 = vunpack.c.l.b16 %v694
    %v1355 = vunpack.c.h.b16 %v694
    %v1356 = vunpack.c.l.b16 %v695
    %v1357 = vunpack.c.h.b16 %v695
    %v1358 = vunpack.c.l.b16 %v696
    %v1359 = vunpack.c.h.b16 %v696
    %v1360 = vpack.c.b16 %v1300, %v1296
    %v1361 = vpack.c.b16 %v1301, %v1297
    %v1362 = vpack.c.b16 %v1302, %v1298
    %v1363 = vpack.c.b16 %v1303, %v1299
    %v1364 = vpack.c.b16 %v1308, %v1304
    %v1365 = vpack.c.b16 %v1309, %v1305
    %v1366 = vpack.c.b16 %v1310, %v1306
    %v1367 = vpack.c.b16 %v1311, %v1307
    %v1368 = vpack.c.b16 %v1316, %v1312
    %v1369 = vpack.c.b16 %v1317, %v1313
    %v1370 = vpack.c.b16 %v1318, %v1314
    %v1371 = vpack.c.b16 %v1319, %v1315
    %v1372 = vpack.c.b16 %v1324, %v1320
    %v1373 = vpack.c.b16 %v1325, %v1321
    %v1374 = vpack.c.b16 %v1326, %v1322
    %v1375 = vpack.c.b16 %v1327, %v1323
    %v1376 = vpack.c.b16 %v1332, %v1328
    %v1377 = vpack.c.b16 %v1333, %v1329
    %v1378 = vpack.c.b16 %v1334, %v1330
    %v1379 = vpack.c.b16 %v1335, %v1331
    %v1380 = vpack.c.b16 %v1340, %v1336
    %v1381 = vpack.c.b16 %v1341, %v1337
    %v1382 = vpack.c.b16 %v1342, %v1338
    %v1383 = vpack.c.b16 %v1343, %v1339
    %v1384 = vpack.c.b16 %v1348, %v1344
    %v1385 = vpack.c.b16 %v1349, %v1345
    %v1386 = vpack.c.b16 %v1350, %v1346
    %v1387 = vpack.c.b16 %v1351, %v1347
    %v1388 = vpack.c.b16 %v1356, %v1352
    %v1389 = vpack.c.b16 %v1357, %v1353
    %v1390 = vpack.c.b16 %v1358, %v1354
    %v1391 = vpack.c.b16 %v1359, %v1355
    %1424 = vmatprep.subr.bf16.mxu0 %v863
    %1425 = vmatpush1.bf16.msra.mxu0 %v862
    %1426 = vmatprep.subr.bf16.mxu0 %v859
    %1427 = vmatpush1.bf16.msra.mxu0 %v858
    %1428 = vmatprep.subr.bf16.mxu0 %v855
    %1429 = vmatpush1.bf16.msra.mxu0 %v854
    %1430 = vmatprep.subr.bf16.mxu0 %v851
    %1431 = vmatpush1.bf16.msra.mxu0 %v850
    %1432 = vmatprep.subr.bf16.mxu0 %v847
    %1433 = vmatpush1.bf16.msra.mxu0 %v846
    %1434 = vmatprep.subr.bf16.mxu0 %v843
    %1435 = vmatpush1.bf16.msra.mxu0 %v842
    %1436 = vmatprep.subr.bf16.mxu0 %v839
    %1437 = vmatpush1.bf16.msra.mxu0 %v838
    %1438 = vmatprep.subr.bf16.mxu0 %v835
    %1439 = vmatpush1.bf16.msra.mxu0 %v834
    %1440 = vmatprep.subr.bf16.mxu0 %v1389
    %1441 = vmatpush2.bf16.msra.mxu0 %v1388
    %1442 = vmatprep.subr.bf16.mxu0 %v1385
    %1443 = vmatpush2.bf16.msra.mxu0 %v1384
    %1444 = vmatprep.subr.bf16.mxu0 %v1381
    %1445 = vmatpush2.bf16.msra.mxu0 %v1380
    %1446 = vmatprep.subr.bf16.mxu0 %v1377
    %1447 = vmatpush2.bf16.msra.mxu0 %v1376
    %1448 = vmatprep.subr.bf16.mxu0 %v1373
    %1449 = vmatpush2.bf16.msra.mxu0 %v1372
    %1450 = vmatprep.subr.bf16.mxu0 %v1369
    %1451 = vmatpush2.bf16.msra.mxu0 %v1368
    %1452 = vmatprep.subr.bf16.mxu0 %v1365
    %1453 = vmatpush2.bf16.msra.mxu0 %v1364
    %1454 = vmatprep.subr.bf16.mxu0 %v1361
    %1455 = vmatpush2.bf16.msra.mxu0 %v1360
    %1456 = vmatprep.mubr.bf16.mxu0 %v998
    %1457 = vmatmul.mubr.bf16.gmra.mxu0 %v1263
    %v1458 = vpop.f32.mrf.mxu0
    %v1459 = vadd.f32 %v721, %v1458
    %v1460 = vpop.f32.mrf.mxu0
    %v1461 = vadd.f32 %v725, %v1460
    %v1462 = vpop.f32.mrf.mxu0
    %v1463 = vpop.f32.mrf.mxu0
    %1464 = vdwg.mxu0
    %1465 = vmatprep.subr.bf16.mxu0 %v865
    %1466 = vmatpush1.bf16.msra.mxu0 %v864
    %1467 = vmatprep.subr.bf16.mxu0 %v861
    %1468 = vmatpush1.bf16.msra.mxu0 %v860
    %1469 = vmatprep.subr.bf16.mxu0 %v857
    %1470 = vmatpush1.bf16.msra.mxu0 %v856
    %1471 = vmatprep.subr.bf16.mxu0 %v853
    %1472 = vmatpush1.bf16.msra.mxu0 %v852
    %1473 = vmatprep.subr.bf16.mxu0 %v849
    %1474 = vmatpush1.bf16.msra.mxu0 %v848
    %1475 = vmatprep.subr.bf16.mxu0 %v845
    %1476 = vmatpush1.bf16.msra.mxu0 %v844
    %1477 = vmatprep.subr.bf16.mxu0 %v841
    %1478 = vmatpush1.bf16.msra.mxu0 %v840
    %1479 = vmatprep.subr.bf16.mxu0 %v837
    %1480 = vmatpush1.bf16.msra.mxu0 %v836
    %1481 = vmatprep.subr.bf16.mxu0 %v1391
    %1482 = vmatpush2.bf16.msra.mxu0 %v1390
    %1483 = vmatprep.subr.bf16.mxu0 %v1387
    %1484 = vmatpush2.bf16.msra.mxu0 %v1386
    %1485 = vmatprep.subr.bf16.mxu0 %v1383
    %1486 = vmatpush2.bf16.msra.mxu0 %v1382
    %1487 = vmatprep.subr.bf16.mxu0 %v1379
    %1488 = vmatpush2.bf16.msra.mxu0 %v1378
    %1489 = vmatprep.subr.bf16.mxu0 %v1375
    %1490 = vmatpush2.bf16.msra.mxu0 %v1374
    %1491 = vmatprep.subr.bf16.mxu0 %v1371
    %1492 = vmatpush2.bf16.msra.mxu0 %v1370
    %1493 = vmatprep.subr.bf16.mxu0 %v1367
    %1494 = vmatpush2.bf16.msra.mxu0 %v1366
    %1495 = vmatprep.subr.bf16.mxu0 %v1363
    %1496 = vmatpush2.bf16.msra.mxu0 %v1362
    %1497 = vmatprep.mubr.bf16.mxu0 %v998
    %1498 = vmatmul.mubr.bf16.gmra.mxu0 %v1263
    %v1499 = vpop.f32.mrf.mxu0
    %v1500 = vadd.f32 %v729, %v1499
    %v1501 = vpop.f32.mrf.mxu0
    %v1502 = vadd.f32 %v733, %v1501
    %v1503 = vpop.f32.mrf.mxu0
    %v1504 = vpop.f32.mrf.mxu0
    %1505 = vdwg.mxu0
    %v1506 = vmul.f32 %v1459, 0.5
    %v1507 = vtanh.pop %v1506
    %v1508 = vadd.f32 %v1507, 1.0
    %v1509 = vmul.f32 %v1508, 0.5
    %v1510 = vmul.f32 %v1461, 0.5
    %v1511 = vtanh.pop %v1510
    %v1512 = vadd.f32 %v1511, 1.0
    %v1513 = vmul.f32 %v1512, 0.5
    %v1514 = vtanh.pop %v1500
    %v1515 = vmul.f32 %v1502, 0.5
    %v1516 = vtanh.pop %v1515
    %v1517 = vadd.f32 %v1516, 1.0
    %v1518 = vmul.f32 %v1517, 0.5
    %v1519 = vmul.f32 %v1513, %v995
    %v1520 = vmul.f32 %v1509, %v1514
    %v1521 = vadd.f32 %v1519, %v1520
    %v1522 = vtanh.pop %v1521
    %v1523 = vmul.f32 %v1518, %v1522
    %v1524 = vpack.c.bf16 %v1523, %v1523
    %1525 = vmatprep.subr.bf16.mxu0 %v1124
    %1526 = vmatpush1.bf16.msra.mxu0 %v1123
    %1527 = vmatprep.subr.bf16.mxu0 %v1120
    %1528 = vmatpush1.bf16.msra.mxu0 %v1119
    %1529 = vmatprep.subr.bf16.mxu0 %v1116
    %1530 = vmatpush1.bf16.msra.mxu0 %v1115
    %1531 = vmatprep.subr.bf16.mxu0 %v1112
    %1532 = vmatpush1.bf16.msra.mxu0 %v1111
    %1533 = vmatprep.subr.bf16.mxu0 %v1108
    %1534 = vmatpush1.bf16.msra.mxu0 %v1107
    %1535 = vmatprep.subr.bf16.mxu0 %v1104
    %1536 = vmatpush1.bf16.msra.mxu0 %v1103
    %1537 = vmatprep.subr.bf16.mxu0 %v1100
    %1538 = vmatpush1.bf16.msra.mxu0 %v1099
    %1539 = vmatprep.subr.bf16.mxu0 %v1096
    %1540 = vmatpush1.bf16.msra.mxu0 %v1095
    %1541 = vmatprep.subr.bf16.mxu0 0
    %1542 = vmatpush2.bf16.msra.mxu0 0
    %1543 = vmatprep.subr.bf16.mxu0 0
    %1544 = vmatpush2.bf16.msra.mxu0 0
    %1545 = vmatprep.subr.bf16.mxu0 0
    %1546 = vmatpush2.bf16.msra.mxu0 0
    %1547 = vmatprep.subr.bf16.mxu0 0
    %1548 = vmatpush2.bf16.msra.mxu0 0
    %1549 = vmatprep.subr.bf16.mxu0 0
    %1550 = vmatpush2.bf16.msra.mxu0 0
    %1551 = vmatprep.subr.bf16.mxu0 0
    %1552 = vmatpush2.bf16.msra.mxu0 0
    %1553 = vmatprep.subr.bf16.mxu0 0
    %1554 = vmatpush2.bf16.msra.mxu0 0
    %1555 = vmatprep.subr.bf16.mxu0 0
    %1556 = vmatpush2.bf16.msra.mxu0 0
    %1557 = vmatprep.mubr.bf16.mxu0 0
    %1558 = vmatmul.mubr.bf16.gmra.mxu0 %v1263
    %v1559 = vpop.f32.mrf.mxu0
    %v1560 = vadd.f32 0.0, %v1559
    %v1561 = vpop.f32.mrf.mxu0
    %v1562 = vadd.f32 0.0, %v1561
    %v1563 = vpop.f32.mrf.mxu0
    %v1564 = vpop.f32.mrf.mxu0
    %1565 = vdwg.mxu0
    %1566 = vmatprep.subr.bf16.mxu0 %v1126
    %1567 = vmatpush1.bf16.msra.mxu0 %v1125
    %1568 = vmatprep.subr.bf16.mxu0 %v1122
    %1569 = vmatpush1.bf16.msra.mxu0 %v1121
    %1570 = vmatprep.subr.bf16.mxu0 %v1118
    %1571 = vmatpush1.bf16.msra.mxu0 %v1117
    %1572 = vmatprep.subr.bf16.mxu0 %v1114
    %1573 = vmatpush1.bf16.msra.mxu0 %v1113
    %1574 = vmatprep.subr.bf16.mxu0 %v1110
    %1575 = vmatpush1.bf16.msra.mxu0 %v1109
    %1576 = vmatprep.subr.bf16.mxu0 %v1106
    %1577 = vmatpush1.bf16.msra.mxu0 %v1105
    %1578 = vmatprep.subr.bf16.mxu0 %v1102
    %1579 = vmatpush1.bf16.msra.mxu0 %v1101
    %1580 = vmatprep.subr.bf16.mxu0 %v1098
    %1581 = vmatpush1.bf16.msra.mxu0 %v1097
    %1582 = vmatprep.subr.bf16.mxu0 0
    %1583 = vmatpush2.bf16.msra.mxu0 0
    %1584 = vmatprep.subr.bf16.mxu0 0
    %1585 = vmatpush2.bf16.msra.mxu0 0
    %1586 = vmatprep.subr.bf16.mxu0 0
    %1587 = vmatpush2.bf16.msra.mxu0 0
    %1588 = vmatprep.subr.bf16.mxu0 0
    %1589 = vmatpush2.bf16.msra.mxu0 0
    %1590 = vmatprep.subr.bf16.mxu0 0
    %1591 = vmatpush2.bf16.msra.mxu0 0
    %1592 = vmatprep.subr.bf16.mxu0 0
    %1593 = vmatpush2.bf16.msra.mxu0 0
    %1594 = vmatprep.subr.bf16.mxu0 0
    %1595 = vmatpush2.bf16.msra.mxu0 0
    %1596 = vmatprep.subr.bf16.mxu0 0
    %1597 = vmatpush2.bf16.msra.mxu0 0
    %1598 = vmatprep.mubr.bf16.mxu0 0
    %1599 = vmatmul.mubr.bf16.gmra.mxu0 %v1263
    %v1600 = vpop.f32.mrf.mxu0
    %v1601 = vadd.f32 0.0, %v1600
    %v1602 = vpop.f32.mrf.mxu0
    %v1603 = vadd.f32 0.0, %v1602
    %v1604 = vpop.f32.mrf.mxu0
    %v1605 = vpop.f32.mrf.mxu0
    %1606 = vdwg.mxu0
    %v1607 = vadd.f32 %v554, %v1560
    %v1608 = vadd.f32 %v556, %v1562
    %v1609 = vadd.f32 %v595, %v1601
    %v1610 = vadd.f32 %v597, %v1603
    %v1611 = vmul.f32 %v1607, 0.5
    %v1612 = vtanh.pop %v1611
    %v1613 = vadd.f32 %v1612, 1.0
    %v1614 = vmul.f32 %v1613, 0.5
    %v1615 = vmul.f32 %v1608, 0.5
    %v1616 = vtanh.pop %v1615
    %v1617 = vadd.f32 %v1616, 1.0
    %v1618 = vmul.f32 %v1617, 0.5
    %v1619 = vtanh.pop %v1609
    %v1620 = vmul.f32 %v1610, 0.5
    %v1621 = vtanh.pop %v1620
    %v1622 = vadd.f32 %v1621, 1.0
    %v1623 = vmul.f32 %v1622, 0.5
    %v1624 = vmul.f32 %v1618, %v1260
    %v1625 = vmul.f32 %v1614, %v1619
    %v1626 = vadd.f32 %v1624, %v1625
    %v1627 = vtanh.pop %v1626
    %v1628 = vmul.f32 %v1623, %v1627
    %v1629 = vpack.c.bf16 %v1628, %v1628
    %1630 = vmatprep.subr.bf16.mxu0 %v863
    %1631 = vmatpush1.bf16.msra.mxu0 %v862
    %1632 = vmatprep.subr.bf16.mxu0 %v859
    %1633 = vmatpush1.bf16.msra.mxu0 %v858
    %1634 = vmatprep.subr.bf16.mxu0 %v855
    %1635 = vmatpush1.bf16.msra.mxu0 %v854
    %1636 = vmatprep.subr.bf16.mxu0 %v851
    %1637 = vmatpush1.bf16.msra.mxu0 %v850
    %1638 = vmatprep.subr.bf16.mxu0 %v847
    %1639 = vmatpush1.bf16.msra.mxu0 %v846
    %1640 = vmatprep.subr.bf16.mxu0 %v843
    %1641 = vmatpush1.bf16.msra.mxu0 %v842
    %1642 = vmatprep.subr.bf16.mxu0 %v839
    %1643 = vmatpush1.bf16.msra.mxu0 %v838
    %1644 = vmatprep.subr.bf16.mxu0 %v835
    %1645 = vmatpush1.bf16.msra.mxu0 %v834
    %1646 = vmatprep.subr.bf16.mxu0 %v1389
    %1647 = vmatpush2.bf16.msra.mxu0 %v1388
    %1648 = vmatprep.subr.bf16.mxu0 %v1385
    %1649 = vmatpush2.bf16.msra.mxu0 %v1384
    %1650 = vmatprep.subr.bf16.mxu0 %v1381
    %1651 = vmatpush2.bf16.msra.mxu0 %v1380
    %1652 = vmatprep.subr.bf16.mxu0 %v1377
    %1653 = vmatpush2.bf16.msra.mxu0 %v1376
    %1654 = vmatprep.subr.bf16.mxu0 %v1373
    %1655 = vmatpush2.bf16.msra.mxu0 %v1372
    %1656 = vmatprep.subr.bf16.mxu0 %v1369
    %1657 = vmatpush2.bf16.msra.mxu0 %v1368
    %1658 = vmatprep.subr.bf16.mxu0 %v1365
    %1659 = vmatpush2.bf16.msra.mxu0 %v1364
    %1660 = vmatprep.subr.bf16.mxu0 %v1361
    %1661 = vmatpush2.bf16.msra.mxu0 %v1360
    %1662 = vmatprep.mubr.bf16.mxu0 %v1524
    %1663 = vmatmul.mubr.bf16.gmra.mxu0 %v1629
    %v1664 = vpop.f32.mrf.mxu0
    %v1665 = vadd.f32 %v721, %v1664
    %v1666 = vpop.f32.mrf.mxu0
    %v1667 = vadd.f32 %v725, %v1666
    %v1668 = vpop.f32.mrf.mxu0
    %v1669 = vpop.f32.mrf.mxu0
    %1670 = vdwg.mxu0
    %1671 = vmatprep.subr.bf16.mxu0 %v865
    %1672 = vmatpush1.bf16.msra.mxu0 %v864
    %1673 = vmatprep.subr.bf16.mxu0 %v861
    %1674 = vmatpush1.bf16.msra.mxu0 %v860
    %1675 = vmatprep.subr.bf16.mxu0 %v857
    %1676 = vmatpush1.bf16.msra.mxu0 %v856
    %1677 = vmatprep.subr.bf16.mxu0 %v853
    %1678 = vmatpush1.bf16.msra.mxu0 %v852
    %1679 = vmatprep.subr.bf16.mxu0 %v849
    %1680 = vmatpush1.bf16.msra.mxu0 %v848
    %1681 = vmatprep.subr.bf16.mxu0 %v845
    %1682 = vmatpush1.bf16.msra.mxu0 %v844
    %1683 = vmatprep.subr.bf16.mxu0 %v841
    %1684 = vmatpush1.bf16.msra.mxu0 %v840
    %1685 = vmatprep.subr.bf16.mxu0 %v837
    %1686 = vmatpush1.bf16.msra.mxu0 %v836
    %1687 = vmatprep.subr.bf16.mxu0 %v1391
    %1688 = vmatpush2.bf16.msra.mxu0 %v1390
    %1689 = vmatprep.subr.bf16.mxu0 %v1387
    %1690 = vmatpush2.bf16.msra.mxu0 %v1386
    %1691 = vmatprep.subr.bf16.mxu0 %v1383
    %1692 = vmatpush2.bf16.msra.mxu0 %v1382
    %1693 = vmatprep.subr.bf16.mxu0 %v1379
    %1694 = vmatpush2.bf16.msra.mxu0 %v1378
    %1695 = vmatprep.subr.bf16.mxu0 %v1375
    %1696 = vmatpush2.bf16.msra.mxu0 %v1374
    %1697 = vmatprep.subr.bf16.mxu0 %v1371
    %1698 = vmatpush2.bf16.msra.mxu0 %v1370
    %1699 = vmatprep.subr.bf16.mxu0 %v1367
    %1700 = vmatpush2.bf16.msra.mxu0 %v1366
    %1701 = vmatprep.subr.bf16.mxu0 %v1363
    %1702 = vmatpush2.bf16.msra.mxu0 %v1362
    %1703 = vmatprep.mubr.bf16.mxu0 %v1524
    %1704 = vmatmul.mubr.bf16.gmra.mxu0 %v1629
    %v1705 = vpop.f32.mrf.mxu0
    %v1706 = vadd.f32 %v729, %v1705
    %v1707 = vpop.f32.mrf.mxu0
    %v1708 = vadd.f32 %v733, %v1707
    %v1709 = vpop.f32.mrf.mxu0
    %v1710 = vpop.f32.mrf.mxu0
    %1711 = vdwg.mxu0
    %v1712 = vmul.f32 %v1665, 0.5
    %v1713 = vtanh.pop %v1712
    %v1714 = vadd.f32 %v1713, 1.0
    %v1715 = vmul.f32 %v1714, 0.5
    %v1716 = vmul.f32 %v1667, 0.5
    %v1717 = vtanh.pop %v1716
    %v1718 = vadd.f32 %v1717, 1.0
    %v1719 = vmul.f32 %v1718, 0.5
    %v1720 = vtanh.pop %v1706
    %v1721 = vmul.f32 %v1708, 0.5
    %v1722 = vtanh.pop %v1721
    %v1723 = vadd.f32 %v1722, 1.0
    %v1724 = vmul.f32 %v1723, 0.5
    %v1725 = vmul.f32 %v1719, %v1521
    %v1726 = vmul.f32 %v1715, %v1720
    %v1727 = vadd.f32 %v1725, %v1726
    %v1728 = vtanh.pop %v1727
    %v1729 = vmul.f32 %v1724, %v1728
    %v1730 = vpack.c.bf16 %v1729, %v1729
    %1731 = vmatprep.subr.bf16.mxu0 %v1124
    %1732 = vmatpush1.bf16.msra.mxu0 %v1123
    %1733 = vmatprep.subr.bf16.mxu0 %v1120
    %1734 = vmatpush1.bf16.msra.mxu0 %v1119
    %1735 = vmatprep.subr.bf16.mxu0 %v1116
    %1736 = vmatpush1.bf16.msra.mxu0 %v1115
    %1737 = vmatprep.subr.bf16.mxu0 %v1112
    %1738 = vmatpush1.bf16.msra.mxu0 %v1111
    %1739 = vmatprep.subr.bf16.mxu0 %v1108
    %1740 = vmatpush1.bf16.msra.mxu0 %v1107
    %1741 = vmatprep.subr.bf16.mxu0 %v1104
    %1742 = vmatpush1.bf16.msra.mxu0 %v1103
    %1743 = vmatprep.subr.bf16.mxu0 %v1100
    %1744 = vmatpush1.bf16.msra.mxu0 %v1099
    %1745 = vmatprep.subr.bf16.mxu0 %v1096
    %1746 = vmatpush1.bf16.msra.mxu0 %v1095
    %1747 = vmatprep.subr.bf16.mxu0 0
    %1748 = vmatpush2.bf16.msra.mxu0 0
    %1749 = vmatprep.subr.bf16.mxu0 0
    %1750 = vmatpush2.bf16.msra.mxu0 0
    %1751 = vmatprep.subr.bf16.mxu0 0
    %1752 = vmatpush2.bf16.msra.mxu0 0
    %1753 = vmatprep.subr.bf16.mxu0 0
    %1754 = vmatpush2.bf16.msra.mxu0 0
    %1755 = vmatprep.subr.bf16.mxu0 0
    %1756 = vmatpush2.bf16.msra.mxu0 0
    %1757 = vmatprep.subr.bf16.mxu0 0
    %1758 = vmatpush2.bf16.msra.mxu0 0
    %1759 = vmatprep.subr.bf16.mxu0 0
    %1760 = vmatpush2.bf16.msra.mxu0 0
    %1761 = vmatprep.subr.bf16.mxu0 0
    %1762 = vmatpush2.bf16.msra.mxu0 0
    %1763 = vmatprep.mubr.bf16.mxu0 0
    %1764 = vmatmul.mubr.bf16.gmra.mxu0 %v1629
    %v1765 = vpop.f32.mrf.mxu0
    %v1766 = vadd.f32 0.0, %v1765
    %v1767 = vpop.f32.mrf.mxu0
    %v1768 = vadd.f32 0.0, %v1767
    %v1769 = vpop.f32.mrf.mxu0
    %v1770 = vpop.f32.mrf.mxu0
    %1771 = vdwg.mxu0
    %1772 = vmatprep.subr.bf16.mxu0 %v1126
    %1773 = vmatpush1.bf16.msra.mxu0 %v1125
    %1774 = vmatprep.subr.bf16.mxu0 %v1122
    %1775 = vmatpush1.bf16.msra.mxu0 %v1121
    %1776 = vmatprep.subr.bf16.mxu0 %v1118
    %1777 = vmatpush1.bf16.msra.mxu0 %v1117
    %1778 = vmatprep.subr.bf16.mxu0 %v1114
    %1779 = vmatpush1.bf16.msra.mxu0 %v1113
    %1780 = vmatprep.subr.bf16.mxu0 %v1110
    %1781 = vmatpush1.bf16.msra.mxu0 %v1109
    %1782 = vmatprep.subr.bf16.mxu0 %v1106
    %1783 = vmatpush1.bf16.msra.mxu0 %v1105
    %1784 = vmatprep.subr.bf16.mxu0 %v1102
    %1785 = vmatpush1.bf16.msra.mxu0 %v1101
    %1786 = vmatprep.subr.bf16.mxu0 %v1098
    %1787 = vmatpush1.bf16.msra.mxu0 %v1097
    %1788 = vmatprep.subr.bf16.mxu0 0
    %1789 = vmatpush2.bf16.msra.mxu0 0
    %1790 = vmatprep.subr.bf16.mxu0 0
    %1791 = vmatpush2.bf16.msra.mxu0 0
    %1792 = vmatprep.subr.bf16.mxu0 0
    %1793 = vmatpush2.bf16.msra.mxu0 0
    %1794 = vmatprep.subr.bf16.mxu0 0
    %1795 = vmatpush2.bf16.msra.mxu0 0
    %1796 = vmatprep.subr.bf16.mxu0 0
    %1797 = vmatpush2.bf16.msra.mxu0 0
    %1798 = vmatprep.subr.bf16.mxu0 0
    %1799 = vmatpush2.bf16.msra.mxu0 0
    %1800 = vmatprep.subr.bf16.mxu0 0
    %1801 = vmatpush2.bf16.msra.mxu0 0
    %1802 = vmatprep.subr.bf16.mxu0 0
    %1803 = vmatpush2.bf16.msra.mxu0 0
    %1804 = vmatprep.mubr.bf16.mxu0 0
    %1805 = vmatmul.mubr.bf16.gmra.mxu0 %v1629
    %v1806 = vpop.f32.mrf.mxu0
    %v1807 = vadd.f32 0.0, %v1806
    %v1808 = vpop.f32.mrf.mxu0
    %v1809 = vadd.f32 0.0, %v1808
    %v1810 = vpop.f32.mrf.mxu0
    %v1811 = vpop.f32.mrf.mxu0
    %1812 = vdwg.mxu0
    %v1813 = vadd.f32 %v554, %v1766
    %v1814 = vadd.f32 %v556, %v1768
    %v1815 = vadd.f32 %v595, %v1807
    %v1816 = vadd.f32 %v597, %v1809
    %v1817 = vmul.f32 %v1813, 0.5
    %v1818 = vtanh.pop %v1817
    %v1819 = vadd.f32 %v1818, 1.0
    %v1820 = vmul.f32 %v1819, 0.5
    %v1821 = vmul.f32 %v1814, 0.5
    %v1822 = vtanh.pop %v1821
    %v1823 = vadd.f32 %v1822, 1.0
    %v1824 = vmul.f32 %v1823, 0.5
    %v1825 = vtanh.pop %v1815
    %v1826 = vmul.f32 %v1816, 0.5
    %v1827 = vtanh.pop %v1826
    %v1828 = vadd.f32 %v1827, 1.0
    %v1829 = vmul.f32 %v1828, 0.5
    %v1830 = vmul.f32 %v1824, %v1626
    %v1831 = vmul.f32 %v1820, %v1825
    %v1832 = vadd.f32 %v1830, %v1831
    %v1833 = vtanh.pop %v1832
    %v1834 = vmul.f32 %v1829, %v1833
    %v1835 = vpack.c.bf16 %v1834, %v1834
    %1836 = vmatprep.subr.bf16.mxu0 %v863
    %1837 = vmatpush1.bf16.msra.mxu0 %v862
    %1838 = vmatprep.subr.bf16.mxu0 %v859
    %1839 = vmatpush1.bf16.msra.mxu0 %v858
    %1840 = vmatprep.subr.bf16.mxu0 %v855
    %1841 = vmatpush1.bf16.msra.mxu0 %v854
    %1842 = vmatprep.subr.bf16.mxu0 %v851
    %1843 = vmatpush1.bf16.msra.mxu0 %v850
    %1844 = vmatprep.subr.bf16.mxu0 %v847
    %1845 = vmatpush1.bf16.msra.mxu0 %v846
    %1846 = vmatprep.subr.bf16.mxu0 %v843
    %1847 = vmatpush1.bf16.msra.mxu0 %v842
    %1848 = vmatprep.subr.bf16.mxu0 %v839
    %1849 = vmatpush1.bf16.msra.mxu0 %v838
    %1850 = vmatprep.subr.bf16.mxu0 %v835
    %1851 = vmatpush1.bf16.msra.mxu0 %v834
    %1852 = vmatprep.subr.bf16.mxu0 %v1389
    %1853 = vmatpush2.bf16.msra.mxu0 %v1388
    %1854 = vmatprep.subr.bf16.mxu0 %v1385
    %1855 = vmatpush2.bf16.msra.mxu0 %v1384
    %1856 = vmatprep.subr.bf16.mxu0 %v1381
    %1857 = vmatpush2.bf16.msra.mxu0 %v1380
    %1858 = vmatprep.subr.bf16.mxu0 %v1377
    %1859 = vmatpush2.bf16.msra.mxu0 %v1376
    %1860 = vmatprep.subr.bf16.mxu0 %v1373
    %1861 = vmatpush2.bf16.msra.mxu0 %v1372
    %1862 = vmatprep.subr.bf16.mxu0 %v1369
    %1863 = vmatpush2.bf16.msra.mxu0 %v1368
    %1864 = vmatprep.subr.bf16.mxu0 %v1365
    %1865 = vmatpush2.bf16.msra.mxu0 %v1364
    %1866 = vmatprep.subr.bf16.mxu0 %v1361
    %1867 = vmatpush2.bf16.msra.mxu0 %v1360
    %1868 = vmatprep.mubr.bf16.mxu0 %v1730
    %1869 = vmatmul.mubr.bf16.gmra.mxu0 %v1835
    %v1870 = vpop.f32.mrf.mxu0
    %v1871 = vadd.f32 %v721, %v1870
    %v1872 = vpop.f32.mrf.mxu0
    %v1873 = vadd.f32 %v725, %v1872
    %v1874 = vpop.f32.mrf.mxu0
    %v1875 = vpop.f32.mrf.mxu0
    %1876 = vdwg.mxu0
    %1877 = vmatprep.subr.bf16.mxu0 %v865
    %1878 = vmatpush1.bf16.msra.mxu0 %v864
    %1879 = vmatprep.subr.bf16.mxu0 %v861
    %1880 = vmatpush1.bf16.msra.mxu0 %v860
    %1881 = vmatprep.subr.bf16.mxu0 %v857
    %1882 = vmatpush1.bf16.msra.mxu0 %v856
    %1883 = vmatprep.subr.bf16.mxu0 %v853
    %1884 = vmatpush1.bf16.msra.mxu0 %v852
    %1885 = vmatprep.subr.bf16.mxu0 %v849
    %1886 = vmatpush1.bf16.msra.mxu0 %v848
    %1887 = vmatprep.subr.bf16.mxu0 %v845
    %1888 = vmatpush1.bf16.msra.mxu0 %v844
    %1889 = vmatprep.subr.bf16.mxu0 %v841
    %1890 = vmatpush1.bf16.msra.mxu0 %v840
    %1891 = vmatprep.subr.bf16.mxu0 %v837
    %1892 = vmatpush1.bf16.msra.mxu0 %v836
    %1893 = vmatprep.subr.bf16.mxu0 %v1391
    %1894 = vmatpush2.bf16.msra.mxu0 %v1390
    %1895 = vmatprep.subr.bf16.mxu0 %v1387
    %1896 = vmatpush2.bf16.msra.mxu0 %v1386
    %1897 = vmatprep.subr.bf16.mxu0 %v1383
    %1898 = vmatpush2.bf16.msra.mxu0 %v1382
    %1899 = vmatprep.subr.bf16.mxu0 %v1379
    %1900 = vmatpush2.bf16.msra.mxu0 %v1378
    %1901 = vmatprep.subr.bf16.mxu0 %v1375
    %1902 = vmatpush2.bf16.msra.mxu0 %v1374
    %1903 = vmatprep.subr.bf16.mxu0 %v1371
    %1904 = vmatpush2.bf16.msra.mxu0 %v1370
    %1905 = vmatprep.subr.bf16.mxu0 %v1367
    %1906 = vmatpush2.bf16.msra.mxu0 %v1366
    %1907 = vmatprep.subr.bf16.mxu0 %v1363
    %1908 = vmatpush2.bf16.msra.mxu0 %v1362
    %1909 = vmatprep.mubr.bf16.mxu0 %v1730
    %1910 = vmatmul.mubr.bf16.gmra.mxu0 %v1835
    %v1911 = vpop.f32.mrf.mxu0
    %v1912 = vadd.f32 %v729, %v1911
    %v1913 = vpop.f32.mrf.mxu0
    %v1914 = vadd.f32 %v733, %v1913
    %v1915 = vpop.f32.mrf.mxu0
    %v1916 = vpop.f32.mrf.mxu0
    %1917 = vdwg.mxu0
    %v1918 = vmul.f32 %v1871, 0.5
    %v1919 = vtanh.pop %v1918
    %v1920 = vadd.f32 %v1919, 1.0
    %v1921 = vmul.f32 %v1920, 0.5
    %v1922 = vmul.f32 %v1873, 0.5
    %v1923 = vtanh.pop %v1922
    %v1924 = vadd.f32 %v1923, 1.0
    %v1925 = vmul.f32 %v1924, 0.5
    %v1926 = vtanh.pop %v1912
    %v1927 = vmul.f32 %v1914, 0.5
    %v1928 = vtanh.pop %v1927
    %v1929 = vadd.f32 %v1928, 1.0
    %v1930 = vmul.f32 %v1929, 0.5
    %v1931 = vmul.f32 %v1925, %v1727
    %v1932 = vmul.f32 %v1921, %v1926
    %v1933 = vadd.f32 %v1931, %v1932
    %v1934 = vtanh.pop %v1933
    %v1935 = vmul.f32 %v1930, %v1934
    %v1936 = vpack.c.bf16 %v1935, %v1935
    %1937 = vmatprep.subr.bf16.mxu0 %v1124
    %1938 = vmatpush1.bf16.msra.mxu0 %v1123
    %1939 = vmatprep.subr.bf16.mxu0 %v1120
    %1940 = vmatpush1.bf16.msra.mxu0 %v1119
    %1941 = vmatprep.subr.bf16.mxu0 %v1116
    %1942 = vmatpush1.bf16.msra.mxu0 %v1115
    %1943 = vmatprep.subr.bf16.mxu0 %v1112
    %1944 = vmatpush1.bf16.msra.mxu0 %v1111
    %1945 = vmatprep.subr.bf16.mxu0 %v1108
    %1946 = vmatpush1.bf16.msra.mxu0 %v1107
    %1947 = vmatprep.subr.bf16.mxu0 %v1104
    %1948 = vmatpush1.bf16.msra.mxu0 %v1103
    %1949 = vmatprep.subr.bf16.mxu0 %v1100
    %1950 = vmatpush1.bf16.msra.mxu0 %v1099
    %1951 = vmatprep.subr.bf16.mxu0 %v1096
    %1952 = vmatpush1.bf16.msra.mxu0 %v1095
    %1953 = vmatprep.subr.bf16.mxu0 0
    %1954 = vmatpush2.bf16.msra.mxu0 0
    %1955 = vmatprep.subr.bf16.mxu0 0
    %1956 = vmatpush2.bf16.msra.mxu0 0
    %1957 = vmatprep.subr.bf16.mxu0 0
    %1958 = vmatpush2.bf16.msra.mxu0 0
    %1959 = vmatprep.subr.bf16.mxu0 0
    %1960 = vmatpush2.bf16.msra.mxu0 0
    %1961 = vmatprep.subr.bf16.mxu0 0
    %1962 = vmatpush2.bf16.msra.mxu0 0
    %1963 = vmatprep.subr.bf16.mxu0 0
    %1964 = vmatpush2.bf16.msra.mxu0 0
    %1965 = vmatprep.subr.bf16.mxu0 0
    %1966 = vmatpush2.bf16.msra.mxu0 0
    %1967 = vmatprep.subr.bf16.mxu0 0
    %1968 = vmatpush2.bf16.msra.mxu0 0
    %1969 = vmatprep.mubr.bf16.mxu0 0
    %1970 = vmatmul.mubr.bf16.gmra.mxu0 %v1835
    %v1971 = vpop.f32.mrf.mxu0
    %v1972 = vadd.f32 0.0, %v1971
    %v1973 = vpop.f32.mrf.mxu0
    %v1974 = vadd.f32 0.0, %v1973
    %v1975 = vpop.f32.mrf.mxu0
    %v1976 = vpop.f32.mrf.mxu0
    %1977 = vdwg.mxu0
    %1978 = vmatprep.subr.bf16.mxu0 %v1126
    %1979 = vmatpush1.bf16.msra.mxu0 %v1125
    %1980 = vmatprep.subr.bf16.mxu0 %v1122
    %1981 = vmatpush1.bf16.msra.mxu0 %v1121
    %1982 = vmatprep.subr.bf16.mxu0 %v1118
    %1983 = vmatpush1.bf16.msra.mxu0 %v1117
    %1984 = vmatprep.subr.bf16.mxu0 %v1114
    %1985 = vmatpush1.bf16.msra.mxu0 %v1113
    %1986 = vmatprep.subr.bf16.mxu0 %v1110
    %1987 = vmatpush1.bf16.msra.mxu0 %v1109
    %1988 = vmatprep.subr.bf16.mxu0 %v1106
    %1989 = vmatpush1.bf16.msra.mxu0 %v1105
    %1990 = vmatprep.subr.bf16.mxu0 %v1102
    %1991 = vmatpush1.bf16.msra.mxu0 %v1101
    %1992 = vmatprep.subr.bf16.mxu0 %v1098
    %1993 = vmatpush1.bf16.msra.mxu0 %v1097
    %1994 = vmatprep.subr.bf16.mxu0 0
    %1995 = vmatpush2.bf16.msra.mxu0 0
    %1996 = vmatprep.subr.bf16.mxu0 0
    %1997 = vmatpush2.bf16.msra.mxu0 0
    %1998 = vmatprep.subr.bf16.mxu0 0
    %1999 = vmatpush2.bf16.msra.mxu0 0
    %2000 = vmatprep.subr.bf16.mxu0 0
    %2001 = vmatpush2.bf16.msra.mxu0 0
    %2002 = vmatprep.subr.bf16.mxu0 0
    %2003 = vmatpush2.bf16.msra.mxu0 0
    %2004 = vmatprep.subr.bf16.mxu0 0
    %2005 = vmatpush2.bf16.msra.mxu0 0
    %2006 = vmatprep.subr.bf16.mxu0 0
    %2007 = vmatpush2.bf16.msra.mxu0 0
    %2008 = vmatprep.subr.bf16.mxu0 0
    %2009 = vmatpush2.bf16.msra.mxu0 0
    %2010 = vmatprep.mubr.bf16.mxu0 0
    %2011 = vmatmul.mubr.bf16.gmra.mxu0 %v1835
    %v2012 = vpop.f32.mrf.mxu0
    %v2013 = vadd.f32 0.0, %v2012
    %v2014 = vpop.f32.mrf.mxu0
    %v2015 = vadd.f32 0.0, %v2014
    %v2016 = vpop.f32.mrf.mxu0
    %v2017 = vpop.f32.mrf.mxu0
    %2018 = vdwg.mxu0
    %v2019 = vadd.f32 %v554, %v1972
    %v2020 = vadd.f32 %v556, %v1974
    %v2021 = vadd.f32 %v595, %v2013
    %v2022 = vadd.f32 %v597, %v2015
    %v2023 = vmul.f32 %v2019, 0.5
    %v2024 = vtanh.pop %v2023
    %v2025 = vadd.f32 %v2024, 1.0
    %v2026 = vmul.f32 %v2025, 0.5
    %v2027 = vmul.f32 %v2020, 0.5
    %v2028 = vtanh.pop %v2027
    %v2029 = vadd.f32 %v2028, 1.0
    %v2030 = vmul.f32 %v2029, 0.5
    %v2031 = vtanh.pop %v2021
    %v2032 = vmul.f32 %v2022, 0.5
    %v2033 = vtanh.pop %v2032
    %v2034 = vadd.f32 %v2033, 1.0
    %v2035 = vmul.f32 %v2034, 0.5
    %v2036 = vmul.f32 %v2030, %v1832
    %v2037 = vmul.f32 %v2026, %v2031
    %v2038 = vadd.f32 %v2036, %v2037
    %v2039 = vtanh.pop %v2038
    %v2040 = vmul.f32 %v2035, %v2039
    %v2041 = vpack.c.bf16 %v2040, %v2040
    %2042 = vmatprep.subr.bf16.mxu0 %v863
    %2043 = vmatpush1.bf16.msra.mxu0 %v862
    %2044 = vmatprep.subr.bf16.mxu0 %v859
    %2045 = vmatpush1.bf16.msra.mxu0 %v858
    %2046 = vmatprep.subr.bf16.mxu0 %v855
    %2047 = vmatpush1.bf16.msra.mxu0 %v854
    %2048 = vmatprep.subr.bf16.mxu0 %v851
    %2049 = vmatpush1.bf16.msra.mxu0 %v850
    %2050 = vmatprep.subr.bf16.mxu0 %v847
    %2051 = vmatpush1.bf16.msra.mxu0 %v846
    %2052 = vmatprep.subr.bf16.mxu0 %v843
    %2053 = vmatpush1.bf16.msra.mxu0 %v842
    %2054 = vmatprep.subr.bf16.mxu0 %v839
    %2055 = vmatpush1.bf16.msra.mxu0 %v838
    %2056 = vmatprep.subr.bf16.mxu0 %v835
    %2057 = vmatpush1.bf16.msra.mxu0 %v834
    %2058 = vmatprep.subr.bf16.mxu0 %v1389
    %2059 = vmatpush2.bf16.msra.mxu0 %v1388
    %2060 = vmatprep.subr.bf16.mxu0 %v1385
    %2061 = vmatpush2.bf16.msra.mxu0 %v1384
    %2062 = vmatprep.subr.bf16.mxu0 %v1381
    %2063 = vmatpush2.bf16.msra.mxu0 %v1380
    %2064 = vmatprep.subr.bf16.mxu0 %v1377
    %2065 = vmatpush2.bf16.msra.mxu0 %v1376
    %2066 = vmatprep.subr.bf16.mxu0 %v1373
    %2067 = vmatpush2.bf16.msra.mxu0 %v1372
    %2068 = vmatprep.subr.bf16.mxu0 %v1369
    %2069 = vmatpush2.bf16.msra.mxu0 %v1368
    %2070 = vmatprep.subr.bf16.mxu0 %v1365
    %2071 = vmatpush2.bf16.msra.mxu0 %v1364
    %2072 = vmatprep.subr.bf16.mxu0 %v1361
    %2073 = vmatpush2.bf16.msra.mxu0 %v1360
    %2074 = vmatprep.mubr.bf16.mxu0 %v1936
    %2075 = vmatmul.mubr.bf16.gmra.mxu0 %v2041
    %v2076 = vpop.f32.mrf.mxu0
    %v2077 = vadd.f32 %v721, %v2076
    %v2078 = vpop.f32.mrf.mxu0
    %v2079 = vadd.f32 %v725, %v2078
    %v2080 = vpop.f32.mrf.mxu0
    %v2081 = vpop.f32.mrf.mxu0
    %2082 = vdwg.mxu0
    %2083 = vmatprep.subr.bf16.mxu0 %v865
    %2084 = vmatpush1.bf16.msra.mxu0 %v864
    %2085 = vmatprep.subr.bf16.mxu0 %v861
    %2086 = vmatpush1.bf16.msra.mxu0 %v860
    %2087 = vmatprep.subr.bf16.mxu0 %v857
    %2088 = vmatpush1.bf16.msra.mxu0 %v856
    %2089 = vmatprep.subr.bf16.mxu0 %v853
    %2090 = vmatpush1.bf16.msra.mxu0 %v852
    %2091 = vmatprep.subr.bf16.mxu0 %v849
    %2092 = vmatpush1.bf16.msra.mxu0 %v848
    %2093 = vmatprep.subr.bf16.mxu0 %v845
    %2094 = vmatpush1.bf16.msra.mxu0 %v844
    %2095 = vmatprep.subr.bf16.mxu0 %v841
    %2096 = vmatpush1.bf16.msra.mxu0 %v840
    %2097 = vmatprep.subr.bf16.mxu0 %v837
    %2098 = vmatpush1.bf16.msra.mxu0 %v836
    %2099 = vmatprep.subr.bf16.mxu0 %v1391
    %2100 = vmatpush2.bf16.msra.mxu0 %v1390
    %2101 = vmatprep.subr.bf16.mxu0 %v1387
    %2102 = vmatpush2.bf16.msra.mxu0 %v1386
    %2103 = vmatprep.subr.bf16.mxu0 %v1383
    %2104 = vmatpush2.bf16.msra.mxu0 %v1382
    %2105 = vmatprep.subr.bf16.mxu0 %v1379
    %2106 = vmatpush2.bf16.msra.mxu0 %v1378
    %2107 = vmatprep.subr.bf16.mxu0 %v1375
    %2108 = vmatpush2.bf16.msra.mxu0 %v1374
    %2109 = vmatprep.subr.bf16.mxu0 %v1371
    %2110 = vmatpush2.bf16.msra.mxu0 %v1370
    %2111 = vmatprep.subr.bf16.mxu0 %v1367
    %2112 = vmatpush2.bf16.msra.mxu0 %v1366
    %2113 = vmatprep.subr.bf16.mxu0 %v1363
    %2114 = vmatpush2.bf16.msra.mxu0 %v1362
    %2115 = vmatprep.mubr.bf16.mxu0 %v1936
    %2116 = vmatmul.mubr.bf16.gmra.mxu0 %v2041
    %v2117 = vpop.f32.mrf.mxu0
    %v2118 = vadd.f32 %v729, %v2117
    %v2119 = vpop.f32.mrf.mxu0
    %v2120 = vadd.f32 %v733, %v2119
    %v2121 = vpop.f32.mrf.mxu0
    %v2122 = vpop.f32.mrf.mxu0
    %2123 = vdwg.mxu0
    %v2124 = vmul.f32 %v2077, 0.5
    %v2125 = vtanh.pop %v2124
    %v2126 = vadd.f32 %v2125, 1.0
    %v2127 = vmul.f32 %v2126, 0.5
    %v2128 = vmul.f32 %v2079, 0.5
    %v2129 = vtanh.pop %v2128
    %v2130 = vadd.f32 %v2129, 1.0
    %v2131 = vmul.f32 %v2130, 0.5
    %v2132 = vtanh.pop %v2118
    %v2133 = vmul.f32 %v2120, 0.5
    %v2134 = vtanh.pop %v2133
    %v2135 = vadd.f32 %v2134, 1.0
    %v2136 = vmul.f32 %v2135, 0.5
    %v2137 = vmul.f32 %v2131, %v1933
    %v2138 = vmul.f32 %v2127, %v2132
    %v2139 = vadd.f32 %v2137, %v2138
    %v2140 = vtanh.pop %v2139
    %v2141 = vmul.f32 %v2136, %v2140
    %v2142 = vpack.c.bf16 %v2141, %v2141
    %2143 = vmatprep.subr.bf16.mxu0 %v1124
    %2144 = vmatpush1.bf16.msra.mxu0 %v1123
    %2145 = vmatprep.subr.bf16.mxu0 %v1120
    %2146 = vmatpush1.bf16.msra.mxu0 %v1119
    %2147 = vmatprep.subr.bf16.mxu0 %v1116
    %2148 = vmatpush1.bf16.msra.mxu0 %v1115
    %2149 = vmatprep.subr.bf16.mxu0 %v1112
    %2150 = vmatpush1.bf16.msra.mxu0 %v1111
    %2151 = vmatprep.subr.bf16.mxu0 %v1108
    %2152 = vmatpush1.bf16.msra.mxu0 %v1107
    %2153 = vmatprep.subr.bf16.mxu0 %v1104
    %2154 = vmatpush1.bf16.msra.mxu0 %v1103
    %2155 = vmatprep.subr.bf16.mxu0 %v1100
    %2156 = vmatpush1.bf16.msra.mxu0 %v1099
    %2157 = vmatprep.subr.bf16.mxu0 %v1096
    %2158 = vmatpush1.bf16.msra.mxu0 %v1095
    %2159 = vmatprep.subr.bf16.mxu0 0
    %2160 = vmatpush2.bf16.msra.mxu0 0
    %2161 = vmatprep.subr.bf16.mxu0 0
    %2162 = vmatpush2.bf16.msra.mxu0 0
    %2163 = vmatprep.subr.bf16.mxu0 0
    %2164 = vmatpush2.bf16.msra.mxu0 0
    %2165 = vmatprep.subr.bf16.mxu0 0
    %2166 = vmatpush2.bf16.msra.mxu0 0
    %2167 = vmatprep.subr.bf16.mxu0 0
    %2168 = vmatpush2.bf16.msra.mxu0 0
    %2169 = vmatprep.subr.bf16.mxu0 0
    %2170 = vmatpush2.bf16.msra.mxu0 0
    %2171 = vmatprep.subr.bf16.mxu0 0
    %2172 = vmatpush2.bf16.msra.mxu0 0
    %2173 = vmatprep.subr.bf16.mxu0 0
    %2174 = vmatpush2.bf16.msra.mxu0 0
    %2175 = vmatprep.mubr.bf16.mxu0 0
    %2176 = vmatmul.mubr.bf16.gmra.mxu0 %v2041
    %v2177 = vpop.f32.mrf.mxu0
    %v2178 = vadd.f32 0.0, %v2177
    %v2179 = vpop.f32.mrf.mxu0
    %v2180 = vadd.f32 0.0, %v2179
    %v2181 = vpop.f32.mrf.mxu0
    %v2182 = vpop.f32.mrf.mxu0
    %2183 = vdwg.mxu0
    %2184 = vmatprep.subr.bf16.mxu0 %v1126
    %2185 = vmatpush1.bf16.msra.mxu0 %v1125
    %2186 = vmatprep.subr.bf16.mxu0 %v1122
    %2187 = vmatpush1.bf16.msra.mxu0 %v1121
    %2188 = vmatprep.subr.bf16.mxu0 %v1118
    %2189 = vmatpush1.bf16.msra.mxu0 %v1117
    %2190 = vmatprep.subr.bf16.mxu0 %v1114
    %2191 = vmatpush1.bf16.msra.mxu0 %v1113
    %2192 = vmatprep.subr.bf16.mxu0 %v1110
    %2193 = vmatpush1.bf16.msra.mxu0 %v1109
    %2194 = vmatprep.subr.bf16.mxu0 %v1106
    %2195 = vmatpush1.bf16.msra.mxu0 %v1105
    %2196 = vmatprep.subr.bf16.mxu0 %v1102
    %2197 = vmatpush1.bf16.msra.mxu0 %v1101
    %2198 = vmatprep.subr.bf16.mxu0 %v1098
    %2199 = vmatpush1.bf16.msra.mxu0 %v1097
    %2200 = vmatprep.subr.bf16.mxu0 0
    %2201 = vmatpush2.bf16.msra.mxu0 0
    %2202 = vmatprep.subr.bf16.mxu0 0
    %2203 = vmatpush2.bf16.msra.mxu0 0
    %2204 = vmatprep.subr.bf16.mxu0 0
    %2205 = vmatpush2.bf16.msra.mxu0 0
    %2206 = vmatprep.subr.bf16.mxu0 0
    %2207 = vmatpush2.bf16.msra.mxu0 0
    %2208 = vmatprep.subr.bf16.mxu0 0
    %2209 = vmatpush2.bf16.msra.mxu0 0
    %2210 = vmatprep.subr.bf16.mxu0 0
    %2211 = vmatpush2.bf16.msra.mxu0 0
    %2212 = vmatprep.subr.bf16.mxu0 0
    %2213 = vmatpush2.bf16.msra.mxu0 0
    %2214 = vmatprep.subr.bf16.mxu0 0
    %2215 = vmatpush2.bf16.msra.mxu0 0
    %2216 = vmatprep.mubr.bf16.mxu0 0
    %2217 = vmatmul.mubr.bf16.gmra.mxu0 %v2041
    %v2218 = vpop.f32.mrf.mxu0
    %v2219 = vadd.f32 0.0, %v2218
    %v2220 = vpop.f32.mrf.mxu0
    %v2221 = vadd.f32 0.0, %v2220
    %v2222 = vpop.f32.mrf.mxu0
    %v2223 = vpop.f32.mrf.mxu0
    %2224 = vdwg.mxu0
    %v2225 = vadd.f32 %v554, %v2178
    %v2226 = vadd.f32 %v556, %v2180
    %v2227 = vadd.f32 %v595, %v2219
    %v2228 = vadd.f32 %v597, %v2221
    %v2229 = vmul.f32 %v2225, 0.5
    %v2230 = vtanh.pop %v2229
    %v2231 = vadd.f32 %v2230, 1.0
    %v2232 = vmul.f32 %v2231, 0.5
    %v2233 = vmul.f32 %v2226, 0.5
    %v2234 = vtanh.pop %v2233
    %v2235 = vadd.f32 %v2234, 1.0
    %v2236 = vmul.f32 %v2235, 0.5
    %v2237 = vtanh.pop %v2227
    %v2238 = vmul.f32 %v2228, 0.5
    %v2239 = vtanh.pop %v2238
    %v2240 = vadd.f32 %v2239, 1.0
    %v2241 = vmul.f32 %v2240, 0.5
    %v2242 = vmul.f32 %v2236, %v2038
    %v2243 = vmul.f32 %v2232, %v2237
    %v2244 = vadd.f32 %v2242, %v2243
    %v2245 = vtanh.pop %v2244
    %v2246 = vmul.f32 %v2241, %v2245
    %v2247 = vpack.c.bf16 %v2246, %v2246
    %2248 = vmatprep.subr.bf16.mxu0 %v863
    %2249 = vmatpush1.bf16.msra.mxu0 %v862
    %2250 = vmatprep.subr.bf16.mxu0 %v859
    %2251 = vmatpush1.bf16.msra.mxu0 %v858
    %2252 = vmatprep.subr.bf16.mxu0 %v855
    %2253 = vmatpush1.bf16.msra.mxu0 %v854
    %2254 = vmatprep.subr.bf16.mxu0 %v851
    %2255 = vmatpush1.bf16.msra.mxu0 %v850
    %2256 = vmatprep.subr.bf16.mxu0 %v847
    %2257 = vmatpush1.bf16.msra.mxu0 %v846
    %2258 = vmatprep.subr.bf16.mxu0 %v843
    %2259 = vmatpush1.bf16.msra.mxu0 %v842
    %2260 = vmatprep.subr.bf16.mxu0 %v839
    %2261 = vmatpush1.bf16.msra.mxu0 %v838
    %2262 = vmatprep.subr.bf16.mxu0 %v835
    %2263 = vmatpush1.bf16.msra.mxu0 %v834
    %2264 = vmatprep.subr.bf16.mxu0 %v1389
    %2265 = vmatpush2.bf16.msra.mxu0 %v1388
    %2266 = vmatprep.subr.bf16.mxu0 %v1385
    %2267 = vmatpush2.bf16.msra.mxu0 %v1384
    %2268 = vmatprep.subr.bf16.mxu0 %v1381
    %2269 = vmatpush2.bf16.msra.mxu0 %v1380
    %2270 = vmatprep.subr.bf16.mxu0 %v1377
    %2271 = vmatpush2.bf16.msra.mxu0 %v1376
    %2272 = vmatprep.subr.bf16.mxu0 %v1373
    %2273 = vmatpush2.bf16.msra.mxu0 %v1372
    %2274 = vmatprep.subr.bf16.mxu0 %v1369
    %2275 = vmatpush2.bf16.msra.mxu0 %v1368
    %2276 = vmatprep.subr.bf16.mxu0 %v1365
    %2277 = vmatpush2.bf16.msra.mxu0 %v1364
    %2278 = vmatprep.subr.bf16.mxu0 %v1361
    %2279 = vmatpush2.bf16.msra.mxu0 %v1360
    %2280 = vmatprep.mubr.bf16.mxu0 %v2142
    %2281 = vmatmul.mubr.bf16.gmra.mxu0 %v2247
    %v2282 = vpop.f32.mrf.mxu0
    %v2283 = vadd.f32 %v721, %v2282
    %v2284 = vpop.f32.mrf.mxu0
    %v2285 = vadd.f32 %v725, %v2284
    %v2286 = vpop.f32.mrf.mxu0
    %v2287 = vpop.f32.mrf.mxu0
    %2288 = vdwg.mxu0
    %2289 = vmatprep.subr.bf16.mxu0 %v865
    %2290 = vmatpush1.bf16.msra.mxu0 %v864
    %2291 = vmatprep.subr.bf16.mxu0 %v861
    %2292 = vmatpush1.bf16.msra.mxu0 %v860
    %2293 = vmatprep.subr.bf16.mxu0 %v857
    %2294 = vmatpush1.bf16.msra.mxu0 %v856
    %2295 = vmatprep.subr.bf16.mxu0 %v853
    %2296 = vmatpush1.bf16.msra.mxu0 %v852
    %2297 = vmatprep.subr.bf16.mxu0 %v849
    %2298 = vmatpush1.bf16.msra.mxu0 %v848
    %2299 = vmatprep.subr.bf16.mxu0 %v845
    %2300 = vmatpush1.bf16.msra.mxu0 %v844
    %2301 = vmatprep.subr.bf16.mxu0 %v841
    %2302 = vmatpush1.bf16.msra.mxu0 %v840
    %2303 = vmatprep.subr.bf16.mxu0 %v837
    %2304 = vmatpush1.bf16.msra.mxu0 %v836
    %2305 = vmatprep.subr.bf16.mxu0 %v1391
    %2306 = vmatpush2.bf16.msra.mxu0 %v1390
    %2307 = vmatprep.subr.bf16.mxu0 %v1387
    %2308 = vmatpush2.bf16.msra.mxu0 %v1386
    %2309 = vmatprep.subr.bf16.mxu0 %v1383
    %2310 = vmatpush2.bf16.msra.mxu0 %v1382
    %2311 = vmatprep.subr.bf16.mxu0 %v1379
    %2312 = vmatpush2.bf16.msra.mxu0 %v1378
    %2313 = vmatprep.subr.bf16.mxu0 %v1375
    %2314 = vmatpush2.bf16.msra.mxu0 %v1374
    %2315 = vmatprep.subr.bf16.mxu0 %v1371
    %2316 = vmatpush2.bf16.msra.mxu0 %v1370
    %2317 = vmatprep.subr.bf16.mxu0 %v1367
    %2318 = vmatpush2.bf16.msra.mxu0 %v1366
    %2319 = vmatprep.subr.bf16.mxu0 %v1363
    %2320 = vmatpush2.bf16.msra.mxu0 %v1362
    %2321 = vmatprep.mubr.bf16.mxu0 %v2142
    %2322 = vmatmul.mubr.bf16.gmra.mxu0 %v2247
    %v2323 = vpop.f32.mrf.mxu0
    %v2324 = vadd.f32 %v729, %v2323
    %v2325 = vpop.f32.mrf.mxu0
    %v2326 = vadd.f32 %v733, %v2325
    %v2327 = vpop.f32.mrf.mxu0
    %v2328 = vpop.f32.mrf.mxu0
    %2329 = vdwg.mxu0
    %v2330 = vmul.f32 %v2283, 0.5
    %v2331 = vtanh.pop %v2330
    %v2332 = vadd.f32 %v2331, 1.0
    %v2333 = vmul.f32 %v2332, 0.5
    %v2334 = vmul.f32 %v2285, 0.5
    %v2335 = vtanh.pop %v2334
    %v2336 = vadd.f32 %v2335, 1.0
    %v2337 = vmul.f32 %v2336, 0.5
    %v2338 = vtanh.pop %v2324
    %v2339 = vmul.f32 %v2326, 0.5
    %v2340 = vtanh.pop %v2339
    %v2341 = vadd.f32 %v2340, 1.0
    %v2342 = vmul.f32 %v2341, 0.5
    %v2343 = vmul.f32 %v2337, %v2139
    %v2344 = vmul.f32 %v2333, %v2338
    %v2345 = vadd.f32 %v2343, %v2344
    %v2346 = vtanh.pop %v2345
    %v2347 = vmul.f32 %v2342, %v2346
    %v2348 = vpack.c.bf16 %v2347, %v2347
    %v2349 = vld [vmem:[#allocation11] sm:$0xff]
    %v2350 = vld [vmem:[#allocation11 + $0x8] sm:$0xff]
    %v2351 = vld [vmem:[#allocation11 + $0x10] sm:$0xff]
    %v2352 = vld [vmem:[#allocation11 + $0x18] sm:$0xff]
    %v2353 = vld [vmem:[#allocation11 + $0x20] sm:$0xff]
    %v2354 = vld [vmem:[#allocation11 + $0x28] sm:$0xff]
    %v2355 = vld [vmem:[#allocation11 + $0x30] sm:$0xff]
    %v2356 = vld [vmem:[#allocation11 + $0x38] sm:$0xff]
    %v2357 = vld [vmem:[#allocation11 + $0x40] sm:$0xff]
    %v2358 = vld [vmem:[#allocation11 + $0x48] sm:$0xff]
    %v2359 = vld [vmem:[#allocation11 + $0x50] sm:$0xff]
    %v2360 = vld [vmem:[#allocation11 + $0x58] sm:$0xff]
    %v2361 = vld [vmem:[#allocation11 + $0x60] sm:$0xff]
    %v2362 = vld [vmem:[#allocation11 + $0x68] sm:$0xff]
    %v2363 = vld [vmem:[#allocation11 + $0x70] sm:$0xff]
    %v2364 = vld [vmem:[#allocation11 + $0x78] sm:$0xff]
    %v2365 = vld [vmem:[#allocation11 + $0x80] sm:$0xff]
    %v2366 = vld [vmem:[#allocation11 + $0x88] sm:$0xff]
    %v2367 = vld [vmem:[#allocation11 + $0x90] sm:$0xff]
    %v2368 = vld [vmem:[#allocation11 + $0x98] sm:$0xff]
    %v2369 = vld [vmem:[#allocation11 + $0xa0] sm:$0xff]
    %v2370 = vld [vmem:[#allocation11 + $0xa8] sm:$0xff]
    %v2371 = vld [vmem:[#allocation11 + $0xb0] sm:$0xff]
    %v2372 = vld [vmem:[#allocation11 + $0xb8] sm:$0xff]
    %v2373 = vld [vmem:[#allocation11 + $0xc0] sm:$0xff]
    %v2374 = vld [vmem:[#allocation11 + $0xc8] sm:$0xff]
    %v2375 = vld [vmem:[#allocation11 + $0xd0] sm:$0xff]
    %v2376 = vld [vmem:[#allocation11 + $0xd8] sm:$0xff]
    %v2377 = vld [vmem:[#allocation11 + $0xe0] sm:$0xff]
    %v2378 = vld [vmem:[#allocation11 + $0xe8] sm:$0xff]
    %v2379 = vld [vmem:[#allocation11 + $0xf0] sm:$0xff]
    %v2380 = vld [vmem:[#allocation11 + $0xf8] sm:$0xff]
    %v2381 = vld [vmem:[#allocation11 + $0x100] sm:$0xff]
    %v2382 = vld [vmem:[#allocation11 + $0x108] sm:$0xff]
    %v2383 = vld [vmem:[#allocation11 + $0x110] sm:$0xff]
    %v2384 = vld [vmem:[#allocation11 + $0x118] sm:$0xff]
    %v2385 = vld [vmem:[#allocation11 + $0x120] sm:$0xff]
    %v2386 = vld [vmem:[#allocation11 + $0x128] sm:$0xff]
    %v2387 = vld [vmem:[#allocation11 + $0x130] sm:$0xff]
    %v2388 = vld [vmem:[#allocation11 + $0x138] sm:$0xff]
    %v2389 = vld [vmem:[#allocation11 + $0x140] sm:$0xff]
    %v2390 = vld [vmem:[#allocation11 + $0x148] sm:$0xff]
    %v2391 = vld [vmem:[#allocation11 + $0x150] sm:$0xff]
    %v2392 = vld [vmem:[#allocation11 + $0x158] sm:$0xff]
    %v2393 = vld [vmem:[#allocation11 + $0x160] sm:$0xff]
    %v2394 = vld [vmem:[#allocation11 + $0x168] sm:$0xff]
    %v2395 = vld [vmem:[#allocation11 + $0x170] sm:$0xff]
    %v2396 = vld [vmem:[#allocation11 + $0x178] sm:$0xff]
    %v2397 = vld [vmem:[#allocation11 + $0x180] sm:$0xff]
    %v2398 = vld [vmem:[#allocation11 + $0x188] sm:$0xff]
    %v2399 = vld [vmem:[#allocation11 + $0x190] sm:$0xff]
    %v2400 = vld [vmem:[#allocation11 + $0x198] sm:$0xff]
    %v2401 = vld [vmem:[#allocation11 + $0x1a0] sm:$0xff]
    %v2402 = vld [vmem:[#allocation11 + $0x1a8] sm:$0xff]
    %v2403 = vld [vmem:[#allocation11 + $0x1b0] sm:$0xff]
    %v2404 = vld [vmem:[#allocation11 + $0x1b8] sm:$0xff]
    %v2405 = vld [vmem:[#allocation11 + $0x1c0] sm:$0xff]
    %v2406 = vld [vmem:[#allocation11 + $0x1c8] sm:$0xff]
    %v2407 = vld [vmem:[#allocation11 + $0x1d0] sm:$0xff]
    %v2408 = vld [vmem:[#allocation11 + $0x1d8] sm:$0xff]
    %v2409 = vld [vmem:[#allocation11 + $0x1e0] sm:$0xff]
    %v2410 = vld [vmem:[#allocation11 + $0x1e8] sm:$0xff]
    %v2411 = vld [vmem:[#allocation11 + $0x1f0] sm:$0xff]
    %v2412 = vld [vmem:[#allocation11 + $0x1f8] sm:$0xff]
    %v2413 = vld [vmem:[#allocation11 + $0x200] sm:$0xff]
    %v2414 = vld [vmem:[#allocation11 + $0x208] sm:$0xff]
    %v2415 = vld [vmem:[#allocation11 + $0x210] sm:$0xff]
    %v2416 = vld [vmem:[#allocation11 + $0x218] sm:$0xff]
    %v2417 = vld [vmem:[#allocation11 + $0x220] sm:$0xff]
    %v2418 = vld [vmem:[#allocation11 + $0x228] sm:$0xff]
    %v2419 = vld [vmem:[#allocation11 + $0x230] sm:$0xff]
    %v2420 = vld [vmem:[#allocation11 + $0x238] sm:$0xff]
    %v2421 = vld [vmem:[#allocation11 + $0x240] sm:$0xff]
    %v2422 = vld [vmem:[#allocation11 + $0x248] sm:$0xff]
    %v2423 = vld [vmem:[#allocation11 + $0x250] sm:$0xff]
    %v2424 = vld [vmem:[#allocation11 + $0x258] sm:$0xff]
    %v2425 = vld [vmem:[#allocation11 + $0x260] sm:$0xff]
    %v2426 = vld [vmem:[#allocation11 + $0x268] sm:$0xff]
    %v2427 = vld [vmem:[#allocation11 + $0x270] sm:$0xff]
    %v2428 = vld [vmem:[#allocation11 + $0x278] sm:$0xff]
    %v2429 = vld [vmem:[#allocation11 + $0x280] sm:$0xff]
    %v2430 = vld [vmem:[#allocation11 + $0x288] sm:$0xff]
    %v2431 = vld [vmem:[#allocation11 + $0x290] sm:$0xff]
    %v2432 = vld [vmem:[#allocation11 + $0x298] sm:$0xff]
    %v2433 = vld [vmem:[#allocation11 + $0x2a0] sm:$0xff]
    %v2434 = vld [vmem:[#allocation11 + $0x2a8] sm:$0xff]
    %v2435 = vld [vmem:[#allocation11 + $0x2b0] sm:$0xff]
    %v2436 = vld [vmem:[#allocation11 + $0x2b8] sm:$0xff]
    %v2437 = vld [vmem:[#allocation11 + $0x2c0] sm:$0xff]
    %v2438 = vld [vmem:[#allocation11 + $0x2c8] sm:$0xff]
    %v2439 = vld [vmem:[#allocation11 + $0x2d0] sm:$0xff]
    %v2440 = vld [vmem:[#allocation11 + $0x2d8] sm:$0xff]
    %v2441 = vld [vmem:[#allocation11 + $0x2e0] sm:$0xff]
    %v2442 = vld [vmem:[#allocation11 + $0x2e8] sm:$0xff]
    %v2443 = vld [vmem:[#allocation11 + $0x2f0] sm:$0xff]
    %v2444 = vld [vmem:[#allocation11 + $0x2f8] sm:$0xff]
    %v2445 = vld [vmem:[%s7] sm:$0x3]
    %v2447 = vlaneseq
    %v2448 = vshrl.u32 %v2447, 7
    %v2449 = vsub.s32 0, %v2448
    %v2450 = vrot.slane %v2445, %v2449
    %v2451 = vlaneseq
    %v2452 = vshrl.u32 %v2451, 7
    %v2453 = vsub.s32 1, %v2452
    %v2454 = vrot.slane %v2445, %v2453
    %v2553 = vunpack.c.l.b16 %v2349
    %v2554 = vunpack.c.h.b16 %v2349
    %v2555 = vunpack.c.l.b16 %v2350
    %v2556 = vunpack.c.h.b16 %v2350
    %v2557 = vunpack.c.l.b16 %v2351
    %v2558 = vunpack.c.h.b16 %v2351
    %v2559 = vunpack.c.l.b16 %v2352
    %v2560 = vunpack.c.h.b16 %v2352
    %v2561 = vunpack.c.l.b16 %v2353
    %v2562 = vunpack.c.h.b16 %v2353
    %v2563 = vunpack.c.l.b16 %v2354
    %v2564 = vunpack.c.h.b16 %v2354
    %v2565 = vunpack.c.l.b16 %v2355
    %v2566 = vunpack.c.h.b16 %v2355
    %v2567 = vunpack.c.l.b16 %v2356
    %v2568 = vunpack.c.h.b16 %v2356
    %v2569 = vunpack.c.l.b16 %v2357
    %v2570 = vunpack.c.h.b16 %v2357
    %v2571 = vunpack.c.l.b16 %v2358
    %v2572 = vunpack.c.h.b16 %v2358
    %v2573 = vunpack.c.l.b16 %v2359
    %v2574 = vunpack.c.h.b16 %v2359
    %v2575 = vunpack.c.l.b16 %v2360
    %v2576 = vunpack.c.h.b16 %v2360
    %v2577 = vunpack.c.l.b16 %v2361
    %v2578 = vunpack.c.h.b16 %v2361
    %v2579 = vunpack.c.l.b16 %v2362
    %v2580 = vunpack.c.h.b16 %v2362
    %v2581 = vunpack.c.l.b16 %v2363
    %v2582 = vunpack.c.h.b16 %v2363
    %v2583 = vunpack.c.l.b16 %v2364
    %v2584 = vunpack.c.h.b16 %v2364
    %v2585 = vunpack.c.l.b16 %v2365
    %v2586 = vunpack.c.h.b16 %v2365
    %v2587 = vunpack.c.l.b16 %v2366
    %v2588 = vunpack.c.h.b16 %v2366
    %v2589 = vunpack.c.l.b16 %v2367
    %v2590 = vunpack.c.h.b16 %v2367
    %v2591 = vunpack.c.l.b16 %v2368
    %v2592 = vunpack.c.h.b16 %v2368
    %v2593 = vunpack.c.l.b16 %v2369
    %v2594 = vunpack.c.h.b16 %v2369
    %v2595 = vunpack.c.l.b16 %v2370
    %v2596 = vunpack.c.h.b16 %v2370
    %v2597 = vunpack.c.l.b16 %v2371
    %v2598 = vunpack.c.h.b16 %v2371
    %v2599 = vunpack.c.l.b16 %v2372
    %v2600 = vunpack.c.h.b16 %v2372
    %v2601 = vunpack.c.l.b16 %v2373
    %v2602 = vunpack.c.h.b16 %v2373
    %v2603 = vunpack.c.l.b16 %v2374
    %v2604 = vunpack.c.h.b16 %v2374
    %v2605 = vunpack.c.l.b16 %v2375
    %v2606 = vunpack.c.h.b16 %v2375
    %v2607 = vunpack.c.l.b16 %v2376
    %v2608 = vunpack.c.h.b16 %v2376
    %v2609 = vunpack.c.l.b16 %v2377
    %v2610 = vunpack.c.h.b16 %v2377
    %v2611 = vunpack.c.l.b16 %v2378
    %v2612 = vunpack.c.h.b16 %v2378
    %v2613 = vunpack.c.l.b16 %v2379
    %v2614 = vunpack.c.h.b16 %v2379
    %v2615 = vunpack.c.l.b16 %v2380
    %v2616 = vunpack.c.h.b16 %v2380
    %v2617 = vunpack.c.l.b16 %v2381
    %v2618 = vunpack.c.h.b16 %v2381
    %v2619 = vunpack.c.l.b16 %v2382
    %v2620 = vunpack.c.h.b16 %v2382
    %v2621 = vunpack.c.l.b16 %v2383
    %v2622 = vunpack.c.h.b16 %v2383
    %v2623 = vunpack.c.l.b16 %v2384
    %v2624 = vunpack.c.h.b16 %v2384
    %v2625 = vunpack.c.l.b16 %v2385
    %v2626 = vunpack.c.h.b16 %v2385
    %v2627 = vunpack.c.l.b16 %v2386
    %v2628 = vunpack.c.h.b16 %v2386
    %v2629 = vunpack.c.l.b16 %v2387
    %v2630 = vunpack.c.h.b16 %v2387
    %v2631 = vunpack.c.l.b16 %v2388
    %v2632 = vunpack.c.h.b16 %v2388
    %v2633 = vunpack.c.l.b16 %v2389
    %v2634 = vunpack.c.h.b16 %v2389
    %v2635 = vunpack.c.l.b16 %v2390
    %v2636 = vunpack.c.h.b16 %v2390
    %v2637 = vunpack.c.l.b16 %v2391
    %v2638 = vunpack.c.h.b16 %v2391
    %v2639 = vunpack.c.l.b16 %v2392
    %v2640 = vunpack.c.h.b16 %v2392
    %v2641 = vunpack.c.l.b16 %v2393
    %v2642 = vunpack.c.h.b16 %v2393
    %v2643 = vunpack.c.l.b16 %v2394
    %v2644 = vunpack.c.h.b16 %v2394
    %v2645 = vunpack.c.l.b16 %v2395
    %v2646 = vunpack.c.h.b16 %v2395
    %v2647 = vunpack.c.l.b16 %v2396
    %v2648 = vunpack.c.h.b16 %v2396
    %v2649 = vunpack.c.l.b16 %v2397
    %v2650 = vunpack.c.h.b16 %v2397
    %v2651 = vunpack.c.l.b16 %v2398
    %v2652 = vunpack.c.h.b16 %v2398
    %v2653 = vunpack.c.l.b16 %v2399
    %v2654 = vunpack.c.h.b16 %v2399
    %v2655 = vunpack.c.l.b16 %v2400
    %v2656 = vunpack.c.h.b16 %v2400
    %v2657 = vunpack.c.l.b16 %v2401
    %v2658 = vunpack.c.h.b16 %v2401
    %v2659 = vunpack.c.l.b16 %v2402
    %v2660 = vunpack.c.h.b16 %v2402
    %v2661 = vunpack.c.l.b16 %v2403
    %v2662 = vunpack.c.h.b16 %v2403
    %v2663 = vunpack.c.l.b16 %v2404
    %v2664 = vunpack.c.h.b16 %v2404
    %v2665 = vunpack.c.l.b16 %v2405
    %v2666 = vunpack.c.h.b16 %v2405
    %v2667 = vunpack.c.l.b16 %v2406
    %v2668 = vunpack.c.h.b16 %v2406
    %v2669 = vunpack.c.l.b16 %v2407
    %v2670 = vunpack.c.h.b16 %v2407
    %v2671 = vunpack.c.l.b16 %v2408
    %v2672 = vunpack.c.h.b16 %v2408
    %v2673 = vunpack.c.l.b16 %v2409
    %v2674 = vunpack.c.h.b16 %v2409
    %v2675 = vunpack.c.l.b16 %v2410
    %v2676 = vunpack.c.h.b16 %v2410
    %v2677 = vunpack.c.l.b16 %v2411
    %v2678 = vunpack.c.h.b16 %v2411
    %v2679 = vunpack.c.l.b16 %v2412
    %v2680 = vunpack.c.h.b16 %v2412
    %v2681 = vunpack.c.l.b16 %v2413
    %v2682 = vunpack.c.h.b16 %v2413
    %v2683 = vunpack.c.l.b16 %v2414
    %v2684 = vunpack.c.h.b16 %v2414
    %v2685 = vunpack.c.l.b16 %v2415
    %v2686 = vunpack.c.h.b16 %v2415
    %v2687 = vunpack.c.l.b16 %v2416
    %v2688 = vunpack.c.h.b16 %v2416
    %v2689 = vunpack.c.l.b16 %v2417
    %v2690 = vunpack.c.h.b16 %v2417
    %v2691 = vunpack.c.l.b16 %v2418
    %v2692 = vunpack.c.h.b16 %v2418
    %v2693 = vunpack.c.l.b16 %v2419
    %v2694 = vunpack.c.h.b16 %v2419
    %v2695 = vunpack.c.l.b16 %v2420
    %v2696 = vunpack.c.h.b16 %v2420
    %v2697 = vunpack.c.l.b16 %v2421
    %v2698 = vunpack.c.h.b16 %v2421
    %v2699 = vunpack.c.l.b16 %v2422
    %v2700 = vunpack.c.h.b16 %v2422
    %v2701 = vunpack.c.l.b16 %v2423
    %v2702 = vunpack.c.h.b16 %v2423
    %v2703 = vunpack.c.l.b16 %v2424
    %v2704 = vunpack.c.h.b16 %v2424
    %v2705 = vunpack.c.l.b16 %v2425
    %v2706 = vunpack.c.h.b16 %v2425
    %v2707 = vunpack.c.l.b16 %v2426
    %v2708 = vunpack.c.h.b16 %v2426
    %v2709 = vunpack.c.l.b16 %v2427
    %v2710 = vunpack.c.h.b16 %v2427
    %v2711 = vunpack.c.l.b16 %v2428
    %v2712 = vunpack.c.h.b16 %v2428
    %v2713 = vunpack.c.l.b16 %v2429
    %v2714 = vunpack.c.h.b16 %v2429
    %v2715 = vunpack.c.l.b16 %v2430
    %v2716 = vunpack.c.h.b16 %v2430
    %v2717 = vunpack.c.l.b16 %v2431
    %v2718 = vunpack.c.h.b16 %v2431
    %v2719 = vunpack.c.l.b16 %v2432
    %v2720 = vunpack.c.h.b16 %v2432
    %v2721 = vunpack.c.l.b16 %v2433
    %v2722 = vunpack.c.h.b16 %v2433
    %v2723 = vunpack.c.l.b16 %v2434
    %v2724 = vunpack.c.h.b16 %v2434
    %v2725 = vunpack.c.l.b16 %v2435
    %v2726 = vunpack.c.h.b16 %v2435
    %v2727 = vunpack.c.l.b16 %v2436
    %v2728 = vunpack.c.h.b16 %v2436
    %v2729 = vunpack.c.l.b16 %v2437
    %v2730 = vunpack.c.h.b16 %v2437
    %v2731 = vunpack.c.l.b16 %v2438
    %v2732 = vunpack.c.h.b16 %v2438
    %v2733 = vunpack.c.l.b16 %v2439
    %v2734 = vunpack.c.h.b16 %v2439
    %v2735 = vunpack.c.l.b16 %v2440
    %v2736 = vunpack.c.h.b16 %v2440
    %v2737 = vunpack.c.l.b16 %v2441
    %v2738 = vunpack.c.h.b16 %v2441
    %v2739 = vunpack.c.l.b16 %v2442
    %v2740 = vunpack.c.h.b16 %v2442
    %v2741 = vunpack.c.l.b16 %v2443
    %v2742 = vunpack.c.h.b16 %v2443
    %v2743 = vunpack.c.l.b16 %v2444
    %v2744 = vunpack.c.h.b16 %v2444
    %v2745 = vpack.c.b16 %v2555, %v2553
    %v2746 = vpack.c.b16 %v2556, %v2554
    %v2747 = vpack.c.b16 %v2559, %v2557
    %v2748 = vpack.c.b16 %v2560, %v2558
    %v2749 = vpack.c.b16 %v2563, %v2561
    %v2750 = vpack.c.b16 %v2564, %v2562
    %v2751 = vpack.c.b16 %v2567, %v2565
    %v2752 = vpack.c.b16 %v2568, %v2566
    %v2753 = vpack.c.b16 %v2571, %v2569
    %v2754 = vpack.c.b16 %v2572, %v2570
    %v2755 = vpack.c.b16 %v2575, %v2573
    %v2756 = vpack.c.b16 %v2576, %v2574
    %v2757 = vpack.c.b16 %v2579, %v2577
    %v2758 = vpack.c.b16 %v2580, %v2578
    %v2759 = vpack.c.b16 %v2583, %v2581
    %v2760 = vpack.c.b16 %v2584, %v2582
    %v2761 = vpack.c.b16 %v2587, %v2585
    %v2762 = vpack.c.b16 %v2588, %v2586
    %v2763 = vpack.c.b16 %v2591, %v2589
    %v2764 = vpack.c.b16 %v2592, %v2590
    %v2765 = vpack.c.b16 %v2595, %v2593
    %v2766 = vpack.c.b16 %v2596, %v2594
    %v2767 = vpack.c.b16 %v2599, %v2597
    %v2768 = vpack.c.b16 %v2600, %v2598
    %v2769 = vpack.c.b16 %v2603, %v2601
    %v2770 = vpack.c.b16 %v2604, %v2602
    %v2771 = vpack.c.b16 %v2607, %v2605
    %v2772 = vpack.c.b16 %v2608, %v2606
    %v2773 = vpack.c.b16 %v2611, %v2609
    %v2774 = vpack.c.b16 %v2612, %v2610
    %v2775 = vpack.c.b16 %v2615, %v2613
    %v2776 = vpack.c.b16 %v2616, %v2614
    %v2777 = vpack.c.b16 %v2619, %v2617
    %v2778 = vpack.c.b16 %v2620, %v2618
    %v2779 = vpack.c.b16 %v2623, %v2621
    %v2780 = vpack.c.b16 %v2624, %v2622
    %v2781 = vpack.c.b16 %v2627, %v2625
    %v2782 = vpack.c.b16 %v2628, %v2626
    %v2783 = vpack.c.b16 %v2631, %v2629
    %v2784 = vpack.c.b16 %v2632, %v2630
    %v2785 = vpack.c.b16 %v2635, %v2633
    %v2786 = vpack.c.b16 %v2636, %v2634
    %v2787 = vpack.c.b16 %v2639, %v2637
    %v2788 = vpack.c.b16 %v2640, %v2638
    %v2789 = vpack.c.b16 %v2643, %v2641
    %v2790 = vpack.c.b16 %v2644, %v2642
    %v2791 = vpack.c.b16 %v2647, %v2645
    %v2792 = vpack.c.b16 %v2648, %v2646
    %v2793 = vpack.c.b16 %v2651, %v2649
    %v2794 = vpack.c.b16 %v2652, %v2650
    %v2795 = vpack.c.b16 %v2655, %v2653
    %v2796 = vpack.c.b16 %v2656, %v2654
    %v2797 = vpack.c.b16 %v2659, %v2657
    %v2798 = vpack.c.b16 %v2660, %v2658
    %v2799 = vpack.c.b16 %v2663, %v2661
    %v2800 = vpack.c.b16 %v2664, %v2662
    %v2801 = vpack.c.b16 %v2667, %v2665
    %v2802 = vpack.c.b16 %v2668, %v2666
    %v2803 = vpack.c.b16 %v2671, %v2669
    %v2804 = vpack.c.b16 %v2672, %v2670
    %v2805 = vpack.c.b16 %v2675, %v2673
    %v2806 = vpack.c.b16 %v2676, %v2674
    %v2807 = vpack.c.b16 %v2679, %v2677
    %v2808 = vpack.c.b16 %v2680, %v2678
    %v2809 = vpack.c.b16 %v2683, %v2681
    %v2810 = vpack.c.b16 %v2684, %v2682
    %v2811 = vpack.c.b16 %v2687, %v2685
    %v2812 = vpack.c.b16 %v2688, %v2686
    %v2813 = vpack.c.b16 %v2691, %v2689
    %v2814 = vpack.c.b16 %v2692, %v2690
    %v2815 = vpack.c.b16 %v2695, %v2693
    %v2816 = vpack.c.b16 %v2696, %v2694
    %v2817 = vpack.c.b16 %v2699, %v2697
    %v2818 = vpack.c.b16 %v2700, %v2698
    %v2819 = vpack.c.b16 %v2703, %v2701
    %v2820 = vpack.c.b16 %v2704, %v2702
    %v2821 = vpack.c.b16 %v2707, %v2705
    %v2822 = vpack.c.b16 %v2708, %v2706
    %v2823 = vpack.c.b16 %v2711, %v2709
    %v2824 = vpack.c.b16 %v2712, %v2710
    %v2825 = vpack.c.b16 %v2715, %v2713
    %v2826 = vpack.c.b16 %v2716, %v2714
    %v2827 = vpack.c.b16 %v2719, %v2717
    %v2828 = vpack.c.b16 %v2720, %v2718
    %v2829 = vpack.c.b16 %v2723, %v2721
    %v2830 = vpack.c.b16 %v2724, %v2722
    %v2831 = vpack.c.b16 %v2727, %v2725
    %v2832 = vpack.c.b16 %v2728, %v2726
    %v2833 = vpack.c.b16 %v2731, %v2729
    %v2834 = vpack.c.b16 %v2732, %v2730
    %v2835 = vpack.c.b16 %v2735, %v2733
    %v2836 = vpack.c.b16 %v2736, %v2734
    %v2837 = vpack.c.b16 %v2739, %v2737
    %v2838 = vpack.c.b16 %v2740, %v2738
    %v2839 = vpack.c.b16 %v2743, %v2741
    %v2840 = vpack.c.b16 %v2744, %v2742
    %2937 = vmatprep.subr.bf16.mxu0 %v2760
    %2938 = vmatpush1.bf16.msra.mxu0 %v2759
    %2939 = vmatprep.subr.bf16.mxu0 %v2758
    %2940 = vmatpush1.bf16.msra.mxu0 %v2757
    %2941 = vmatprep.subr.bf16.mxu0 %v2756
    %2942 = vmatpush1.bf16.msra.mxu0 %v2755
    %2943 = vmatprep.subr.bf16.mxu0 %v2754
    %2944 = vmatpush1.bf16.msra.mxu0 %v2753
    %2945 = vmatprep.subr.bf16.mxu0 %v2752
    %2946 = vmatpush1.bf16.msra.mxu0 %v2751
    %2947 = vmatprep.subr.bf16.mxu0 %v2750
    %2948 = vmatpush1.bf16.msra.mxu0 %v2749
    %2949 = vmatprep.subr.bf16.mxu0 %v2748
    %2950 = vmatpush1.bf16.msra.mxu0 %v2747
    %2951 = vmatprep.subr.bf16.mxu0 %v2746
    %2952 = vmatpush1.bf16.msra.mxu0 %v2745
    %2953 = vmatprep.subr.bf16.mxu0 %v2776
    %2954 = vmatpush2.bf16.msra.mxu0 %v2775
    %2955 = vmatprep.subr.bf16.mxu0 %v2774
    %2956 = vmatpush2.bf16.msra.mxu0 %v2773
    %2957 = vmatprep.subr.bf16.mxu0 %v2772
    %2958 = vmatpush2.bf16.msra.mxu0 %v2771
    %2959 = vmatprep.subr.bf16.mxu0 %v2770
    %2960 = vmatpush2.bf16.msra.mxu0 %v2769
    %2961 = vmatprep.subr.bf16.mxu0 %v2768
    %2962 = vmatpush2.bf16.msra.mxu0 %v2767
    %2963 = vmatprep.subr.bf16.mxu0 %v2766
    %2964 = vmatpush2.bf16.msra.mxu0 %v2765
    %2965 = vmatprep.subr.bf16.mxu0 %v2764
    %2966 = vmatpush2.bf16.msra.mxu0 %v2763
    %2967 = vmatprep.subr.bf16.mxu0 %v2762
    %2968 = vmatpush2.bf16.msra.mxu0 %v2761
    %2969 = vmatprep.mubr.bf16.mxu0 %v1524
    %2970 = vmatmul.mubr.bf16.gmra.mxu0 %v998
    %v2971 = vpop.f32.mrf.mxu0
    %v2972 = vadd.f32 %v2450, %v2971
    %v2973 = vpop.f32.mrf.mxu0
    %v2974 = vadd.f32 %v2454, %v2973
    %v2975 = vpop.f32.mrf.mxu0
    %v2976 = vpop.f32.mrf.mxu0
    %2977 = vdwg.mxu0
    %2978 = vmatprep.subr.bf16.mxu0 %v2792
    %2979 = vmatpush1.bf16.msra.mxu0 %v2791
    %2980 = vmatprep.subr.bf16.mxu0 %v2790
    %2981 = vmatpush1.bf16.msra.mxu0 %v2789
    %2982 = vmatprep.subr.bf16.mxu0 %v2788
    %2983 = vmatpush1.bf16.msra.mxu0 %v2787
    %2984 = vmatprep.subr.bf16.mxu0 %v2786
    %2985 = vmatpush1.bf16.msra.mxu0 %v2785
    %2986 = vmatprep.subr.bf16.mxu0 %v2784
    %2987 = vmatpush1.bf16.msra.mxu0 %v2783
    %2988 = vmatprep.subr.bf16.mxu0 %v2782
    %2989 = vmatpush1.bf16.msra.mxu0 %v2781
    %2990 = vmatprep.subr.bf16.mxu0 %v2780
    %2991 = vmatpush1.bf16.msra.mxu0 %v2779
    %2992 = vmatprep.subr.bf16.mxu0 %v2778
    %2993 = vmatpush1.bf16.msra.mxu0 %v2777
    %2994 = vmatprep.subr.bf16.mxu0 %v2808
    %2995 = vmatpush2.bf16.msra.mxu0 %v2807
    %2996 = vmatprep.subr.bf16.mxu0 %v2806
    %2997 = vmatpush2.bf16.msra.mxu0 %v2805
    %2998 = vmatprep.subr.bf16.mxu0 %v2804
    %2999 = vmatpush2.bf16.msra.mxu0 %v2803
    %3000 = vmatprep.subr.bf16.mxu0 %v2802
    %3001 = vmatpush2.bf16.msra.mxu0 %v2801
    %3002 = vmatprep.subr.bf16.mxu0 %v2800
    %3003 = vmatpush2.bf16.msra.mxu0 %v2799
    %3004 = vmatprep.subr.bf16.mxu0 %v2798
    %3005 = vmatpush2.bf16.msra.mxu0 %v2797
    %3006 = vmatprep.subr.bf16.mxu0 %v2796
    %3007 = vmatpush2.bf16.msra.mxu0 %v2795
    %3008 = vmatprep.subr.bf16.mxu0 %v2794
    %3009 = vmatpush2.bf16.msra.mxu0 %v2793
    %3010 = vmatprep.mubr.bf16.mxu0 %v1936
    %3011 = vmatmul.mubr.bf16.gmra.mxu0 %v1730
    %v3012 = vpop.f32.mrf.mxu0
    %v3013 = vadd.f32 %v2972, %v3012
    %v3014 = vpop.f32.mrf.mxu0
    %v3015 = vadd.f32 %v2974, %v3014
    %v3016 = vpop.f32.mrf.mxu0
    %v3017 = vpop.f32.mrf.mxu0
    %3018 = vdwg.mxu0
    %3019 = vmatprep.subr.bf16.mxu0 %v2824
    %3020 = vmatpush1.bf16.msra.mxu0 %v2823
    %3021 = vmatprep.subr.bf16.mxu0 %v2822
    %3022 = vmatpush1.bf16.msra.mxu0 %v2821
    %3023 = vmatprep.subr.bf16.mxu0 %v2820
    %3024 = vmatpush1.bf16.msra.mxu0 %v2819
    %3025 = vmatprep.subr.bf16.mxu0 %v2818
    %3026 = vmatpush1.bf16.msra.mxu0 %v2817
    %3027 = vmatprep.subr.bf16.mxu0 %v2816
    %3028 = vmatpush1.bf16.msra.mxu0 %v2815
    %3029 = vmatprep.subr.bf16.mxu0 %v2814
    %3030 = vmatpush1.bf16.msra.mxu0 %v2813
    %3031 = vmatprep.subr.bf16.mxu0 %v2812
    %3032 = vmatpush1.bf16.msra.mxu0 %v2811
    %3033 = vmatprep.subr.bf16.mxu0 %v2810
    %3034 = vmatpush1.bf16.msra.mxu0 %v2809
    %3035 = vmatprep.subr.bf16.mxu0 %v2840
    %3036 = vmatpush2.bf16.msra.mxu0 %v2839
    %3037 = vmatprep.subr.bf16.mxu0 %v2838
    %3038 = vmatpush2.bf16.msra.mxu0 %v2837
    %3039 = vmatprep.subr.bf16.mxu0 %v2836
    %3040 = vmatpush2.bf16.msra.mxu0 %v2835
    %3041 = vmatprep.subr.bf16.mxu0 %v2834
    %3042 = vmatpush2.bf16.msra.mxu0 %v2833
    %3043 = vmatprep.subr.bf16.mxu0 %v2832
    %3044 = vmatpush2.bf16.msra.mxu0 %v2831
    %3045 = vmatprep.subr.bf16.mxu0 %v2830
    %3046 = vmatpush2.bf16.msra.mxu0 %v2829
    %3047 = vmatprep.subr.bf16.mxu0 %v2828
    %3048 = vmatpush2.bf16.msra.mxu0 %v2827
    %3049 = vmatprep.subr.bf16.mxu0 %v2826
    %3050 = vmatpush2.bf16.msra.mxu0 %v2825
    %3051 = vmatprep.mubr.bf16.mxu0 %v2348
    %3052 = vmatmul.mubr.bf16.gmra.mxu0 %v2142
    %v3053 = vpop.f32.mrf.mxu0
    %v3054 = vadd.f32 %v3013, %v3053
    %v3055 = vpop.f32.mrf.mxu0
    %v3056 = vadd.f32 %v3015, %v3055
    %v3057 = vpop.f32.mrf.mxu0
    %v3058 = vpop.f32.mrf.mxu0
    %3059 = vdwg.mxu0
    %3060 = vst [vmem:[#allocation13] sm:$0xff] %v3054
    %3061 = vst [vmem:[#allocation13 + $0x8] sm:$0xff] %v3056
    // Predicated region
    $region58: #{tpu_custom_call.1} parent=1 // pred_check
      _
    $region59: #{tpu_custom_call.1} parent=1 // pred_check_branch
      %3063 = sbr.rel (0) target = $region61
    $region60: #{tpu_custom_call.1} parent=1 // pred_region
      %s3065 = ssub.s32 256, 256
      %3066 = vsyncadd [#allocation4], %s3065
      %s3068 = sshll.u32 [#allocation13], 4
      %s3069 = int_to_ptr.vmem [resolvable:$true] %s3068
      %3071 = dma.vmem_to_hbm [thread:$0]  %s3069, 256, %s8, [#allocation4]
    $region61: #{tpu_custom_call.1} parent=1 // pred_fallthru
      _
    // Predicated region
    $region62: #{tpu_custom_call.1} parent=1 // pred_check
      _
    $region63: #{tpu_custom_call.1} parent=1 // pred_check_branch
      %3073 = sbr.rel (0) target = $region65
    $region64: #{tpu_custom_call.1} parent=1 // pred_region
      %3074 = dma.done [#allocation4], 256
    $region65: #{tpu_custom_call.1} parent=1 // pred_fallthru
      _
    %3075 = vsyncpa [#allocation3], 1
    %3076 = vsyncpa [#allocation6], 1
    %3077 = vsyncpa [#allocation9], 1
    %3078 = vsyncpa [#allocation12], 1
    %3079 = vsyncpa [#allocation4], 1

</llo_original>
